<compile_context>
chip_gen: v7x
topology: tpu7x:2x2x1
jax: 0.10.0
libtpu: 0.0.40
codegen_flags: <defaults>
</compile_context>

<pallas_src>
import functools
import math

import jax
import jax.numpy as jnp
from jax.experimental import pallas as pl
from jax.experimental.pallas import tpu as pltpu

BN_EPS = 1e-5
MASK_VALUE = -1e30             # finite causal mask value (no all -inf rows -> NaN)
MATMUL_DTYPE = jnp.bfloat16    # MXU weight dtype (accumulation is always f32)
ACT_DTYPE = jnp.bfloat16       # inter-kernel activation dtype
# Set MATMUL_DTYPE = ACT_DTYPE = jnp.float32 for closer bit-matching to PyTorch f32.


# ---------------------------------------------------------------------------
# Hardware-aware tiling / VMEM configuration (v5e / v6e / v7x).
# ---------------------------------------------------------------------------

@functools.lru_cache(maxsize=None)
def _vmem_capacity_bytes():
    try:
        return int(pltpu.get_tpu_info().vmem_capacity_bytes)
    except Exception:                       # older jax / interpret fallback
        return 128 * 1024 * 1024


def _vmem_limit_bytes():
    # Leave compiler headroom: 0.75x capacity, capped at 96 MiB (128-MiB parts);
    # on v7x (64 MiB / TC) this lands at ~48 MiB.
    return min(int(_vmem_capacity_bytes() * 3 // 4), 96 * 1024 * 1024)


def _mn_tile_candidates():
    if _vmem_capacity_bytes() <= 96 * 1024 * 1024:   # v7x-class: 64 MiB / TC
        return (256, 128)
    return (512, 256, 128)                           # v5e / v6e: 128 MiB


_K_TILE_CANDIDATES = (512, 256, 128)
_ATTN_TILE_CANDIDATES = (256, 128)


def _pick_tile(dim, candidates, max_fallback=4096):
    """Largest candidate evenly dividing `dim`; else the full dim (small dims only)."""
    for c in candidates:
        if dim % c == 0:
            return c
    if dim > max_fallback:
        # TODO(synk): pad to a multiple of 128 (+ masking) instead of failing.
        raise ValueError(f"dimension {dim} is not a multiple of 128; pad it first")
    return dim


def _gelu_exact(x):
    return 0.5 * x * (1.0 + jax.lax.erf(x * (1.0 / math.sqrt(2.0))))


# ---------------------------------------------------------------------------
# Tiled linear kernels: y = x @ Wt + b  (+ fused epilogues), K-accumulated.
# ---------------------------------------------------------------------------

def _acc_step(x_ref, w_ref, acc_ref):
    @pl.when(pl.program_id(2) == 0)
    def _init():
        acc_ref[...] = jnp.zeros(acc_ref.shape, acc_ref.dtype)

    acc_ref[...] += jnp.dot(x_ref[...].astype(w_ref.dtype), w_ref[...],
                            preferred_element_type=jnp.float32)


def _is_last_k():
    return pl.program_id(2) == pl.num_programs(2) - 1


def _linear_kernel(x_ref, w_ref, b_ref, o_ref, acc_ref):
    _acc_step(x_ref, w_ref, acc_ref)

    @pl.when(_is_last_k())
    def _fin():
        o_ref[...] = (acc_ref[...] + b_ref[...]).astype(o_ref.dtype)


def _linear_gelu_kernel(x_ref, w_ref, b_ref, o_ref, acc_ref):
    _acc_step(x_ref, w_ref, acc_ref)

    @pl.when(_is_last_k())
    def _fin():
        o_ref[...] = _gelu_exact(acc_ref[...] + b_ref[...]).astype(o_ref.dtype)


def _linear_resid_bn_kernel(x_ref, w_ref, b_ref, r_ref, g_ref, s_ref,
                            resid_ref, bn_ref, acc_ref):
    # resid = r + x@W + b ; bn = bn_scale * resid + bn_shift  (BatchNorm1d, eval)
    _acc_step(x_ref, w_ref, acc_ref)

    @pl.when(_is_last_k())
    def _fin():
        resid = acc_ref[...] + b_ref[...] + r_ref[...]          # f32 math
        resid_ref[...] = resid.astype(resid_ref.dtype)
        bn_ref[...] = (g_ref[...] * resid + s_ref[...]).astype(bn_ref.dtype)


def _linear_add_bn_kernel(x_ref, w_ref, b_ref, a_ref, g_ref, s_ref,
                          o_ref, acc_ref):
    # out = bn_scale * (x@W + b + a) + bn_shift
    _acc_step(x_ref, w_ref, acc_ref)

    @pl.when(_is_last_k())
    def _fin():
        y = acc_ref[...] + b_ref[...] + a_ref[...]               # f32 math
        o_ref[...] = (g_ref[...] * y + s_ref[...]).astype(o_ref.dtype)


def _tiled_matmul(kernel_fn, x, w_t, b, extras=(), out_dtypes=(jnp.float32,)):
    M, K = x.shape
    Kw, N = w_t.shape
    assert Kw == K
    mn_cands = _mn_tile_candidates()
    tm = _pick_tile(M, mn_cands)
    tn = _pick_tile(N, mn_cands)
    tk = _pick_tile(K, _K_TILE_CANDIDATES)
    grid = (M // tm, N // tn, K // tk)

    def x_map(i, j, k): return (i, k)
    def w_map(i, j, k): return (k, j)
    def row_map(i, j, k): return (0, j)
    def out_map(i, j, k): return (i, j)

    # TODO(synk): if profiling shows exposed weight DMA at small M, raise the
    # weight BlockSpec pipelining depth via pipeline_mode=pl.Buffered(3).
    in_specs = [pl.BlockSpec((tm, tk), x_map),
                pl.BlockSpec((tk, tn), w_map),
                pl.BlockSpec((1, tn), row_map)]
    for e in extras:
        if e.shape[0] == 1:                       # per-channel row vector (1, N)
            in_specs.append(pl.BlockSpec((1, tn), row_map))
        else:                                     # full (M, N) operand
            in_specs.append(pl.BlockSpec((tm, tn), out_map))

    out_shape = tuple(jax.ShapeDtypeStruct((M, N), dt) for dt in out_dtypes)
    out_specs = tuple(pl.BlockSpec((tm, tn), out_map) for _ in out_dtypes)
    if len(out_dtypes) == 1:
        out_shape, out_specs = out_shape[0], out_specs[0]

    return pl.pallas_call(
        kernel_fn,
        out_shape=out_shape,
        grid=grid,
        in_specs=in_specs,
        out_specs=out_specs,
        scratch_shapes=[pltpu.VMEM((tm, tn), jnp.float32)],
        compiler_params=pltpu.CompilerParams(
            dimension_semantics=("parallel", "parallel", "arbitrary"),
            vmem_limit_bytes=_vmem_limit_bytes()),
    )(x, w_t, b, *extras)


# ---------------------------------------------------------------------------
# Flash-style causal multi-head attention.
#   grid = (B, q_tiles, kv_tiles); blocks are full-D row tiles of (B, S, D),
#   heads split in-register (static unroll); merged output written lane-dense.
# ---------------------------------------------------------------------------

def _mha_kernel(q_ref, k_ref, v_ref, o_ref, m_sc, l_sc, acc_sc, *,
                n_heads, head_dim):
    qi, ki = pl.program_id(1), pl.program_id(2)
    tq, tk = q_ref.shape[1], k_ref.shape[1]

    @pl.when(ki == 0)
    def _init():
        m_sc[...] = jnp.full(m_sc.shape, -jnp.inf, m_sc.dtype)
        l_sc[...] = jnp.zeros(l_sc.shape, l_sc.dtype)
        acc_sc[...] = jnp.zeros(acc_sc.shape, acc_sc.dtype)

    # Causal tile skip (tq == tk): kv tiles strictly in the future do no work
    # (and, via the clamped kv index_map, were never DMA'd either).
    @pl.when(ki <= qi)
    def _compute():
        rows = qi * tq + jax.lax.broadcasted_iota(jnp.int32, (tq, tk), 0)
        cols = ki * tk + jax.lax.broadcasted_iota(jnp.int32, (tq, tk), 1)
        causal = cols <= rows
        # TODO(synk): pack two heads per MXU pass (block-diagonal QK) when
        # head_dim < 128 to fill the 256-wide v6e/v7x MXU contraction.
        for h in range(n_heads):                      # static unroll over heads
            hs = pl.ds(h * head_dim, head_dim)
            q = q_ref[0, :, hs]                       # (tq, hd); 1/sqrt(hd) folded in Wq
            k = k_ref[0, :, hs]                       # (tk, hd)
            s = jax.lax.dot_general(q, k, (((1,), (1,)), ((), ())),
                                    preferred_element_type=jnp.float32)
            s = jnp.where(causal, s, MASK_VALUE)
            m_prev = m_sc[h]                          # (tq, 1)
            m_new = jnp.maximum(m_prev, jnp.max(s, axis=-1, keepdims=True))
            alpha = jnp.exp(m_prev - m_new)
            p = jnp.exp(s - m_new)
            l_sc[h] = alpha * l_sc[h] + jnp.sum(p, axis=-1, keepdims=True)
            acc_sc[h] = alpha * acc_sc[h] + jnp.dot(
                p.astype(v_ref.dtype), v_ref[0, :, hs],
                preferred_element_type=jnp.float32)
            m_sc[h] = m_new

    @pl.when(ki == pl.num_programs(2) - 1)
    def _fin():
        # Merge heads back into the (tq, D) slab: one dense, lane-wide store.
        merged = jnp.concatenate(
            [acc_sc[h] / l_sc[h] for h in range(n_heads)], axis=-1)
        o_ref[0] = merged.astype(o_ref.dtype)


def _flash_attention(q, k, v, n_heads):
    # q, k, v: (B, S, D) — no XLA head transposes; heads are split in-kernel.
    B, S, D = q.shape
    hd = D // n_heads
    t = _pick_tile(S, _ATTN_TILE_CANDIDATES)          # q tile == kv tile
    grid = (B, S // t, S // t)

    def q_map(b, qi, ki): return (b, qi, 0)
    def kv_map(b, qi, ki): return (b, jnp.minimum(ki, qi), 0)   # skip masked DMA

    kernel = functools.partial(_mha_kernel, n_heads=n_heads, head_dim=hd)
    return pl.pallas_call(
        kernel,
        out_shape=jax.ShapeDtypeStruct((B, S, D), q.dtype),
        grid=grid,
        in_specs=[pl.BlockSpec((1, t, D), q_map),
                  pl.BlockSpec((1, t, D), kv_map),
                  pl.BlockSpec((1, t, D), kv_map)],
        out_specs=pl.BlockSpec((1, t, D), q_map),
        scratch_shapes=[pltpu.VMEM((n_heads, t, 1), jnp.float32),    # running max
                        pltpu.VMEM((n_heads, t, 1), jnp.float32),    # running sum
                        pltpu.VMEM((n_heads, t, hd), jnp.float32)],  # out accumulator
        compiler_params=pltpu.CompilerParams(
            dimension_semantics=("parallel", "parallel", "arbitrary"),
            vmem_limit_bytes=_vmem_limit_bytes()),
    )(q, k, v)


# ---------------------------------------------------------------------------
# Block / model forward.
# ---------------------------------------------------------------------------

def gpt_block_forward(x2, p, B, S, D, H):
    # x2: (B*S, D) activations (ACT_DTYPE).
    q = _tiled_matmul(_linear_kernel, x2, p["wq_t"], p["bq"], out_dtypes=(ACT_DTYPE,))
    k = _tiled_matmul(_linear_kernel, x2, p["wk_t"], p["bk"], out_dtypes=(ACT_DTYPE,))
    v = _tiled_matmul(_linear_kernel, x2, p["wv_t"], p["bv"], out_dtypes=(ACT_DTYPE,))

    att = _flash_attention(q.reshape(B, S, D), k.reshape(B, S, D),
                           v.reshape(B, S, D), H)          # free reshapes, no transpose
    att = att.reshape(B * S, D)

    # fc_out + residual + bn1 fused:  resid = x + att@Wo + bo ; adn = bn1(resid)
    resid, adn = _tiled_matmul(
        _linear_resid_bn_kernel, att, p["wo_t"], p["bo"],
        extras=(x2, p["bn1_scale"], p["bn1_shift"]),
        out_dtypes=(ACT_DTYPE, ACT_DTYPE))

    # MLP on the pre-BN residual (dropout is identity in eval); GELU in epilogue.
    h1 = _tiled_matmul(_linear_gelu_kernel, resid, p["w1_t"], p["b1"],
                       out_dtypes=(ACT_DTYPE,))
    # fc2 + add adn + bn2 fused.
    return _tiled_matmul(
        _linear_add_bn_kernel, h1, p["w2_t"], p["b2"],
        extras=(adn, p["bn2_scale"], p["bn2_shift"]),
        out_dtypes=(ACT_DTYPE,))


def gpt_forward(x, params, n_heads):
    B, S, D = x.shape
    x2 = x.reshape(B * S, D).astype(ACT_DTYPE)
    # TODO(synk): fold the layer loop into one pallas_call (layer grid axis) or
    # add cross-call DMA-future weight prefetch to hide each block's cold
    # weight fetch behind the previous block's compute.
    for p in params["blocks"]:
        x2 = gpt_block_forward(x2, p, B, S, D, n_heads)
    logits = _tiled_matmul(_linear_kernel, x2, params["lin_w_t"], params["lin_b"],
                           out_dtypes=(jnp.float32,))
    # TODO(synk): targets!=None branch (cross_entropy + mse loss) not implemented;
    # inference path only.
    return logits.reshape(B, S, D), None


# ---------------------------------------------------------------------------
# Deterministic PyTorch-style parameter init (with TPU-friendly folding).
# ---------------------------------------------------------------------------

def _init_linear(key, in_f, out_f):
    k1, k2 = jax.random.split(key)
    bound = 1.0 / math.sqrt(in_f)
    w = jax.random.uniform(k1, (out_f, in_f), jnp.float32, -bound, bound)
    b = jax.random.uniform(k2, (out_f,), jnp.float32, -bound, bound)
    return w.T, b.reshape(1, out_f)               # (in, out), (1, out)


def _fold_bn(gamma, beta, mean, var, eps=BN_EPS):
    scale = gamma / jnp.sqrt(var + eps)
    shift = beta - mean * scale
    return scale.reshape(1, -1), shift.reshape(1, -1)


def init_block(key, d_model, n_heads, matmul_dtype=MATMUL_DTYPE):
    ks = jax.random.split(key, 6)
    wq_t, bq = _init_linear(ks[0], d_model, d_model)
    wk_t, bk = _init_linear(ks[1], d_model, d_model)
    wv_t, bv = _init_linear(ks[2], d_model, d_model)
    # Fold the attention 1/sqrt(head_dim) scale into the Q projection.
    a_scale = 1.0 / math.sqrt(d_model // n_heads)
    wq_t, bq = wq_t * a_scale, bq * a_scale

    wo_t, bo = _init_linear(ks[3], d_model, d_model)
    w1_t, b1 = _init_linear(ks[4], d_model, 4 * d_model)
    w2_t, b2 = _init_linear(ks[5], 4 * d_model, d_model)

    # BatchNorm1d eval-mode stats (fresh init: mean=0, var=1), affine defaults,
    # pre-folded into per-channel scale/shift (supports arbitrary running stats).
    ones = jnp.ones((d_model,), jnp.float32)
    zeros = jnp.zeros((d_model,), jnp.float32)
    bn1_scale, bn1_shift = _fold_bn(ones, zeros, zeros, ones)
    bn2_scale, bn2_shift = _fold_bn(ones, zeros, zeros, ones)

    # TODO(synk): optional fp8 (v7x) / int8 (v6e) weight quantization with
    # per-channel scales applied in the f32 epilogue.
    return {
        "wq_t": wq_t.astype(matmul_dtype), "bq": bq,
        "wk_t": wk_t.astype(matmul_dtype), "bk": bk,
        "wv_t": wv_t.astype(matmul_dtype), "bv": bv,
        "wo_t": wo_t.astype(matmul_dtype), "bo": bo,
        "w1_t": w1_t.astype(matmul_dtype), "b1": b1,
        "w2_t": w2_t.astype(matmul_dtype), "b2": b2,
        "bn1_scale": bn1_scale, "bn1_shift": bn1_shift,
        "bn2_scale": bn2_scale, "bn2_shift": bn2_shift,
    }


def init_gpt(key, d_model, n_heads, n_layers, matmul_dtype=MATMUL_DTYPE):
    keys = jax.random.split(key, n_layers + 1)
    blocks = [init_block(keys[i], d_model, n_heads, matmul_dtype)
              for i in range(n_layers)]
    lin_w_t, lin_b = _init_linear(keys[-1], d_model, d_model)
    return {"blocks": blocks,
            "lin_w_t": lin_w_t.astype(matmul_dtype), "lin_b": lin_b}


if __name__ == "__main__":
    B, S, D, H, L = 2, 8, 32, 4, 2

    key = jax.random.PRNGKey(0)
    k_params, k_x = jax.random.split(key)
    params = init_gpt(k_params, D, H, L)
    x = jax.random.normal(k_x, (B, S, D), dtype=jnp.float32)

    fwd = jax.jit(functools.partial(gpt_forward, n_heads=H))
    logits, loss = fwd(x, params)
    logits = jax.block_until_ready(logits)

    assert logits.shape == (B, S, D)
    assert bool(jnp.all(jnp.isfinite(logits)))
    print("KERNEL_OK")
</pallas_src>

<mosaic_0001>
module attributes {stable_mosaic.version = 11 : i64} {
  func.func @_linear_kernel(%arg0: i32, %arg1: i32, %arg2: i32, %arg3: memref<16x32xbf16, #tpu.memory_space<vmem>>, %arg4: memref<32x32xbf16, #tpu.memory_space<vmem>>, %arg5: memref<1x32xf32, #tpu.memory_space<vmem>>, %arg6: memref<16x32xbf16, #tpu.memory_space<vmem>>, %arg7: memref<16x32xf32, #tpu.memory_space<vmem>>) attributes {dimension_semantics = [#tpu.dimension_semantics<parallel>, #tpu.dimension_semantics<parallel>, #tpu.dimension_semantics<arbitrary>], iteration_bounds = array<i64: 1, 1, 1>, scalar_prefetch = 0 : i64, scratch_operands = 1 : i64, tpu.core_type = #tpu.core_type<tc>, window_params = [{transform_indices = @transform_0, window_bounds = array<i64: 16, 32>}, {transform_indices = @transform_1, window_bounds = array<i64: 32, 32>}, {transform_indices = @transform_2, window_bounds = array<i64: 1, 32>}, {transform_indices = @transform_3, window_bounds = array<i64: 16, 32>}]} {
    %c0_i32 = arith.constant 0 : i32
    %0 = arith.cmpi eq, %arg2, %c0_i32 : i32
    %1 = arith.extui %0 : i1 to i32
    %c0_i32_0 = arith.constant 0 : i32
    %2 = arith.cmpi ne, %1, %c0_i32_0 : i32
    scf.if %2 {
      %cst_10 = arith.constant 0.000000e+00 : f32
      %12 = vector.broadcast %cst_10 : f32 to vector<16x32xf32>
      %c0_11 = arith.constant 0 : index
      %c0_12 = arith.constant 0 : index
      %13 = vector.load %arg7[%c0_11, %c0_12] : memref<16x32xf32, #tpu.memory_space<vmem>>, vector<16x32xf32>
      tpu.vector_store %arg7[%c0_11, %c0_12], %12 {strides = array<i32>} : memref<16x32xf32, #tpu.memory_space<vmem>>, vector<16x32xf32>,
    } else {
    }
    %c0 = arith.constant 0 : index
    %c0_1 = arith.constant 0 : index
    %3 = vector.load %arg7[%c0, %c0_1] : memref<16x32xf32, #tpu.memory_space<vmem>>, vector<16x32xf32>
    %c0_2 = arith.constant 0 : index
    %c0_3 = arith.constant 0 : index
    %4 = vector.load %arg3[%c0_2, %c0_3] : memref<16x32xbf16, #tpu.memory_space<vmem>>, vector<16x32xbf16>
    %c0_4 = arith.constant 0 : index
    %c0_5 = arith.constant 0 : index
    %5 = vector.load %arg4[%c0_4, %c0_5] : memref<32x32xbf16, #tpu.memory_space<vmem>>, vector<32x32xbf16>
    %cst = arith.constant dense<0.000000e+00> : vector<16x32xf32>
    %6 = tpu.matmul %4, %5, %cst {dimension_numbers = #tpu.dot_dimension_numbers<[1], [0], [0], [1], [0, 0, 1, 1], [], []>} : vector<16x32xbf16>, vector<32x32xbf16>, vector<16x32xf32> -> vector<16x32xf32>
    %7 = arith.addf %3, %6 : vector<16x32xf32>
    %c0_6 = arith.constant 0 : index
    %c0_7 = arith.constant 0 : index
    %8 = vector.load %arg7[%c0_6, %c0_7] : memref<16x32xf32, #tpu.memory_space<vmem>>, vector<16x32xf32>
    tpu.vector_store %arg7[%c0_6, %c0_7], %7 {strides = array<i32>} : memref<16x32xf32, #tpu.memory_space<vmem>>, vector<16x32xf32>,
    %c0_i32_8 = arith.constant 0 : i32
    %9 = arith.cmpi eq, %arg2, %c0_i32_8 : i32
    %10 = arith.extui %9 : i1 to i32
    %c0_i32_9 = arith.constant 0 : i32
    %11 = arith.cmpi ne, %10, %c0_i32_9 : i32
    scf.if %11 {
      %c0_10 = arith.constant 0 : index
      %c0_11 = arith.constant 0 : index
      %12 = vector.load %arg7[%c0_10, %c0_11] : memref<16x32xf32, #tpu.memory_space<vmem>>, vector<16x32xf32>
      %c0_12 = arith.constant 0 : index
      %c0_13 = arith.constant 0 : index
      %13 = vector.load %arg5[%c0_12, %c0_13] : memref<1x32xf32, #tpu.memory_space<vmem>>, vector<1x32xf32>
      %14 = vector.broadcast %13 : vector<1x32xf32> to vector<16x32xf32>
      %15 = arith.addf %12, %14 : vector<16x32xf32>
      %16 = arith.truncf %15 : vector<16x32xf32> to vector<16x32xbf16>
      %c0_14 = arith.constant 0 : index
      %c0_15 = arith.constant 0 : index
      %17 = vector.load %arg6[%c0_14, %c0_15] : memref<16x32xbf16, #tpu.memory_space<vmem>>, vector<16x32xbf16>
      tpu.vector_store %arg6[%c0_14, %c0_15], %16 {strides = array<i32>} : memref<16x32xbf16, #tpu.memory_space<vmem>>, vector<16x32xbf16>,
    } else {
    }
    return
  }
  func.func @transform_0(%arg0: i32, %arg1: i32, %arg2: i32) -> (i32, i32) {
    %c0_i32 = arith.constant 0 : i32
    return %arg0, %arg2 : i32, i32
  }
  func.func @transform_1(%arg0: i32, %arg1: i32, %arg2: i32) -> (i32, i32) {
    %c0_i32 = arith.constant 0 : i32
    return %arg2, %arg1 : i32, i32
  }
  func.func @transform_2(%arg0: i32, %arg1: i32, %arg2: i32) -> (i32, i32) {
    %c0_i32 = arith.constant 0 : i32
    %c0_i32_0 = arith.constant 0 : i32
    return %c0_i32, %arg1 : i32, i32
  }
  func.func @transform_3(%arg0: i32, %arg1: i32, %arg2: i32) -> (i32, i32) {
    %c0_i32 = arith.constant 0 : i32
    return %arg0, %arg1 : i32, i32
  }
}

module attributes {stable_mosaic.version = 11 : i64} {
  func.func @_mha_kernel(%arg0: i32, %arg1: i32, %arg2: i32, %arg3: memref<1x8x32xbf16, #tpu.memory_space<vmem>>, %arg4: memref<1x8x32xbf16, #tpu.memory_space<vmem>>, %arg5: memref<1x8x32xbf16, #tpu.memory_space<vmem>>, %arg6: memref<1x8x32xbf16, #tpu.memory_space<vmem>>, %arg7: memref<4x8x1xf32, #tpu.memory_space<vmem>>, %arg8: memref<4x8x1xf32, #tpu.memory_space<vmem>>, %arg9: memref<4x8x8xf32, #tpu.memory_space<vmem>>) attributes {dimension_semantics = [#tpu.dimension_semantics<parallel>, #tpu.dimension_semantics<parallel>, #tpu.dimension_semantics<arbitrary>], iteration_bounds = array<i64: 2, 1, 1>, scalar_prefetch = 0 : i64, scratch_operands = 3 : i64, tpu.core_type = #tpu.core_type<tc>, window_params = [{transform_indices = @transform_0, window_bounds = array<i64: 1, 8, 32>}, {transform_indices = @transform_1, window_bounds = array<i64: 1, 8, 32>}, {transform_indices = @transform_2, window_bounds = array<i64: 1, 8, 32>}, {transform_indices = @transform_3, window_bounds = array<i64: 1, 8, 32>}]} {
    %c0_i32 = arith.constant 0 : i32
    %0 = arith.cmpi eq, %arg2, %c0_i32 : i32
    %1 = arith.extui %0 : i1 to i32
    %c0_i32_0 = arith.constant 0 : i32
    %2 = arith.cmpi ne, %1, %c0_i32_0 : i32
    scf.if %2 {
      %cst = arith.constant 0xFF800000 : f32
      %9 = vector.broadcast %cst : f32 to vector<4x8x1xf32>
      %c0 = arith.constant 0 : index
      %c0_4 = arith.constant 0 : index
      %c0_5 = arith.constant 0 : index
      %10 = vector.load %arg7[%c0, %c0_4, %c0_5] : memref<4x8x1xf32, #tpu.memory_space<vmem>>, vector<4x8x1xf32>
      tpu.vector_store %arg7[%c0, %c0_4, %c0_5], %9 {strides = array<i32>} : memref<4x8x1xf32, #tpu.memory_space<vmem>>, vector<4x8x1xf32>,
      %cst_6 = arith.constant 0.000000e+00 : f32
      %11 = vector.broadcast %cst_6 : f32 to vector<4x8x1xf32>
      %c0_7 = arith.constant 0 : index
      %c0_8 = arith.constant 0 : index
      %c0_9 = arith.constant 0 : index
      %12 = vector.load %arg8[%c0_7, %c0_8, %c0_9] : memref<4x8x1xf32, #tpu.memory_space<vmem>>, vector<4x8x1xf32>
      tpu.vector_store %arg8[%c0_7, %c0_8, %c0_9], %11 {strides = array<i32>} : memref<4x8x1xf32, #tpu.memory_space<vmem>>, vector<4x8x1xf32>,
      %cst_10 = arith.constant 0.000000e+00 : f32
      %13 = vector.broadcast %cst_10 : f32 to vector<4x8x8xf32>
      %c0_11 = arith.constant 0 : index
      %c0_12 = arith.constant 0 : index
      %c0_13 = arith.constant 0 : index
      %14 = vector.load %arg9[%c0_11, %c0_12, %c0_13] : memref<4x8x8xf32, #tpu.memory_space<vmem>>, vector<4x8x8xf32>
      tpu.vector_store %arg9[%c0_11, %c0_12, %c0_13], %13 {strides = array<i32>} : memref<4x8x8xf32, #tpu.memory_space<vmem>>, vector<4x8x8xf32>,
    } else {
    }
    %3 = arith.cmpi sle, %arg2, %arg1 : i32
    %4 = arith.extui %3 : i1 to i32
    %c0_i32_1 = arith.constant 0 : i32
    %5 = arith.cmpi ne, %4, %c0_i32_1 : i32
    scf.if %5 {
      %c8_i32 = arith.constant 8 : i32
      %9 = arith.muli %arg1, %c8_i32 : i32
      %10 = tpu.iota {dimensions = array<i32: 0>} : vector<8x8xi32>
      %11 = vector.broadcast %9 : i32 to vector<8x8xi32>
      %12 = arith.addi %11, %10 : vector<8x8xi32>
      %c8_i32_4 = arith.constant 8 : i32
      %13 = arith.muli %arg2, %c8_i32_4 : i32
      %14 = tpu.iota {dimensions = array<i32: 1>} : vector<8x8xi32>
      %15 = vector.broadcast %13 : i32 to vector<8x8xi32>
      %16 = arith.addi %15, %14 : vector<8x8xi32>
      %17 = arith.cmpi sle, %16, %12 : vector<8x8xi32>
      %c0 = arith.constant 0 : index
      %c0_5 = arith.constant 0 : index
      %c0_6 = arith.constant 0 : index
      %18 = vector.load %arg3[%c0, %c0_5, %c0_6] : memref<1x8x32xbf16, #tpu.memory_space<vmem>>, vector<1x8x8xbf16>
      %19 = vector.shape_cast %18 : vector<1x8x8xbf16> to vector<8x8xbf16>
      %c0_7 = arith.constant 0 : index
      %c0_8 = arith.constant 0 : index
      %c0_9 = arith.constant 0 : index
      %20 = vector.load %arg4[%c0_7, %c0_8, %c0_9] : memref<1x8x32xbf16, #tpu.memory_space<vmem>>, vector<1x8x8xbf16>
      %21 = vector.shape_cast %20 : vector<1x8x8xbf16> to vector<8x8xbf16>
      %cst = arith.constant dense<0.000000e+00> : vector<8x8xf32>
      %22 = tpu.matmul %19, %21, %cst {dimension_numbers = #tpu.dot_dimension_numbers<[1], [1], [0], [0], [0, 0, 1, 0], [], []>} : vector<8x8xbf16>, vector<8x8xbf16>, vector<8x8xf32> -> vector<8x8xf32>
      %cst_10 = arith.constant -1.000000e+30 : f32
      %23 = vector.broadcast %cst_10 : f32 to vector<8x8xf32>
      %24 = arith.select %17, %22, %23 : vector<8x8xi1>, vector<8x8xf32>
      %c0_11 = arith.constant 0 : index
      %c0_12 = arith.constant 0 : index
      %c0_13 = arith.constant 0 : index
      %25 = vector.load %arg7[%c0_11, %c0_12, %c0_13] : memref<4x8x1xf32, #tpu.memory_space<vmem>>, vector<1x8x1xf32>
      %26 = vector.shape_cast %25 : vector<1x8x1xf32> to vector<8x1xf32>
      %cst_14 = arith.constant dense<0xFF800000> : vector<8xf32>
      %27 = vector.multi_reduction <maximumf>, %24, %cst_14 [1] : vector<8x8xf32> to vector<8xf32>
      %28 = vector.shape_cast %27 : vector<8xf32> to vector<8x1xf32>
      %29 = arith.maximumf %26, %28 : vector<8x1xf32>
      %30 = arith.subf %26, %29 : vector<8x1xf32>
      %31 = math.exp %30 : vector<8x1xf32>
      %32 = vector.broadcast %29 : vector<8x1xf32> to vector<8x8xf32>
      %33 = arith.subf %24, %32 : vector<8x8xf32>
      %34 = math.exp %33 : vector<8x8xf32>
      %c0_15 = arith.constant 0 : index
      %c0_16 = arith.constant 0 : index
      %c0_17 = arith.constant 0 : index
      %35 = vector.load %arg8[%c0_15, %c0_16, %c0_17] : memref<4x8x1xf32, #tpu.memory_space<vmem>>, vector<1x8x1xf32>
      %36 = vector.shape_cast %35 : vector<1x8x1xf32> to vector<8x1xf32>
      %37 = arith.mulf %31, %36 : vector<8x1xf32>
      %cst_18 = arith.constant dense<0.000000e+00> : vector<8xf32>
      %38 = vector.multi_reduction <add>, %34, %cst_18 [1] : vector<8x8xf32> to vector<8xf32>
      %39 = vector.shape_cast %38 : vector<8xf32> to vector<8x1xf32>
      %40 = arith.addf %37, %39 : vector<8x1xf32>
      %c0_19 = arith.constant 0 : index
      %c0_20 = arith.constant 0 : index
      %c0_21 = arith.constant 0 : index
      %41 = vector.load %arg8[%c0_19, %c0_20, %c0_21] : memref<4x8x1xf32, #tpu.memory_space<vmem>>, vector<1x8x1xf32>
      %42 = vector.shape_cast %41 : vector<1x8x1xf32> to vector<8x1xf32>
      %43 = vector.shape_cast %40 : vector<8x1xf32> to vector<1x8x1xf32>
      tpu.vector_store %arg8[%c0_19, %c0_20, %c0_21], %43 {strides = array<i32>} : memref<4x8x1xf32, #tpu.memory_space<vmem>>, vector<1x8x1xf32>,
      %c0_22 = arith.constant 0 : index
      %c0_23 = arith.constant 0 : index
      %c0_24 = arith.constant 0 : index
      %44 = vector.load %arg9[%c0_22, %c0_23, %c0_24] : memref<4x8x8xf32, #tpu.memory_space<vmem>>, vector<1x8x8xf32>
      %45 = vector.shape_cast %44 : vector<1x8x8xf32> to vector<8x8xf32>
      %46 = vector.broadcast %31 : vector<8x1xf32> to vector<8x8xf32>
      %47 = arith.mulf %46, %45 : vector<8x8xf32>
      %48 = arith.truncf %34 : vector<8x8xf32> to vector<8x8xbf16>
      %c0_25 = arith.constant 0 : index
      %c0_26 = arith.constant 0 : index
      %c0_27 = arith.constant 0 : index
      %49 = vector.load %arg5[%c0_25, %c0_26, %c0_27] : memref<1x8x32xbf16, #tpu.memory_space<vmem>>, vector<1x8x8xbf16>
      %50 = vector.shape_cast %49 : vector<1x8x8xbf16> to vector<8x8xbf16>
      %cst_28 = arith.constant dense<0.000000e+00> : vector<8x8xf32>
      %51 = tpu.matmul %48, %50, %cst_28 {dimension_numbers = #tpu.dot_dimension_numbers<[1], [0], [0], [1], [0, 0, 1, 1], [], []>} : vector<8x8xbf16>, vector<8x8xbf16>, vector<8x8xf32> -> vector<8x8xf32>
      %52 = arith.addf %47, %51 : vector<8x8xf32>
      %c0_29 = arith.constant 0 : index
      %c0_30 = arith.constant 0 : index
      %c0_31 = arith.constant 0 : index
      %53 = vector.load %arg9[%c0_29, %c0_30, %c0_31] : memref<4x8x8xf32, #tpu.memory_space<vmem>>, vector<1x8x8xf32>
      %54 = vector.shape_cast %53 : vector<1x8x8xf32> to vector<8x8xf32>
      %55 = vector.shape_cast %52 : vector<8x8xf32> to vector<1x8x8xf32>
      tpu.vector_store %arg9[%c0_29, %c0_30, %c0_31], %55 {strides = array<i32>} : memref<4x8x8xf32, #tpu.memory_space<vmem>>, vector<1x8x8xf32>,
      %c0_32 = arith.constant 0 : index
      %c0_33 = arith.constant 0 : index
      %c0_34 = arith.constant 0 : index
      %56 = vector.load %arg7[%c0_32, %c0_33, %c0_34] : memref<4x8x1xf32, #tpu.memory_space<vmem>>, vector<1x8x1xf32>
      %57 = vector.shape_cast %56 : vector<1x8x1xf32> to vector<8x1xf32>
      %58 = vector.shape_cast %29 : vector<8x1xf32> to vector<1x8x1xf32>
      tpu.vector_store %arg7[%c0_32, %c0_33, %c0_34], %58 {strides = array<i32>} : memref<4x8x1xf32, #tpu.memory_space<vmem>>, vector<1x8x1xf32>,
      %c0_35 = arith.constant 0 : index
      %c0_36 = arith.constant 0 : index
      %c8 = arith.constant 8 : index
      %59 = vector.load %arg3[%c0_35, %c0_36, %c8] : memref<1x8x32xbf16, #tpu.memory_space<vmem>>, vector<1x8x8xbf16>
      %60 = vector.shape_cast %59 : vector<1x8x8xbf16> to vector<8x8xbf16>
      %c0_37 = arith.constant 0 : index
      %c0_38 = arith.constant 0 : index
      %c8_39 = arith.constant 8 : index
      %61 = vector.load %arg4[%c0_37, %c0_38, %c8_39] : memref<1x8x32xbf16, #tpu.memory_space<vmem>>, vector<1x8x8xbf16>
      %62 = vector.shape_cast %61 : vector<1x8x8xbf16> to vector<8x8xbf16>
      %cst_40 = arith.constant dense<0.000000e+00> : vector<8x8xf32>
      %63 = tpu.matmul %60, %62, %cst_40 {dimension_numbers = #tpu.dot_dimension_numbers<[1], [1], [0], [0], [0, 0, 1, 0], [], []>} : vector<8x8xbf16>, vector<8x8xbf16>, vector<8x8xf32> -> vector<8x8xf32>
      %cst_41 = arith.constant -1.000000e+30 : f32
      %64 = vector.broadcast %cst_41 : f32 to vector<8x8xf32>
      %65 = arith.select %17, %63, %64 : vector<8x8xi1>, vector<8x8xf32>
      %c1 = arith.constant 1 : index
      %c0_42 = arith.constant 0 : index
      %c0_43 = arith.constant 0 : index
      %66 = vector.load %arg7[%c1, %c0_42, %c0_43] : memref<4x8x1xf32, #tpu.memory_space<vmem>>, vector<1x8x1xf32>
      %67 = vector.shape_cast %66 : vector<1x8x1xf32> to vector<8x1xf32>
      %cst_44 = arith.constant dense<0xFF800000> : vector<8xf32>
      %68 = vector.multi_reduction <maximumf>, %65, %cst_44 [1] : vector<8x8xf32> to vector<8xf32>
      %69 = vector.shape_cast %68 : vector<8xf32> to vector<8x1xf32>
      %70 = arith.maximumf %67, %69 : vector<8x1xf32>
      %71 = arith.subf %67, %70 : vector<8x1xf32>
      %72 = math.exp %71 : vector<8x1xf32>
      %73 = vector.broadcast %70 : vector<8x1xf32> to vector<8x8xf32>
      %74 = arith.subf %65, %73 : vector<8x8xf32>
      %75 = math.exp %74 : vector<8x8xf32>
      %c1_45 = arith.constant 1 : index
      %c0_46 = arith.constant 0 : index
      %c0_47 = arith.constant 0 : index
      %76 = vector.load %arg8[%c1_45, %c0_46, %c0_47] : memref<4x8x1xf32, #tpu.memory_space<vmem>>, vector<1x8x1xf32>
      %77 = vector.shape_cast %76 : vector<1x8x1xf32> to vector<8x1xf32>
      %78 = arith.mulf %72, %77 : vector<8x1xf32>
      %cst_48 = arith.constant dense<0.000000e+00> : vector<8xf32>
      %79 = vector.multi_reduction <add>, %75, %cst_48 [1] : vector<8x8xf32> to vector<8xf32>
      %80 = vector.shape_cast %79 : vector<8xf32> to vector<8x1xf32>
      %81 = arith.addf %78, %80 : vector<8x1xf32>
      %c1_49 = arith.constant 1 : index
      %c0_50 = arith.constant 0 : index
      %c0_51 = arith.constant 0 : index
      %82 = vector.load %arg8[%c1_49, %c0_50, %c0_51] : memref<4x8x1xf32, #tpu.memory_space<vmem>>, vector<1x8x1xf32>
      %83 = vector.shape_cast %82 : vector<1x8x1xf32> to vector<8x1xf32>
      %84 = vector.shape_cast %81 : vector<8x1xf32> to vector<1x8x1xf32>
      tpu.vector_store %arg8[%c1_49, %c0_50, %c0_51], %84 {strides = array<i32>} : memref<4x8x1xf32, #tpu.memory_space<vmem>>, vector<1x8x1xf32>,
      %c1_52 = arith.constant 1 : index
      %c0_53 = arith.constant 0 : index
      %c0_54 = arith.constant 0 : index
      %85 = vector.load %arg9[%c1_52, %c0_53, %c0_54] : memref<4x8x8xf32, #tpu.memory_space<vmem>>, vector<1x8x8xf32>
      %86 = vector.shape_cast %85 : vector<1x8x8xf32> to vector<8x8xf32>
      %87 = vector.broadcast %72 : vector<8x1xf32> to vector<8x8xf32>
      %88 = arith.mulf %87, %86 : vector<8x8xf32>
      %89 = arith.truncf %75 : vector<8x8xf32> to vector<8x8xbf16>
      %c0_55 = arith.constant 0 : index
      %c0_56 = arith.constant 0 : index
      %c8_57 = arith.constant 8 : index
      %90 = vector.load %arg5[%c0_55, %c0_56, %c8_57] : memref<1x8x32xbf16, #tpu.memory_space<vmem>>, vector<1x8x8xbf16>
      %91 = vector.shape_cast %90 : vector<1x8x8xbf16> to vector<8x8xbf16>
      %cst_58 = arith.constant dense<0.000000e+00> : vector<8x8xf32>
      %92 = tpu.matmul %89, %91, %cst_58 {dimension_numbers = #tpu.dot_dimension_numbers<[1], [0], [0], [1], [0, 0, 1, 1], [], []>} : vector<8x8xbf16>, vector<8x8xbf16>, vector<8x8xf32> -> vector<8x8xf32>
      %93 = arith.addf %88, %92 : vector<8x8xf32>
      %c1_59 = arith.constant 1 : index
      %c0_60 = arith.constant 0 : index
      %c0_61 = arith.constant 0 : index
      %94 = vector.load %arg9[%c1_59, %c0_60, %c0_61] : memref<4x8x8xf32, #tpu.memory_space<vmem>>, vector<1x8x8xf32>
      %95 = vector.shape_cast %94 : vector<1x8x8xf32> to vector<8x8xf32>
      %96 = vector.shape_cast %93 : vector<8x8xf32> to vector<1x8x8xf32>
      tpu.vector_store %arg9[%c1_59, %c0_60, %c0_61], %96 {strides = array<i32>} : memref<4x8x8xf32, #tpu.memory_space<vmem>>, vector<1x8x8xf32>,
      %c1_62 = arith.constant 1 : index
      %c0_63 = arith.constant 0 : index
      %c0_64 = arith.constant 0 : index
      %97 = vector.load %arg7[%c1_62, %c0_63, %c0_64] : memref<4x8x1xf32, #tpu.memory_space<vmem>>, vector<1x8x1xf32>
      %98 = vector.shape_cast %97 : vector<1x8x1xf32> to vector<8x1xf32>
      %99 = vector.shape_cast %70 : vector<8x1xf32> to vector<1x8x1xf32>
      tpu.vector_store %arg7[%c1_62, %c0_63, %c0_64], %99 {strides = array<i32>} : memref<4x8x1xf32, #tpu.memory_space<vmem>>, vector<1x8x1xf32>,
      %c0_65 = arith.constant 0 : index
      %c0_66 = arith.constant 0 : index
      %c16 = arith.constant 16 : index
      %100 = vector.load %arg3[%c0_65, %c0_66, %c16] : memref<1x8x32xbf16, #tpu.memory_space<vmem>>, vector<1x8x8xbf16>
      %101 = vector.shape_cast %100 : vector<1x8x8xbf16> to vector<8x8xbf16>
      %c0_67 = arith.constant 0 : index
      %c0_68 = arith.constant 0 : index
      %c16_69 = arith.constant 16 : index
      %102 = vector.load %arg4[%c0_67, %c0_68, %c16_69] : memref<1x8x32xbf16, #tpu.memory_space<vmem>>, vector<1x8x8xbf16>
      %103 = vector.shape_cast %102 : vector<1x8x8xbf16> to vector<8x8xbf16>
      %cst_70 = arith.constant dense<0.000000e+00> : vector<8x8xf32>
      %104 = tpu.matmul %101, %103, %cst_70 {dimension_numbers = #tpu.dot_dimension_numbers<[1], [1], [0], [0], [0, 0, 1, 0], [], []>} : vector<8x8xbf16>, vector<8x8xbf16>, vector<8x8xf32> -> vector<8x8xf32>
      %cst_71 = arith.constant -1.000000e+30 : f32
      %105 = vector.broadcast %cst_71 : f32 to vector<8x8xf32>
      %106 = arith.select %17, %104, %105 : vector<8x8xi1>, vector<8x8xf32>
      %c2 = arith.constant 2 : index
      %c0_72 = arith.constant 0 : index
      %c0_73 = arith.constant 0 : index
      %107 = vector.load %arg7[%c2, %c0_72, %c0_73] : memref<4x8x1xf32, #tpu.memory_space<vmem>>, vector<1x8x1xf32>
      %108 = vector.shape_cast %107 : vector<1x8x1xf32> to vector<8x1xf32>
      %cst_74 = arith.constant dense<0xFF800000> : vector<8xf32>
      %109 = vector.multi_reduction <maximumf>, %106, %cst_74 [1] : vector<8x8xf32> to vector<8xf32>
      %110 = vector.shape_cast %109 : vector<8xf32> to vector<8x1xf32>
      %111 = arith.maximumf %108, %110 : vector<8x1xf32>
      %112 = arith.subf %108, %111 : vector<8x1xf32>
      %113 = math.exp %112 : vector<8x1xf32>
      %114 = vector.broadcast %111 : vector<8x1xf32> to vector<8x8xf32>
      %115 = arith.subf %106, %114 : vector<8x8xf32>
      %116 = math.exp %115 : vector<8x8xf32>
      %c2_75 = arith.constant 2 : index
      %c0_76 = arith.constant 0 : index
      %c0_77 = arith.constant 0 : index
      %117 = vector.load %arg8[%c2_75, %c0_76, %c0_77] : memref<4x8x1xf32, #tpu.memory_space<vmem>>, vector<1x8x1xf32>
      %118 = vector.shape_cast %117 : vector<1x8x1xf32> to vector<8x1xf32>
      %119 = arith.mulf %113, %118 : vector<8x1xf32>
      %cst_78 = arith.constant dense<0.000000e+00> : vector<8xf32>
      %120 = vector.multi_reduction <add>, %116, %cst_78 [1] : vector<8x8xf32> to vector<8xf32>
      %121 = vector.shape_cast %120 : vector<8xf32> to vector<8x1xf32>
      %122 = arith.addf %119, %121 : vector<8x1xf32>
      %c2_79 = arith.constant 2 : index
      %c0_80 = arith.constant 0 : index
      %c0_81 = arith.constant 0 : index
      %123 = vector.load %arg8[%c2_79, %c0_80, %c0_81] : memref<4x8x1xf32, #tpu.memory_space<vmem>>, vector<1x8x1xf32>
      %124 = vector.shape_cast %123 : vector<1x8x1xf32> to vector<8x1xf32>
      %125 = vector.shape_cast %122 : vector<8x1xf32> to vector<1x8x1xf32>
      tpu.vector_store %arg8[%c2_79, %c0_80, %c0_81], %125 {strides = array<i32>} : memref<4x8x1xf32, #tpu.memory_space<vmem>>, vector<1x8x1xf32>,
      %c2_82 = arith.constant 2 : index
      %c0_83 = arith.constant 0 : index
      %c0_84 = arith.constant 0 : index
      %126 = vector.load %arg9[%c2_82, %c0_83, %c0_84] : memref<4x8x8xf32, #tpu.memory_space<vmem>>, vector<1x8x8xf32>
      %127 = vector.shape_cast %126 : vector<1x8x8xf32> to vector<8x8xf32>
      %128 = vector.broadcast %113 : vector<8x1xf32> to vector<8x8xf32>
      %129 = arith.mulf %128, %127 : vector<8x8xf32>
      %130 = arith.truncf %116 : vector<8x8xf32> to vector<8x8xbf16>
      %c0_85 = arith.constant 0 : index
      %c0_86 = arith.constant 0 : index
      %c16_87 = arith.constant 16 : index
      %131 = vector.load %arg5[%c0_85, %c0_86, %c16_87] : memref<1x8x32xbf16, #tpu.memory_space<vmem>>, vector<1x8x8xbf16>
      %132 = vector.shape_cast %131 : vector<1x8x8xbf16> to vector<8x8xbf16>
      %cst_88 = arith.constant dense<0.000000e+00> : vector<8x8xf32>
      %133 = tpu.matmul %130, %132, %cst_88 {dimension_numbers = #tpu.dot_dimension_numbers<[1], [0], [0], [1], [0, 0, 1, 1], [], []>} : vector<8x8xbf16>, vector<8x8xbf16>, vector<8x8xf32> -> vector<8x8xf32>
      %134 = arith.addf %129, %133 : vector<8x8xf32>
      %c2_89 = arith.constant 2 : index
      %c0_90 = arith.constant 0 : index
      %c0_91 = arith.constant 0 : index
      %135 = vector.load %arg9[%c2_89, %c0_90, %c0_91] : memref<4x8x8xf32, #tpu.memory_space<vmem>>, vector<1x8x8xf32>
      %136 = vector.shape_cast %135 : vector<1x8x8xf32> to vector<8x8xf32>
      %137 = vector.shape_cast %134 : vector<8x8xf32> to vector<1x8x8xf32>
      tpu.vector_store %arg9[%c2_89, %c0_90, %c0_91], %137 {strides = array<i32>} : memref<4x8x8xf32, #tpu.memory_space<vmem>>, vector<1x8x8xf32>,
      %c2_92 = arith.constant 2 : index
      %c0_93 = arith.constant 0 : index
      %c0_94 = arith.constant 0 : index
      %138 = vector.load %arg7[%c2_92, %c0_93, %c0_94] : memref<4x8x1xf32, #tpu.memory_space<vmem>>, vector<1x8x1xf32>
      %139 = vector.shape_cast %138 : vector<1x8x1xf32> to vector<8x1xf32>
      %140 = vector.shape_cast %111 : vector<8x1xf32> to vector<1x8x1xf32>
      tpu.vector_store %arg7[%c2_92, %c0_93, %c0_94], %140 {strides = array<i32>} : memref<4x8x1xf32, #tpu.memory_space<vmem>>, vector<1x8x1xf32>,
      %c0_95 = arith.constant 0 : index
      %c0_96 = arith.constant 0 : index
      %c24 = arith.constant 24 : index
      %141 = vector.load %arg3[%c0_95, %c0_96, %c24] : memref<1x8x32xbf16, #tpu.memory_space<vmem>>, vector<1x8x8xbf16>
      %142 = vector.shape_cast %141 : vector<1x8x8xbf16> to vector<8x8xbf16>
      %c0_97 = arith.constant 0 : index
      %c0_98 = arith.constant 0 : index
      %c24_99 = arith.constant 24 : index
      %143 = vector.load %arg4[%c0_97, %c0_98, %c24_99] : memref<1x8x32xbf16, #tpu.memory_space<vmem>>, vector<1x8x8xbf16>
      %144 = vector.shape_cast %143 : vector<1x8x8xbf16> to vector<8x8xbf16>
      %cst_100 = arith.constant dense<0.000000e+00> : vector<8x8xf32>
      %145 = tpu.matmul %142, %144, %cst_100 {dimension_numbers = #tpu.dot_dimension_numbers<[1], [1], [0], [0], [0, 0, 1, 0], [], []>} : vector<8x8xbf16>, vector<8x8xbf16>, vector<8x8xf32> -> vector<8x8xf32>
      %cst_101 = arith.constant -1.000000e+30 : f32
      %146 = vector.broadcast %cst_101 : f32 to vector<8x8xf32>
      %147 = arith.select %17, %145, %146 : vector<8x8xi1>, vector<8x8xf32>
      %c3 = arith.constant 3 : index
      %c0_102 = arith.constant 0 : index
      %c0_103 = arith.constant 0 : index
      %148 = vector.load %arg7[%c3, %c0_102, %c0_103] : memref<4x8x1xf32, #tpu.memory_space<vmem>>, vector<1x8x1xf32>
      %149 = vector.shape_cast %148 : vector<1x8x1xf32> to vector<8x1xf32>
      %cst_104 = arith.constant dense<0xFF800000> : vector<8xf32>
      %150 = vector.multi_reduction <maximumf>, %147, %cst_104 [1] : vector<8x8xf32> to vector<8xf32>
      %151 = vector.shape_cast %150 : vector<8xf32> to vector<8x1xf32>
      %152 = arith.maximumf %149, %151 : vector<8x1xf32>
      %153 = arith.subf %149, %152 : vector<8x1xf32>
      %154 = math.exp %153 : vector<8x1xf32>
      %155 = vector.broadcast %152 : vector<8x1xf32> to vector<8x8xf32>
      %156 = arith.subf %147, %155 : vector<8x8xf32>
      %157 = math.exp %156 : vector<8x8xf32>
      %c3_105 = arith.constant 3 : index
      %c0_106 = arith.constant 0 : index
      %c0_107 = arith.constant 0 : index
      %158 = vector.load %arg8[%c3_105, %c0_106, %c0_107] : memref<4x8x1xf32, #tpu.memory_space<vmem>>, vector<1x8x1xf32>
      %159 = vector.shape_cast %158 : vector<1x8x1xf32> to vector<8x1xf32>
      %160 = arith.mulf %154, %159 : vector<8x1xf32>
      %cst_108 = arith.constant dense<0.000000e+00> : vector<8xf32>
      %161 = vector.multi_reduction <add>, %157, %cst_108 [1] : vector<8x8xf32> to vector<8xf32>
      %162 = vector.shape_cast %161 : vector<8xf32> to vector<8x1xf32>
      %163 = arith.addf %160, %162 : vector<8x1xf32>
      %c3_109 = arith.constant 3 : index
      %c0_110 = arith.constant 0 : index
      %c0_111 = arith.constant 0 : index
      %164 = vector.load %arg8[%c3_109, %c0_110, %c0_111] : memref<4x8x1xf32, #tpu.memory_space<vmem>>, vector<1x8x1xf32>
      %165 = vector.shape_cast %164 : vector<1x8x1xf32> to vector<8x1xf32>
      %166 = vector.shape_cast %163 : vector<8x1xf32> to vector<1x8x1xf32>
      tpu.vector_store %arg8[%c3_109, %c0_110, %c0_111], %166 {strides = array<i32>} : memref<4x8x1xf32, #tpu.memory_space<vmem>>, vector<1x8x1xf32>,
      %c3_112 = arith.constant 3 : index
      %c0_113 = arith.constant 0 : index
      %c0_114 = arith.constant 0 : index
      %167 = vector.load %arg9[%c3_112, %c0_113, %c0_114] : memref<4x8x8xf32, #tpu.memory_space<vmem>>, vector<1x8x8xf32>
      %168 = vector.shape_cast %167 : vector<1x8x8xf32> to vector<8x8xf32>
      %169 = vector.broadcast %154 : vector<8x1xf32> to vector<8x8xf32>
      %170 = arith.mulf %169, %168 : vector<8x8xf32>
      %171 = arith.truncf %157 : vector<8x8xf32> to vector<8x8xbf16>
      %c0_115 = arith.constant 0 : index
      %c0_116 = arith.constant 0 : index
      %c24_117 = arith.constant 24 : index
      %172 = vector.load %arg5[%c0_115, %c0_116, %c24_117] : memref<1x8x32xbf16, #tpu.memory_space<vmem>>, vector<1x8x8xbf16>
      %173 = vector.shape_cast %172 : vector<1x8x8xbf16> to vector<8x8xbf16>
      %cst_118 = arith.constant dense<0.000000e+00> : vector<8x8xf32>
      %174 = tpu.matmul %171, %173, %cst_118 {dimension_numbers = #tpu.dot_dimension_numbers<[1], [0], [0], [1], [0, 0, 1, 1], [], []>} : vector<8x8xbf16>, vector<8x8xbf16>, vector<8x8xf32> -> vector<8x8xf32>
      %175 = arith.addf %170, %174 : vector<8x8xf32>
      %c3_119 = arith.constant 3 : index
      %c0_120 = arith.constant 0 : index
      %c0_121 = arith.constant 0 : index
      %176 = vector.load %arg9[%c3_119, %c0_120, %c0_121] : memref<4x8x8xf32, #tpu.memory_space<vmem>>, vector<1x8x8xf32>
      %177 = vector.shape_cast %176 : vector<1x8x8xf32> to vector<8x8xf32>
      %178 = vector.shape_cast %175 : vector<8x8xf32> to vector<1x8x8xf32>
      tpu.vector_store %arg9[%c3_119, %c0_120, %c0_121], %178 {strides = array<i32>} : memref<4x8x8xf32, #tpu.memory_space<vmem>>, vector<1x8x8xf32>,
      %c3_122 = arith.constant 3 : index
      %c0_123 = arith.constant 0 : index
      %c0_124 = arith.constant 0 : index
      %179 = vector.load %arg7[%c3_122, %c0_123, %c0_124] : memref<4x8x1xf32, #tpu.memory_space<vmem>>, vector<1x8x1xf32>
      %180 = vector.shape_cast %179 : vector<1x8x1xf32> to vector<8x1xf32>
      %181 = vector.shape_cast %152 : vector<8x1xf32> to vector<1x8x1xf32>
      tpu.vector_store %arg7[%c3_122, %c0_123, %c0_124], %181 {strides = array<i32>} : memref<4x8x1xf32, #tpu.memory_space<vmem>>, vector<1x8x1xf32>,
    } else {
    }
    %c0_i32_2 = arith.constant 0 : i32
    %6 = arith.cmpi eq, %arg2, %c0_i32_2 : i32
    %7 = arith.extui %6 : i1 to i32
    %c0_i32_3 = arith.constant 0 : i32
    %8 = arith.cmpi ne, %7, %c0_i32_3 : i32
    scf.if %8 {
      %c0 = arith.constant 0 : index
      %c0_4 = arith.constant 0 : index
      %c0_5 = arith.constant 0 : index
      %9 = vector.load %arg9[%c0, %c0_4, %c0_5] : memref<4x8x8xf32, #tpu.memory_space<vmem>>, vector<1x8x8xf32>
      %10 = vector.shape_cast %9 : vector<1x8x8xf32> to vector<8x8xf32>
      %c0_6 = arith.constant 0 : index
      %c0_7 = arith.constant 0 : index
      %c0_8 = arith.constant 0 : index
      %11 = vector.load %arg8[%c0_6, %c0_7, %c0_8] : memref<4x8x1xf32, #tpu.memory_space<vmem>>, vector<1x8x1xf32>
      %12 = vector.shape_cast %11 : vector<1x8x1xf32> to vector<8x1xf32>
      %13 = vector.broadcast %12 : vector<8x1xf32> to vector<8x8xf32>
      %14 = arith.divf %10, %13 : vector<8x8xf32>
      %c1 = arith.constant 1 : index
      %c0_9 = arith.constant 0 : index
      %c0_10 = arith.constant 0 : index
      %15 = vector.load %arg9[%c1, %c0_9, %c0_10] : memref<4x8x8xf32, #tpu.memory_space<vmem>>, vector<1x8x8xf32>
      %16 = vector.shape_cast %15 : vector<1x8x8xf32> to vector<8x8xf32>
      %c1_11 = arith.constant 1 : index
      %c0_12 = arith.constant 0 : index
      %c0_13 = arith.constant 0 : index
      %17 = vector.load %arg8[%c1_11, %c0_12, %c0_13] : memref<4x8x1xf32, #tpu.memory_space<vmem>>, vector<1x8x1xf32>
      %18 = vector.shape_cast %17 : vector<1x8x1xf32> to vector<8x1xf32>
      %19 = vector.broadcast %18 : vector<8x1xf32> to vector<8x8xf32>
      %20 = arith.divf %16, %19 : vector<8x8xf32>
      %c2 = arith.constant 2 : index
      %c0_14 = arith.constant 0 : index
      %c0_15 = arith.constant 0 : index
      %21 = vector.load %arg9[%c2, %c0_14, %c0_15] : memref<4x8x8xf32, #tpu.memory_space<vmem>>, vector<1x8x8xf32>
      %22 = vector.shape_cast %21 : vector<1x8x8xf32> to vector<8x8xf32>
      %c2_16 = arith.constant 2 : index
      %c0_17 = arith.constant 0 : index
      %c0_18 = arith.constant 0 : index
      %23 = vector.load %arg8[%c2_16, %c0_17, %c0_18] : memref<4x8x1xf32, #tpu.memory_space<vmem>>, vector<1x8x1xf32>
      %24 = vector.shape_cast %23 : vector<1x8x1xf32> to vector<8x1xf32>
      %25 = vector.broadcast %24 : vector<8x1xf32> to vector<8x8xf32>
      %26 = arith.divf %22, %25 : vector<8x8xf32>
      %c3 = arith.constant 3 : index
      %c0_19 = arith.constant 0 : index
      %c0_20 = arith.constant 0 : index
      %27 = vector.load %arg9[%c3, %c0_19, %c0_20] : memref<4x8x8xf32, #tpu.memory_space<vmem>>, vector<1x8x8xf32>
      %28 = vector.shape_cast %27 : vector<1x8x8xf32> to vector<8x8xf32>
      %c3_21 = arith.constant 3 : index
      %c0_22 = arith.constant 0 : index
      %c0_23 = arith.constant 0 : index
      %29 = vector.load %arg8[%c3_21, %c0_22, %c0_23] : memref<4x8x1xf32, #tpu.memory_space<vmem>>, vector<1x8x1xf32>
      %30 = vector.shape_cast %29 : vector<1x8x1xf32> to vector<8x1xf32>
      %31 = vector.broadcast %30 : vector<8x1xf32> to vector<8x8xf32>
      %32 = arith.divf %28, %31 : vector<8x8xf32>
      %33 = tpu.concatenate %14, %20, %26, %32 in 1 : vector<8x8xf32>, vector<8x8xf32>, vector<8x8xf32>, vector<8x8xf32> -> vector<8x32xf32>
      %34 = arith.truncf %33 : vector<8x32xf32> to vector<8x32xbf16>
      %c0_24 = arith.constant 0 : index
      %c0_25 = arith.constant 0 : index
      %c0_26 = arith.constant 0 : index
      %35 = vector.load %arg6[%c0_24, %c0_25, %c0_26] : memref<1x8x32xbf16, #tpu.memory_space<vmem>>, vector<1x8x32xbf16>
      %36 = vector.shape_cast %35 : vector<1x8x32xbf16> to vector<8x32xbf16>
      %37 = vector.shape_cast %34 : vector<8x32xbf16> to vector<1x8x32xbf16>
      tpu.vector_store %arg6[%c0_24, %c0_25, %c0_26], %37 {strides = array<i32>} : memref<1x8x32xbf16, #tpu.memory_space<vmem>>, vector<1x8x32xbf16>,
    } else {
    }
    return
  }
  func.func @transform_0(%arg0: i32, %arg1: i32, %arg2: i32) -> (i32, i32, i32) {
    %c0_i32 = arith.constant 0 : i32
    %c0_i32_0 = arith.constant 0 : i32
    return %arg0, %arg1, %c0_i32 : i32, i32, i32
  }
  func.func @transform_1(%arg0: i32, %arg1: i32, %arg2: i32) -> (i32, i32, i32) {
    %0 = arith.minsi %arg2, %arg1 : i32
    %c0_i32 = arith.constant 0 : i32
    %c0_i32_0 = arith.constant 0 : i32
    return %arg0, %0, %c0_i32 : i32, i32, i32
  }
  func.func @transform_2(%arg0: i32, %arg1: i32, %arg2: i32) -> (i32, i32, i32) {
    %0 = arith.minsi %arg2, %arg1 : i32
    %c0_i32 = arith.constant 0 : i32
    %c0_i32_0 = arith.constant 0 : i32
    return %arg0, %0, %c0_i32 : i32, i32, i32
  }
  func.func @transform_3(%arg0: i32, %arg1: i32, %arg2: i32) -> (i32, i32, i32) {
    %c0_i32 = arith.constant 0 : i32
    %c0_i32_0 = arith.constant 0 : i32
    return %arg0, %arg1, %c0_i32 : i32, i32, i32
  }
}

module attributes {stable_mosaic.version = 11 : i64} {
  func.func @_linear_resid_bn_kernel(%arg0: i32, %arg1: i32, %arg2: i32, %arg3: memref<16x32xbf16, #tpu.memory_space<vmem>>, %arg4: memref<32x32xbf16, #tpu.memory_space<vmem>>, %arg5: memref<1x32xf32, #tpu.memory_space<vmem>>, %arg6: memref<16x32xbf16, #tpu.memory_space<vmem>>, %arg7: memref<1x32xf32, #tpu.memory_space<vmem>>, %arg8: memref<1x32xf32, #tpu.memory_space<vmem>>, %arg9: memref<16x32xbf16, #tpu.memory_space<vmem>>, %arg10: memref<16x32xbf16, #tpu.memory_space<vmem>>, %arg11: memref<16x32xf32, #tpu.memory_space<vmem>>) attributes {dimension_semantics = [#tpu.dimension_semantics<parallel>, #tpu.dimension_semantics<parallel>, #tpu.dimension_semantics<arbitrary>], iteration_bounds = array<i64: 1, 1, 1>, scalar_prefetch = 0 : i64, scratch_operands = 1 : i64, tpu.core_type = #tpu.core_type<tc>, window_params = [{transform_indices = @transform_0, window_bounds = array<i64: 16, 32>}, {transform_indices = @transform_1, window_bounds = array<i64: 32, 32>}, {transform_indices = @transform_2, window_bounds = array<i64: 1, 32>}, {transform_indices = @transform_3, window_bounds = array<i64: 16, 32>}, {transform_indices = @transform_4, window_bounds = array<i64: 1, 32>}, {transform_indices = @transform_5, window_bounds = array<i64: 1, 32>}, {transform_indices = @transform_6, window_bounds = array<i64: 16, 32>}, {transform_indices = @transform_7, window_bounds = array<i64: 16, 32>}]} {
    %c0_i32 = arith.constant 0 : i32
    %0 = arith.cmpi eq, %arg2, %c0_i32 : i32
    %1 = arith.extui %0 : i1 to i32
    %c0_i32_0 = arith.constant 0 : i32
    %2 = arith.cmpi ne, %1, %c0_i32_0 : i32
    scf.if %2 {
      %cst_10 = arith.constant 0.000000e+00 : f32
      %12 = vector.broadcast %cst_10 : f32 to vector<16x32xf32>
      %c0_11 = arith.constant 0 : index
      %c0_12 = arith.constant 0 : index
      %13 = vector.load %arg11[%c0_11, %c0_12] : memref<16x32xf32, #tpu.memory_space<vmem>>, vector<16x32xf32>
      tpu.vector_store %arg11[%c0_11, %c0_12], %12 {strides = array<i32>} : memref<16x32xf32, #tpu.memory_space<vmem>>, vector<16x32xf32>,
    } else {
    }
    %c0 = arith.constant 0 : index
    %c0_1 = arith.constant 0 : index
    %3 = vector.load %arg11[%c0, %c0_1] : memref<16x32xf32, #tpu.memory_space<vmem>>, vector<16x32xf32>
    %c0_2 = arith.constant 0 : index
    %c0_3 = arith.constant 0 : index
    %4 = vector.load %arg3[%c0_2, %c0_3] : memref<16x32xbf16, #tpu.memory_space<vmem>>, vector<16x32xbf16>
    %c0_4 = arith.constant 0 : index
    %c0_5 = arith.constant 0 : index
    %5 = vector.load %arg4[%c0_4, %c0_5] : memref<32x32xbf16, #tpu.memory_space<vmem>>, vector<32x32xbf16>
    %cst = arith.constant dense<0.000000e+00> : vector<16x32xf32>
    %6 = tpu.matmul %4, %5, %cst {dimension_numbers = #tpu.dot_dimension_numbers<[1], [0], [0], [1], [0, 0, 1, 1], [], []>} : vector<16x32xbf16>, vector<32x32xbf16>, vector<16x32xf32> -> vector<16x32xf32>
    %7 = arith.addf %3, %6 : vector<16x32xf32>
    %c0_6 = arith.constant 0 : index
    %c0_7 = arith.constant 0 : index
    %8 = vector.load %arg11[%c0_6, %c0_7] : memref<16x32xf32, #tpu.memory_space<vmem>>, vector<16x32xf32>
    tpu.vector_store %arg11[%c0_6, %c0_7], %7 {strides = array<i32>} : memref<16x32xf32, #tpu.memory_space<vmem>>, vector<16x32xf32>,
    %c0_i32_8 = arith.constant 0 : i32
    %9 = arith.cmpi eq, %arg2, %c0_i32_8 : i32
    %10 = arith.extui %9 : i1 to i32
    %c0_i32_9 = arith.constant 0 : i32
    %11 = arith.cmpi ne, %10, %c0_i32_9 : i32
    scf.if %11 {
      %c0_10 = arith.constant 0 : index
      %c0_11 = arith.constant 0 : index
      %12 = vector.load %arg11[%c0_10, %c0_11] : memref<16x32xf32, #tpu.memory_space<vmem>>, vector<16x32xf32>
      %c0_12 = arith.constant 0 : index
      %c0_13 = arith.constant 0 : index
      %13 = vector.load %arg5[%c0_12, %c0_13] : memref<1x32xf32, #tpu.memory_space<vmem>>, vector<1x32xf32>
      %14 = vector.broadcast %13 : vector<1x32xf32> to vector<16x32xf32>
      %15 = arith.addf %12, %14 : vector<16x32xf32>
      %c0_14 = arith.constant 0 : index
      %c0_15 = arith.constant 0 : index
      %16 = vector.load %arg6[%c0_14, %c0_15] : memref<16x32xbf16, #tpu.memory_space<vmem>>, vector<16x32xbf16>
      %17 = arith.extf %16 : vector<16x32xbf16> to vector<16x32xf32>
      %18 = arith.addf %15, %17 : vector<16x32xf32>
      %19 = arith.truncf %18 : vector<16x32xf32> to vector<16x32xbf16>
      %c0_16 = arith.constant 0 : index
      %c0_17 = arith.constant 0 : index
      %20 = vector.load %arg9[%c0_16, %c0_17] : memref<16x32xbf16, #tpu.memory_space<vmem>>, vector<16x32xbf16>
      tpu.vector_store %arg9[%c0_16, %c0_17], %19 {strides = array<i32>} : memref<16x32xbf16, #tpu.memory_space<vmem>>, vector<16x32xbf16>,
      %c0_18 = arith.constant 0 : index
      %c0_19 = arith.constant 0 : index
      %21 = vector.load %arg7[%c0_18, %c0_19] : memref<1x32xf32, #tpu.memory_space<vmem>>, vector<1x32xf32>
      %22 = vector.broadcast %21 : vector<1x32xf32> to vector<16x32xf32>
      %23 = arith.mulf %22, %18 : vector<16x32xf32>
      %c0_20 = arith.constant 0 : index
      %c0_21 = arith.constant 0 : index
      %24 = vector.load %arg8[%c0_20, %c0_21] : memref<1x32xf32, #tpu.memory_space<vmem>>, vector<1x32xf32>
      %25 = vector.broadcast %24 : vector<1x32xf32> to vector<16x32xf32>
      %26 = arith.addf %23, %25 : vector<16x32xf32>
      %27 = arith.truncf %26 : vector<16x32xf32> to vector<16x32xbf16>
      %c0_22 = arith.constant 0 : index
      %c0_23 = arith.constant 0 : index
      %28 = vector.load %arg10[%c0_22, %c0_23] : memref<16x32xbf16, #tpu.memory_space<vmem>>, vector<16x32xbf16>
      tpu.vector_store %arg10[%c0_22, %c0_23], %27 {strides = array<i32>} : memref<16x32xbf16, #tpu.memory_space<vmem>>, vector<16x32xbf16>,
    } else {
    }
    return
  }
  func.func @transform_0(%arg0: i32, %arg1: i32, %arg2: i32) -> (i32, i32) {
    %c0_i32 = arith.constant 0 : i32
    return %arg0, %arg2 : i32, i32
  }
  func.func @transform_1(%arg0: i32, %arg1: i32, %arg2: i32) -> (i32, i32) {
    %c0_i32 = arith.constant 0 : i32
    return %arg2, %arg1 : i32, i32
  }
  func.func @transform_2(%arg0: i32, %arg1: i32, %arg2: i32) -> (i32, i32) {
    %c0_i32 = arith.constant 0 : i32
    %c0_i32_0 = arith.constant 0 : i32
    return %c0_i32, %arg1 : i32, i32
  }
  func.func @transform_3(%arg0: i32, %arg1: i32, %arg2: i32) -> (i32, i32) {
    %c0_i32 = arith.constant 0 : i32
    return %arg0, %arg1 : i32, i32
  }
  func.func @transform_4(%arg0: i32, %arg1: i32, %arg2: i32) -> (i32, i32) {
    %c0_i32 = arith.constant 0 : i32
    %c0_i32_0 = arith.constant 0 : i32
    return %c0_i32, %arg1 : i32, i32
  }
  func.func @transform_5(%arg0: i32, %arg1: i32, %arg2: i32) -> (i32, i32) {
    %c0_i32 = arith.constant 0 : i32
    %c0_i32_0 = arith.constant 0 : i32
    return %c0_i32, %arg1 : i32, i32
  }
  func.func @transform_6(%arg0: i32, %arg1: i32, %arg2: i32) -> (i32, i32) {
    %c0_i32 = arith.constant 0 : i32
    return %arg0, %arg1 : i32, i32
  }
  func.func @transform_7(%arg0: i32, %arg1: i32, %arg2: i32) -> (i32, i32) {
    %c0_i32 = arith.constant 0 : i32
    return %arg0, %arg1 : i32, i32
  }
}

module attributes {stable_mosaic.version = 11 : i64} {
  func.func @_linear_gelu_kernel(%arg0: i32, %arg1: i32, %arg2: i32, %arg3: memref<16x32xbf16, #tpu.memory_space<vmem>>, %arg4: memref<32x128xbf16, #tpu.memory_space<vmem>>, %arg5: memref<1x128xf32, #tpu.memory_space<vmem>>, %arg6: memref<16x128xbf16, #tpu.memory_space<vmem>>, %arg7: memref<16x128xf32, #tpu.memory_space<vmem>>) attributes {dimension_semantics = [#tpu.dimension_semantics<parallel>, #tpu.dimension_semantics<parallel>, #tpu.dimension_semantics<arbitrary>], iteration_bounds = array<i64: 1, 1, 1>, scalar_prefetch = 0 : i64, scratch_operands = 1 : i64, tpu.core_type = #tpu.core_type<tc>, window_params = [{transform_indices = @transform_0, window_bounds = array<i64: 16, 32>}, {transform_indices = @transform_1, window_bounds = array<i64: 32, 128>}, {transform_indices = @transform_2, window_bounds = array<i64: 1, 128>}, {transform_indices = @transform_3, window_bounds = array<i64: 16, 128>}]} {
    %c0_i32 = arith.constant 0 : i32
    %0 = arith.cmpi eq, %arg2, %c0_i32 : i32
    %1 = arith.extui %0 : i1 to i32
    %c0_i32_0 = arith.constant 0 : i32
    %2 = arith.cmpi ne, %1, %c0_i32_0 : i32
    scf.if %2 {
      %cst_10 = arith.constant 0.000000e+00 : f32
      %12 = vector.broadcast %cst_10 : f32 to vector<16x128xf32>
      %c0_11 = arith.constant 0 : index
      %c0_12 = arith.constant 0 : index
      %13 = vector.load %arg7[%c0_11, %c0_12] : memref<16x128xf32, #tpu.memory_space<vmem>>, vector<16x128xf32>
      tpu.vector_store %arg7[%c0_11, %c0_12], %12 {strides = array<i32>} : memref<16x128xf32, #tpu.memory_space<vmem>>, vector<16x128xf32>,
    } else {
    }
    %c0 = arith.constant 0 : index
    %c0_1 = arith.constant 0 : index
    %3 = vector.load %arg7[%c0, %c0_1] : memref<16x128xf32, #tpu.memory_space<vmem>>, vector<16x128xf32>
    %c0_2 = arith.constant 0 : index
    %c0_3 = arith.constant 0 : index
    %4 = vector.load %arg3[%c0_2, %c0_3] : memref<16x32xbf16, #tpu.memory_space<vmem>>, vector<16x32xbf16>
    %c0_4 = arith.constant 0 : index
    %c0_5 = arith.constant 0 : index
    %5 = vector.load %arg4[%c0_4, %c0_5] : memref<32x128xbf16, #tpu.memory_space<vmem>>, vector<32x128xbf16>
    %cst = arith.constant dense<0.000000e+00> : vector<16x128xf32>
    %6 = tpu.matmul %4, %5, %cst {dimension_numbers = #tpu.dot_dimension_numbers<[1], [0], [0], [1], [0, 0, 1, 1], [], []>} : vector<16x32xbf16>, vector<32x128xbf16>, vector<16x128xf32> -> vector<16x128xf32>
    %7 = arith.addf %3, %6 : vector<16x128xf32>
    %c0_6 = arith.constant 0 : index
    %c0_7 = arith.constant 0 : index
    %8 = vector.load %arg7[%c0_6, %c0_7] : memref<16x128xf32, #tpu.memory_space<vmem>>, vector<16x128xf32>
    tpu.vector_store %arg7[%c0_6, %c0_7], %7 {strides = array<i32>} : memref<16x128xf32, #tpu.memory_space<vmem>>, vector<16x128xf32>,
    %c0_i32_8 = arith.constant 0 : i32
    %9 = arith.cmpi eq, %arg2, %c0_i32_8 : i32
    %10 = arith.extui %9 : i1 to i32
    %c0_i32_9 = arith.constant 0 : i32
    %11 = arith.cmpi ne, %10, %c0_i32_9 : i32
    scf.if %11 {
      %c0_10 = arith.constant 0 : index
      %c0_11 = arith.constant 0 : index
      %12 = vector.load %arg7[%c0_10, %c0_11] : memref<16x128xf32, #tpu.memory_space<vmem>>, vector<16x128xf32>
      %c0_12 = arith.constant 0 : index
      %c0_13 = arith.constant 0 : index
      %13 = vector.load %arg5[%c0_12, %c0_13] : memref<1x128xf32, #tpu.memory_space<vmem>>, vector<1x128xf32>
      %14 = vector.broadcast %13 : vector<1x128xf32> to vector<16x128xf32>
      %15 = arith.addf %12, %14 : vector<16x128xf32>
      %cst_14 = arith.constant 5.000000e-01 : f32
      %16 = vector.broadcast %cst_14 : f32 to vector<16x128xf32>
      %17 = arith.mulf %16, %15 : vector<16x128xf32>
      %cst_15 = arith.constant 0.707106769 : f32
      %18 = vector.broadcast %cst_15 : f32 to vector<16x128xf32>
      %19 = arith.mulf %15, %18 : vector<16x128xf32>
      %20 = math.erf %19 : vector<16x128xf32>
      %cst_16 = arith.constant 1.000000e+00 : f32
      %21 = vector.broadcast %cst_16 : f32 to vector<16x128xf32>
      %22 = arith.addf %21, %20 : vector<16x128xf32>
      %23 = arith.mulf %17, %22 : vector<16x128xf32>
      %24 = arith.truncf %23 : vector<16x128xf32> to vector<16x128xbf16>
      %c0_17 = arith.constant 0 : index
      %c0_18 = arith.constant 0 : index
      %25 = vector.load %arg6[%c0_17, %c0_18] : memref<16x128xbf16, #tpu.memory_space<vmem>>, vector<16x128xbf16>
      tpu.vector_store %arg6[%c0_17, %c0_18], %24 {strides = array<i32>} : memref<16x128xbf16, #tpu.memory_space<vmem>>, vector<16x128xbf16>,
    } else {
    }
    return
  }
  func.func @transform_0(%arg0: i32, %arg1: i32, %arg2: i32) -> (i32, i32) {
    %c0_i32 = arith.constant 0 : i32
    return %arg0, %arg2 : i32, i32
  }
  func.func @transform_1(%arg0: i32, %arg1: i32, %arg2: i32) -> (i32, i32) {
    %c0_i32 = arith.constant 0 : i32
    return %arg2, %arg1 : i32, i32
  }
  func.func @transform_2(%arg0: i32, %arg1: i32, %arg2: i32) -> (i32, i32) {
    %c0_i32 = arith.constant 0 : i32
    %c0_i32_0 = arith.constant 0 : i32
    return %c0_i32, %arg1 : i32, i32
  }
  func.func @transform_3(%arg0: i32, %arg1: i32, %arg2: i32) -> (i32, i32) {
    %c0_i32 = arith.constant 0 : i32
    return %arg0, %arg1 : i32, i32
  }
}

module attributes {stable_mosaic.version = 11 : i64} {
  func.func @_linear_add_bn_kernel(%arg0: i32, %arg1: i32, %arg2: i32, %arg3: memref<16x128xbf16, #tpu.memory_space<vmem>>, %arg4: memref<128x32xbf16, #tpu.memory_space<vmem>>, %arg5: memref<1x32xf32, #tpu.memory_space<vmem>>, %arg6: memref<16x32xbf16, #tpu.memory_space<vmem>>, %arg7: memref<1x32xf32, #tpu.memory_space<vmem>>, %arg8: memref<1x32xf32, #tpu.memory_space<vmem>>, %arg9: memref<16x32xbf16, #tpu.memory_space<vmem>>, %arg10: memref<16x32xf32, #tpu.memory_space<vmem>>) attributes {dimension_semantics = [#tpu.dimension_semantics<parallel>, #tpu.dimension_semantics<parallel>, #tpu.dimension_semantics<arbitrary>], iteration_bounds = array<i64: 1, 1, 1>, scalar_prefetch = 0 : i64, scratch_operands = 1 : i64, tpu.core_type = #tpu.core_type<tc>, window_params = [{transform_indices = @transform_0, window_bounds = array<i64: 16, 128>}, {transform_indices = @transform_1, window_bounds = array<i64: 128, 32>}, {transform_indices = @transform_2, window_bounds = array<i64: 1, 32>}, {transform_indices = @transform_3, window_bounds = array<i64: 16, 32>}, {transform_indices = @transform_4, window_bounds = array<i64: 1, 32>}, {transform_indices = @transform_5, window_bounds = array<i64: 1, 32>}, {transform_indices = @transform_6, window_bounds = array<i64: 16, 32>}]} {
    %c0_i32 = arith.constant 0 : i32
    %0 = arith.cmpi eq, %arg2, %c0_i32 : i32
    %1 = arith.extui %0 : i1 to i32
    %c0_i32_0 = arith.constant 0 : i32
    %2 = arith.cmpi ne, %1, %c0_i32_0 : i32
    scf.if %2 {
      %cst_10 = arith.constant 0.000000e+00 : f32
      %12 = vector.broadcast %cst_10 : f32 to vector<16x32xf32>
      %c0_11 = arith.constant 0 : index
      %c0_12 = arith.constant 0 : index
      %13 = vector.load %arg10[%c0_11, %c0_12] : memref<16x32xf32, #tpu.memory_space<vmem>>, vector<16x32xf32>
      tpu.vector_store %arg10[%c0_11, %c0_12], %12 {strides = array<i32>} : memref<16x32xf32, #tpu.memory_space<vmem>>, vector<16x32xf32>,
    } else {
    }
    %c0 = arith.constant 0 : index
    %c0_1 = arith.constant 0 : index
    %3 = vector.load %arg10[%c0, %c0_1] : memref<16x32xf32, #tpu.memory_space<vmem>>, vector<16x32xf32>
    %c0_2 = arith.constant 0 : index
    %c0_3 = arith.constant 0 : index
    %4 = vector.load %arg3[%c0_2, %c0_3] : memref<16x128xbf16, #tpu.memory_space<vmem>>, vector<16x128xbf16>
    %c0_4 = arith.constant 0 : index
    %c0_5 = arith.constant 0 : index
    %5 = vector.load %arg4[%c0_4, %c0_5] : memref<128x32xbf16, #tpu.memory_space<vmem>>, vector<128x32xbf16>
    %cst = arith.constant dense<0.000000e+00> : vector<16x32xf32>
    %6 = tpu.matmul %4, %5, %cst {dimension_numbers = #tpu.dot_dimension_numbers<[1], [0], [0], [1], [0, 0, 1, 1], [], []>} : vector<16x128xbf16>, vector<128x32xbf16>, vector<16x32xf32> -> vector<16x32xf32>
    %7 = arith.addf %3, %6 : vector<16x32xf32>
    %c0_6 = arith.constant 0 : index
    %c0_7 = arith.constant 0 : index
    %8 = vector.load %arg10[%c0_6, %c0_7] : memref<16x32xf32, #tpu.memory_space<vmem>>, vector<16x32xf32>
    tpu.vector_store %arg10[%c0_6, %c0_7], %7 {strides = array<i32>} : memref<16x32xf32, #tpu.memory_space<vmem>>, vector<16x32xf32>,
    %c0_i32_8 = arith.constant 0 : i32
    %9 = arith.cmpi eq, %arg2, %c0_i32_8 : i32
    %10 = arith.extui %9 : i1 to i32
    %c0_i32_9 = arith.constant 0 : i32
    %11 = arith.cmpi ne, %10, %c0_i32_9 : i32
    scf.if %11 {
      %c0_10 = arith.constant 0 : index
      %c0_11 = arith.constant 0 : index
      %12 = vector.load %arg10[%c0_10, %c0_11] : memref<16x32xf32, #tpu.memory_space<vmem>>, vector<16x32xf32>
      %c0_12 = arith.constant 0 : index
      %c0_13 = arith.constant 0 : index
      %13 = vector.load %arg5[%c0_12, %c0_13] : memref<1x32xf32, #tpu.memory_space<vmem>>, vector<1x32xf32>
      %14 = vector.broadcast %13 : vector<1x32xf32> to vector<16x32xf32>
      %15 = arith.addf %12, %14 : vector<16x32xf32>
      %c0_14 = arith.constant 0 : index
      %c0_15 = arith.constant 0 : index
      %16 = vector.load %arg6[%c0_14, %c0_15] : memref<16x32xbf16, #tpu.memory_space<vmem>>, vector<16x32xbf16>
      %17 = arith.extf %16 : vector<16x32xbf16> to vector<16x32xf32>
      %18 = arith.addf %15, %17 : vector<16x32xf32>
      %c0_16 = arith.constant 0 : index
      %c0_17 = arith.constant 0 : index
      %19 = vector.load %arg7[%c0_16, %c0_17] : memref<1x32xf32, #tpu.memory_space<vmem>>, vector<1x32xf32>
      %20 = vector.broadcast %19 : vector<1x32xf32> to vector<16x32xf32>
      %21 = arith.mulf %20, %18 : vector<16x32xf32>
      %c0_18 = arith.constant 0 : index
      %c0_19 = arith.constant 0 : index
      %22 = vector.load %arg8[%c0_18, %c0_19] : memref<1x32xf32, #tpu.memory_space<vmem>>, vector<1x32xf32>
      %23 = vector.broadcast %22 : vector<1x32xf32> to vector<16x32xf32>
      %24 = arith.addf %21, %23 : vector<16x32xf32>
      %25 = arith.truncf %24 : vector<16x32xf32> to vector<16x32xbf16>
      %c0_20 = arith.constant 0 : index
      %c0_21 = arith.constant 0 : index
      %26 = vector.load %arg9[%c0_20, %c0_21] : memref<16x32xbf16, #tpu.memory_space<vmem>>, vector<16x32xbf16>
      tpu.vector_store %arg9[%c0_20, %c0_21], %25 {strides = array<i32>} : memref<16x32xbf16, #tpu.memory_space<vmem>>, vector<16x32xbf16>,
    } else {
    }
    return
  }
  func.func @transform_0(%arg0: i32, %arg1: i32, %arg2: i32) -> (i32, i32) {
    %c0_i32 = arith.constant 0 : i32
    return %arg0, %arg2 : i32, i32
  }
  func.func @transform_1(%arg0: i32, %arg1: i32, %arg2: i32) -> (i32, i32) {
    %c0_i32 = arith.constant 0 : i32
    return %arg2, %arg1 : i32, i32
  }
  func.func @transform_2(%arg0: i32, %arg1: i32, %arg2: i32) -> (i32, i32) {
    %c0_i32 = arith.constant 0 : i32
    %c0_i32_0 = arith.constant 0 : i32
    return %c0_i32, %arg1 : i32, i32
  }
  func.func @transform_3(%arg0: i32, %arg1: i32, %arg2: i32) -> (i32, i32) {
    %c0_i32 = arith.constant 0 : i32
    return %arg0, %arg1 : i32, i32
  }
  func.func @transform_4(%arg0: i32, %arg1: i32, %arg2: i32) -> (i32, i32) {
    %c0_i32 = arith.constant 0 : i32
    %c0_i32_0 = arith.constant 0 : i32
    return %c0_i32, %arg1 : i32, i32
  }
  func.func @transform_5(%arg0: i32, %arg1: i32, %arg2: i32) -> (i32, i32) {
    %c0_i32 = arith.constant 0 : i32
    %c0_i32_0 = arith.constant 0 : i32
    return %c0_i32, %arg1 : i32, i32
  }
  func.func @transform_6(%arg0: i32, %arg1: i32, %arg2: i32) -> (i32, i32) {
    %c0_i32 = arith.constant 0 : i32
    return %arg0, %arg1 : i32, i32
  }
}

module attributes {stable_mosaic.version = 11 : i64} {
  func.func @_linear_kernel(%arg0: i32, %arg1: i32, %arg2: i32, %arg3: memref<16x32xbf16, #tpu.memory_space<vmem>>, %arg4: memref<32x32xbf16, #tpu.memory_space<vmem>>, %arg5: memref<1x32xf32, #tpu.memory_space<vmem>>, %arg6: memref<16x32xf32, #tpu.memory_space<vmem>>, %arg7: memref<16x32xf32, #tpu.memory_space<vmem>>) attributes {dimension_semantics = [#tpu.dimension_semantics<parallel>, #tpu.dimension_semantics<parallel>, #tpu.dimension_semantics<arbitrary>], iteration_bounds = array<i64: 1, 1, 1>, scalar_prefetch = 0 : i64, scratch_operands = 1 : i64, tpu.core_type = #tpu.core_type<tc>, window_params = [{transform_indices = @transform_0, window_bounds = array<i64: 16, 32>}, {transform_indices = @transform_1, window_bounds = array<i64: 32, 32>}, {transform_indices = @transform_2, window_bounds = array<i64: 1, 32>}, {transform_indices = @transform_3, window_bounds = array<i64: 16, 32>}]} {
    %c0_i32 = arith.constant 0 : i32
    %0 = arith.cmpi eq, %arg2, %c0_i32 : i32
    %1 = arith.extui %0 : i1 to i32
    %c0_i32_0 = arith.constant 0 : i32
    %2 = arith.cmpi ne, %1, %c0_i32_0 : i32
    scf.if %2 {
      %cst_10 = arith.constant 0.000000e+00 : f32
      %12 = vector.broadcast %cst_10 : f32 to vector<16x32xf32>
      %c0_11 = arith.constant 0 : index
      %c0_12 = arith.constant 0 : index
      %13 = vector.load %arg7[%c0_11, %c0_12] : memref<16x32xf32, #tpu.memory_space<vmem>>, vector<16x32xf32>
      tpu.vector_store %arg7[%c0_11, %c0_12], %12 {strides = array<i32>} : memref<16x32xf32, #tpu.memory_space<vmem>>, vector<16x32xf32>,
    } else {
    }
    %c0 = arith.constant 0 : index
    %c0_1 = arith.constant 0 : index
    %3 = vector.load %arg7[%c0, %c0_1] : memref<16x32xf32, #tpu.memory_space<vmem>>, vector<16x32xf32>
    %c0_2 = arith.constant 0 : index
    %c0_3 = arith.constant 0 : index
    %4 = vector.load %arg3[%c0_2, %c0_3] : memref<16x32xbf16, #tpu.memory_space<vmem>>, vector<16x32xbf16>
    %c0_4 = arith.constant 0 : index
    %c0_5 = arith.constant 0 : index
    %5 = vector.load %arg4[%c0_4, %c0_5] : memref<32x32xbf16, #tpu.memory_space<vmem>>, vector<32x32xbf16>
    %cst = arith.constant dense<0.000000e+00> : vector<16x32xf32>
    %6 = tpu.matmul %4, %5, %cst {dimension_numbers = #tpu.dot_dimension_numbers<[1], [0], [0], [1], [0, 0, 1, 1], [], []>} : vector<16x32xbf16>, vector<32x32xbf16>, vector<16x32xf32> -> vector<16x32xf32>
    %7 = arith.addf %3, %6 : vector<16x32xf32>
    %c0_6 = arith.constant 0 : index
    %c0_7 = arith.constant 0 : index
    %8 = vector.load %arg7[%c0_6, %c0_7] : memref<16x32xf32, #tpu.memory_space<vmem>>, vector<16x32xf32>
    tpu.vector_store %arg7[%c0_6, %c0_7], %7 {strides = array<i32>} : memref<16x32xf32, #tpu.memory_space<vmem>>, vector<16x32xf32>,
    %c0_i32_8 = arith.constant 0 : i32
    %9 = arith.cmpi eq, %arg2, %c0_i32_8 : i32
    %10 = arith.extui %9 : i1 to i32
    %c0_i32_9 = arith.constant 0 : i32
    %11 = arith.cmpi ne, %10, %c0_i32_9 : i32
    scf.if %11 {
      %c0_10 = arith.constant 0 : index
      %c0_11 = arith.constant 0 : index
      %12 = vector.load %arg7[%c0_10, %c0_11] : memref<16x32xf32, #tpu.memory_space<vmem>>, vector<16x32xf32>
      %c0_12 = arith.constant 0 : index
      %c0_13 = arith.constant 0 : index
      %13 = vector.load %arg5[%c0_12, %c0_13] : memref<1x32xf32, #tpu.memory_space<vmem>>, vector<1x32xf32>
      %14 = vector.broadcast %13 : vector<1x32xf32> to vector<16x32xf32>
      %15 = arith.addf %12, %14 : vector<16x32xf32>
      %c0_14 = arith.constant 0 : index
      %c0_15 = arith.constant 0 : index
      %16 = vector.load %arg6[%c0_14, %c0_15] : memref<16x32xf32, #tpu.memory_space<vmem>>, vector<16x32xf32>
      tpu.vector_store %arg6[%c0_14, %c0_15], %15 {strides = array<i32>} : memref<16x32xf32, #tpu.memory_space<vmem>>, vector<16x32xf32>,
    } else {
    }
    return
  }
  func.func @transform_0(%arg0: i32, %arg1: i32, %arg2: i32) -> (i32, i32) {
    %c0_i32 = arith.constant 0 : i32
    return %arg0, %arg2 : i32, i32
  }
  func.func @transform_1(%arg0: i32, %arg1: i32, %arg2: i32) -> (i32, i32) {
    %c0_i32 = arith.constant 0 : i32
    return %arg2, %arg1 : i32, i32
  }
  func.func @transform_2(%arg0: i32, %arg1: i32, %arg2: i32) -> (i32, i32) {
    %c0_i32 = arith.constant 0 : i32
    %c0_i32_0 = arith.constant 0 : i32
    return %c0_i32, %arg1 : i32, i32
  }
  func.func @transform_3(%arg0: i32, %arg1: i32, %arg2: i32) -> (i32, i32) {
    %c0_i32 = arith.constant 0 : i32
    return %arg0, %arg1 : i32, i32
  }
}

</mosaic_0001>

<llo_original>
// kernel: gpt_forward.17
$region0: #{gpt_forward.17}
  #allocation0 [shape = 'u32[]', space=smem, size = 0x4, offset = 0x4, fixed_abs, tag = 'smem constant byte address 0x4 - core index']
  #allocation1 [shape = 'u32[144,128]{1,0:T(1,128)}', space=vmem, size = 0x12000, scoped, tag = 'internal scratch']
  #allocation2 [shape = 'f32[16,32]{1,0:T(8,128)}', space=vmem, size = 0x2000, scoped, tag = 'scratch operand']
  %s0 = inlined_call_operand.hbm [shape: bf16[16,32], index: 0, kind: input, shape index: {}]
  %s1 = inlined_call_operand.hbm [shape: bf16[32,32], index: 1, kind: input, shape index: {}]
  %s2 = inlined_call_operand.hbm [shape: f32[1,32], index: 2, kind: input, shape index: {}]
  %s3 = inlined_call_operand.hbm [shape: bf16[16,32], index: 3, kind: output, shape index: {}]
  %s4 = sld [smem:[#allocation0]]
  $region42: #{gpt_forward.17} parent=0
    _
  %s6 = ssub.s32 1, %s4
  %s7 = scalar_select 0, %s6, %s4
  $region1: #{gpt_forward.17} parent=0
    #allocation3 [shape = 'u8[4096]{0}', space=vmem, size = 0x1000, scoped, tag = 'input window, operand 0, single buffered']
    #allocation4 [shape = 's32[1]{0}', space=sflag, size = 0x4, scoped, tag = 'scoped memory for gpt_forward.17']
    #allocation5 [shape = 's32[1]{0}', space=sflag, size = 0x4, scoped, tag = 'scoped memory for gpt_forward.17']
    #allocation6 [shape = 'u8[8192]{0}', space=vmem, size = 0x2000, scoped, tag = 'input window, operand 1, single buffered']
    #allocation7 [shape = 's32[1]{0}', space=sflag, size = 0x4, scoped, tag = 'scoped memory for gpt_forward.17']
    #allocation8 [shape = 'u8[512]{0}', space=vmem, size = 0x400, scoped, tag = 'input window, operand 2, single buffered']
    #allocation9 [shape = 'u8[4096]{0}', space=vmem, size = 0x1000, scoped, tag = 'output window, operand 0, single buffered']
    %8 = vsyncpa [#allocation4], 0
    %9 = vsyncpa [#allocation7], 0
    %10 = vsyncpa [#allocation5], 0
    // Predicated region
    $region2: #{gpt_forward.17} parent=1 // pred_check
      _
    $region3: #{gpt_forward.17} parent=1 // pred_check_branch
      %12 = sbr.rel (0) target = $region5
    $region4: #{gpt_forward.17} parent=1 // pred_region
      %s14 = ssub.s32 128, 128
      %15 = vsyncadd [#allocation4], %s14
      %s16 = sshll.u32 [#allocation3], 4
      %s17 = int_to_ptr.vmem [resolvable:$true] %s16
      %22 = dma.hbm_to_vmem [thread:$0]  %s0, 128, %s17, [#allocation4], 64, 64, 4
    $region5: #{gpt_forward.17} parent=1 // pred_fallthru
      _
    // Predicated region
    $region6: #{gpt_forward.17} parent=1 // pred_check
      _
    $region7: #{gpt_forward.17} parent=1 // pred_check_branch
      %24 = sbr.rel (0) target = $region9
    $region8: #{gpt_forward.17} parent=1 // pred_region
      %s26 = ssub.s32 256, 256
      %27 = vsyncadd [#allocation7], %s26
      %s28 = sshll.u32 [#allocation6], 4
      %s29 = int_to_ptr.vmem [resolvable:$true] %s28
      %34 = dma.hbm_to_vmem [thread:$0]  %s1, 256, %s29, [#allocation7], 64, 64, 4
    $region9: #{gpt_forward.17} parent=1 // pred_fallthru
      _
    // Predicated region
    $region10: #{gpt_forward.17} parent=1 // pred_check
      _
    $region11: #{gpt_forward.17} parent=1 // pred_check_branch
      %36 = sbr.rel (0) target = $region13
    $region12: #{gpt_forward.17} parent=1 // pred_region
      %s38 = ssub.s32 16, 16
      %39 = vsyncadd [#allocation7], %s38
      %s41 = sshll.u32 [#allocation8], 4
      %s42 = int_to_ptr.vmem [resolvable:$true] %s41
      %44 = dma.hbm_to_vmem [thread:$0]  %s2, 16, %s42, [#allocation7]
    $region13: #{gpt_forward.17} parent=1 // pred_fallthru
      _
    // Predicated region
    $region14: #{gpt_forward.17} parent=1 // pred_check
      _
    $region15: #{gpt_forward.17} parent=1 // pred_check_branch
      %46 = sbr.rel (0) target = $region17
    $region16: #{gpt_forward.17} parent=1 // pred_region
      %47 = dma.done [#allocation4], 128
    $region17: #{gpt_forward.17} parent=1 // pred_fallthru
      _
    // Predicated region
    $region18: #{gpt_forward.17} parent=1 // pred_check
      _
    $region19: #{gpt_forward.17} parent=1 // pred_check_branch
      %49 = sbr.rel (0) target = $region21
    $region20: #{gpt_forward.17} parent=1 // pred_region
      %50 = dma.done [#allocation7], 256
    $region21: #{gpt_forward.17} parent=1 // pred_fallthru
      _
    // Predicated region
    $region22: #{gpt_forward.17} parent=1 // pred_check
      _
    $region23: #{gpt_forward.17} parent=1 // pred_check_branch
      %52 = sbr.rel (0) target = $region25
    $region24: #{gpt_forward.17} parent=1 // pred_region
      %53 = dma.done [#allocation7], 16
    $region25: #{gpt_forward.17} parent=1 // pred_fallthru
      _
    %p55 = scmp.eq.s32.totalorder 0, 0
    // Predicated region
    $region26: #{gpt_forward.17} parent=1 // pred_check
      %p56 = pneg %p55
    $region27: #{gpt_forward.17} parent=1 // pred_check_branch
      %58 = sbr.rel (%p56) target = $region29
    $region28: #{gpt_forward.17} parent=1 // pred_region
      %vm59 = vcmask 261120
      %60 = vst.msk [vmem:[#allocation2] sm:$0xff] %vm59, 0.0
      %61 = vst.msk [vmem:[#allocation2 + $0x8] sm:$0xff] %vm59, 0.0
    $region29: #{gpt_forward.17} parent=1 // pred_fallthru
      _
    %v62 = vld [vmem:[#allocation2] sm:$0xff]
    %v63 = vld [vmem:[#allocation2 + $0x8] sm:$0xff]
    %v64 = vld [vmem:[#allocation3] sm:$0xf]
    %v65 = vld [vmem:[#allocation3 + $0x4] sm:$0xf]
    %v66 = vld [vmem:[#allocation6] sm:$0xf]
    %v67 = vld [vmem:[#allocation6 + $0x4] sm:$0xf]
    %v68 = vld [vmem:[#allocation6 + $0x8] sm:$0xf]
    %v69 = vld [vmem:[#allocation6 + $0xc] sm:$0xf]
    %v72 = vunpack.c.l.b16 %v64
    %v73 = vunpack.c.l.b16 %v65
    %v74 = vpack.c.b16 %v73, %v72
    %v79 = vunpack.c.l.b16 %v66
    %v80 = vunpack.c.l.b16 %v67
    %v81 = vunpack.c.l.b16 %v68
    %v82 = vunpack.c.l.b16 %v69
    %v83 = vpack.c.b16 %v80, %v79
    %v84 = vpack.c.b16 %v82, %v81
    %vm87 = vcmask 261120
    %v89 = vsel %vm87, %v74, 0
    %91 = vmatprep.subr.bf16.mxu0 0
    %92 = vmatpush1.bf16.msra.mxu0 %v83
    %93 = vmatprep.subr.bf16.mxu0 0
    %94 = vmatpush1.bf16.msra.mxu0 %v84
    %95 = vmatprep.subr.bf16.mxu0 0
    %96 = vmatpush1.bf16.msra.mxu0 0
    %97 = vmatprep.subr.bf16.mxu0 0
    %98 = vmatpush1.bf16.msra.mxu0 0
    %99 = vmatprep.subr.bf16.mxu0 0
    %100 = vmatpush1.bf16.msra.mxu0 0
    %101 = vmatprep.subr.bf16.mxu0 0
    %102 = vmatpush1.bf16.msra.mxu0 0
    %103 = vmatprep.subr.bf16.mxu0 0
    %104 = vmatpush1.bf16.msra.mxu0 0
    %105 = vmatprep.subr.bf16.mxu0 0
    %106 = vmatpush1.bf16.msra.mxu0 0
    %107 = vmatprep.subr.bf16.mxu0 0
    %108 = vmatpush1.bf16.msra.mxu0 0
    %109 = vmatprep.subr.bf16.mxu0 0
    %110 = vmatpush1.bf16.msra.mxu0 0
    %111 = vmatprep.subr.bf16.mxu0 0
    %112 = vmatpush1.bf16.msra.mxu0 0
    %113 = vmatprep.subr.bf16.mxu0 0
    %114 = vmatpush1.bf16.msra.mxu0 0
    %115 = vmatprep.subr.bf16.mxu0 0
    %116 = vmatpush1.bf16.msra.mxu0 0
    %117 = vmatprep.subr.bf16.mxu0 0
    %118 = vmatpush1.bf16.msra.mxu0 0
    %119 = vmatprep.subr.bf16.mxu0 0
    %120 = vmatpush1.bf16.msra.mxu0 0
    %121 = vmatprep.subr.bf16.mxu0 0
    %122 = vmatpush1.bf16.msra.mxu0 0
    %123 = vmatprep.mubr.bf16.mxu0 0
    %124 = vmatmul.mubr.bf16.gmra.mrb[0].mxu0 %v89
    %v125 = vpop.f32.mrb[0].mxu0
    %v126 = vadd.f32 0.0, %v125
    %v127 = vpop.f32.mrb[0].mxu0
    %v128 = vpop.f32.mrb[0].mxu0
    %v129 = vadd.f32 0.0, %v128
    %v130 = vpop.f32.mrb[0].mxu0
    %131 = vdwg.mxu0
    %v132 = vadd.f32 %v62, %v126
    %v133 = vadd.f32 %v63, %v129
    %134 = vst.msk [vmem:[#allocation2] sm:$0xff] %vm87, %v132
    %135 = vst.msk [vmem:[#allocation2 + $0x8] sm:$0xff] %vm87, %v133
    // Predicated region
    $region30: #{gpt_forward.17} parent=1 // pred_check
      %p136 = pneg %p55
    $region31: #{gpt_forward.17} parent=1 // pred_check_branch
      %138 = sbr.rel (%p136) target = $region33
    $region32: #{gpt_forward.17} parent=1 // pred_region
      %v139 = vld [vmem:[#allocation2] sm:$0xff]
      %v140 = vld [vmem:[#allocation2 + $0x8] sm:$0xff]
      %v141 = vld [vmem:[#allocation8] sm:$0x1]
      %v143 = vlaneseq
      %v144 = vshrl.u32 %v143, 7
      %v145 = vsub.s32 0, %v144
      %v146 = vrot.slane %v141, %v145
      %v148 = vadd.f32 %v139, %v146
      %v149 = vadd.f32 %v140, %v146
      %v150 = vpack.c.bf16 %v149, %v148
      %v152 = vunpack.c.l.b16 %v150
      %v153 = vunpack.c.h.b16 %v150
      %v154 = vpack.c.b16 %v152, %v152
      %v155 = vpack.c.b16 %v153, %v153
      %vm158 = vcmask 257024
      %159 = vst.msk [vmem:[#allocation9] sm:$0xf] %vm158, %v154
      %160 = vst.msk [vmem:[#allocation9 + $0x4] sm:$0xf] %vm158, %v155
    $region33: #{gpt_forward.17} parent=1 // pred_fallthru
      _
    // Predicated region
    $region34: #{gpt_forward.17} parent=1 // pred_check
      _
    $region35: #{gpt_forward.17} parent=1 // pred_check_branch
      %162 = sbr.rel (0) target = $region37
    $region36: #{gpt_forward.17} parent=1 // pred_region
      %s164 = ssub.s32 128, 128
      %165 = vsyncadd [#allocation5], %s164
      %s166 = sshll.u32 [#allocation9], 4
      %s167 = int_to_ptr.vmem [resolvable:$true] %s166
      %172 = dma.vmem_to_hbm [thread:$0]  %s167, 128, %s3, [#allocation5], 64, 64, 4
    $region37: #{gpt_forward.17} parent=1 // pred_fallthru
      _
    // Predicated region
    $region38: #{gpt_forward.17} parent=1 // pred_check
      _
    $region39: #{gpt_forward.17} parent=1 // pred_check_branch
      %174 = sbr.rel (0) target = $region41
    $region40: #{gpt_forward.17} parent=1 // pred_region
      %175 = dma.done [#allocation5], 128
    $region41: #{gpt_forward.17} parent=1 // pred_fallthru
      _
    %176 = vsyncpa [#allocation4], 1
    %177 = vsyncpa [#allocation7], 1
    %178 = vsyncpa [#allocation5], 1

// kernel: gpt_forward.19
$region0: #{gpt_forward.19}
  #allocation0 [shape = 'u32[]', space=smem, size = 0x4, offset = 0x4, fixed_abs, tag = 'smem constant byte address 0x4 - core index']
  #allocation1 [shape = 'u32[144,128]{1,0:T(1,128)}', space=vmem, size = 0x12000, scoped, tag = 'internal scratch']
  #allocation2 [shape = 'f32[16,32]{1,0:T(8,128)}', space=vmem, size = 0x2000, scoped, tag = 'scratch operand']
  %s0 = inlined_call_operand.hbm [shape: bf16[16,32], index: 0, kind: input, shape index: {}]
  %s1 = inlined_call_operand.hbm [shape: bf16[32,32], index: 1, kind: input, shape index: {}]
  %s2 = inlined_call_operand.hbm [shape: f32[1,32], index: 2, kind: input, shape index: {}]
  %s3 = inlined_call_operand.hbm [shape: bf16[16,32], index: 3, kind: input, shape index: {}]
  %s4 = inlined_call_operand.hbm [shape: f32[1,32], index: 4, kind: input, shape index: {}]
  %s5 = inlined_call_operand.hbm [shape: f32[1,32], index: 5, kind: input, shape index: {}]
  %s6 = inlined_call_operand.hbm [shape: bf16[16,32], index: 6, kind: output, shape index: {0}]
  %s7 = inlined_call_operand.hbm [shape: bf16[16,32], index: 7, kind: output, shape index: {1}]
  %8 = xla_tuple %s6, %s7
  %s9 = sld [smem:[#allocation0]]
  $region74: #{gpt_forward.19} parent=0
    _
  %s11 = ssub.s32 1, %s9
  %s12 = scalar_select 0, %s11, %s9
  $region1: #{gpt_forward.19} parent=0
    #allocation3 [shape = 'u8[4096]{0}', space=vmem, size = 0x1000, scoped, tag = 'input window, operand 0, single buffered']
    #allocation4 [shape = 's32[1]{0}', space=sflag, size = 0x4, scoped, tag = 'scoped memory for gpt_forward.19']
    #allocation5 [shape = 's32[1]{0}', space=sflag, size = 0x4, scoped, tag = 'scoped memory for gpt_forward.19']
    #allocation6 [shape = 'u8[8192]{0}', space=vmem, size = 0x2000, scoped, tag = 'input window, operand 1, single buffered']
    #allocation7 [shape = 's32[1]{0}', space=sflag, size = 0x4, scoped, tag = 'scoped memory for gpt_forward.19']
    #allocation8 [shape = 'u8[512]{0}', space=vmem, size = 0x400, scoped, tag = 'input window, operand 2, single buffered']
    #allocation9 [shape = 'u8[4096]{0}', space=vmem, size = 0x1000, scoped, tag = 'input window, operand 3, single buffered']
    #allocation10 [shape = 's32[1]{0}', space=sflag, size = 0x4, scoped, tag = 'scoped memory for gpt_forward.19']
    #allocation11 [shape = 'u8[512]{0}', space=vmem, size = 0x400, scoped, tag = 'input window, operand 4, single buffered']
    #allocation12 [shape = 'u8[512]{0}', space=vmem, size = 0x400, scoped, tag = 'input window, operand 5, single buffered']
    #allocation13 [shape = 's32[1]{0}', space=sflag, size = 0x4, scoped, tag = 'scoped memory for gpt_forward.19']
    #allocation14 [shape = 'u8[4096]{0}', space=vmem, size = 0x1000, scoped, tag = 'output window, operand 0, single buffered']
    #allocation15 [shape = 'u8[4096]{0}', space=vmem, size = 0x1000, scoped, tag = 'output window, operand 1, single buffered']
    #allocation16 [shape = 's32[1]{0}', space=sflag, size = 0x4, scoped, tag = 'scoped memory for gpt_forward.19']
    %13 = vsyncpa [#allocation4], 0
    %14 = vsyncpa [#allocation7], 0
    %15 = vsyncpa [#allocation10], 0
    %16 = vsyncpa [#allocation13], 0
    %17 = vsyncpa [#allocation5], 0
    %18 = vsyncpa [#allocation16], 0
    // Predicated region
    $region2: #{gpt_forward.19} parent=1 // pred_check
      _
    $region3: #{gpt_forward.19} parent=1 // pred_check_branch
      %20 = sbr.rel (0) target = $region5
    $region4: #{gpt_forward.19} parent=1 // pred_region
      %s22 = ssub.s32 128, 128
      %23 = vsyncadd [#allocation4], %s22
      %s24 = sshll.u32 [#allocation3], 4
      %s25 = int_to_ptr.vmem [resolvable:$true] %s24
      %30 = dma.hbm_to_vmem [thread:$0]  %s0, 128, %s25, [#allocation4], 64, 64, 4
    $region5: #{gpt_forward.19} parent=1 // pred_fallthru
      _
    // Predicated region
    $region6: #{gpt_forward.19} parent=1 // pred_check
      _
    $region7: #{gpt_forward.19} parent=1 // pred_check_branch
      %32 = sbr.rel (0) target = $region9
    $region8: #{gpt_forward.19} parent=1 // pred_region
      %s34 = ssub.s32 256, 256
      %35 = vsyncadd [#allocation7], %s34
      %s36 = sshll.u32 [#allocation6], 4
      %s37 = int_to_ptr.vmem [resolvable:$true] %s36
      %42 = dma.hbm_to_vmem [thread:$0]  %s1, 256, %s37, [#allocation7], 64, 64, 4
    $region9: #{gpt_forward.19} parent=1 // pred_fallthru
      _
    // Predicated region
    $region10: #{gpt_forward.19} parent=1 // pred_check
      _
    $region11: #{gpt_forward.19} parent=1 // pred_check_branch
      %44 = sbr.rel (0) target = $region13
    $region12: #{gpt_forward.19} parent=1 // pred_region
      %s46 = ssub.s32 16, 16
      %47 = vsyncadd [#allocation7], %s46
      %s49 = sshll.u32 [#allocation8], 4
      %s50 = int_to_ptr.vmem [resolvable:$true] %s49
      %52 = dma.hbm_to_vmem [thread:$0]  %s2, 16, %s50, [#allocation7]
    $region13: #{gpt_forward.19} parent=1 // pred_fallthru
      _
    // Predicated region
    $region14: #{gpt_forward.19} parent=1 // pred_check
      _
    $region15: #{gpt_forward.19} parent=1 // pred_check_branch
      %54 = sbr.rel (0) target = $region17
    $region16: #{gpt_forward.19} parent=1 // pred_region
      %s56 = ssub.s32 128, 128
      %57 = vsyncadd [#allocation10], %s56
      %s58 = sshll.u32 [#allocation9], 4
      %s59 = int_to_ptr.vmem [resolvable:$true] %s58
      %64 = dma.hbm_to_vmem [thread:$0]  %s3, 128, %s59, [#allocation10], 64, 64, 4
    $region17: #{gpt_forward.19} parent=1 // pred_fallthru
      _
    // Predicated region
    $region18: #{gpt_forward.19} parent=1 // pred_check
      _
    $region19: #{gpt_forward.19} parent=1 // pred_check_branch
      %66 = sbr.rel (0) target = $region21
    $region20: #{gpt_forward.19} parent=1 // pred_region
      %s68 = ssub.s32 16, 16
      %69 = vsyncadd [#allocation10], %s68
      %s71 = sshll.u32 [#allocation11], 4
      %s72 = int_to_ptr.vmem [resolvable:$true] %s71
      %74 = dma.hbm_to_vmem [thread:$0]  %s4, 16, %s72, [#allocation10]
    $region21: #{gpt_forward.19} parent=1 // pred_fallthru
      _
    // Predicated region
    $region22: #{gpt_forward.19} parent=1 // pred_check
      _
    $region23: #{gpt_forward.19} parent=1 // pred_check_branch
      %76 = sbr.rel (0) target = $region25
    $region24: #{gpt_forward.19} parent=1 // pred_region
      %s78 = ssub.s32 16, 16
      %79 = vsyncadd [#allocation13], %s78
      %s81 = sshll.u32 [#allocation12], 4
      %s82 = int_to_ptr.vmem [resolvable:$true] %s81
      %84 = dma.hbm_to_vmem [thread:$0]  %s5, 16, %s82, [#allocation13]
    $region25: #{gpt_forward.19} parent=1 // pred_fallthru
      _
    // Predicated region
    $region26: #{gpt_forward.19} parent=1 // pred_check
      _
    $region27: #{gpt_forward.19} parent=1 // pred_check_branch
      %86 = sbr.rel (0) target = $region29
    $region28: #{gpt_forward.19} parent=1 // pred_region
      %87 = dma.done [#allocation4], 128
    $region29: #{gpt_forward.19} parent=1 // pred_fallthru
      _
    // Predicated region
    $region30: #{gpt_forward.19} parent=1 // pred_check
      _
    $region31: #{gpt_forward.19} parent=1 // pred_check_branch
      %89 = sbr.rel (0) target = $region33
    $region32: #{gpt_forward.19} parent=1 // pred_region
      %90 = dma.done [#allocation7], 256
    $region33: #{gpt_forward.19} parent=1 // pred_fallthru
      _
    // Predicated region
    $region34: #{gpt_forward.19} parent=1 // pred_check
      _
    $region35: #{gpt_forward.19} parent=1 // pred_check_branch
      %92 = sbr.rel (0) target = $region37
    $region36: #{gpt_forward.19} parent=1 // pred_region
      %93 = dma.done [#allocation7], 16
    $region37: #{gpt_forward.19} parent=1 // pred_fallthru
      _
    // Predicated region
    $region38: #{gpt_forward.19} parent=1 // pred_check
      _
    $region39: #{gpt_forward.19} parent=1 // pred_check_branch
      %95 = sbr.rel (0) target = $region41
    $region40: #{gpt_forward.19} parent=1 // pred_region
      %96 = dma.done [#allocation10], 128
    $region41: #{gpt_forward.19} parent=1 // pred_fallthru
      _
    // Predicated region
    $region42: #{gpt_forward.19} parent=1 // pred_check
      _
    $region43: #{gpt_forward.19} parent=1 // pred_check_branch
      %98 = sbr.rel (0) target = $region45
    $region44: #{gpt_forward.19} parent=1 // pred_region
      %99 = dma.done [#allocation10], 16
    $region45: #{gpt_forward.19} parent=1 // pred_fallthru
      _
    // Predicated region
    $region46: #{gpt_forward.19} parent=1 // pred_check
      _
    $region47: #{gpt_forward.19} parent=1 // pred_check_branch
      %101 = sbr.rel (0) target = $region49
    $region48: #{gpt_forward.19} parent=1 // pred_region
      %102 = dma.done [#allocation13], 16
    $region49: #{gpt_forward.19} parent=1 // pred_fallthru
      _
    %p104 = scmp.eq.s32.totalorder 0, 0
    // Predicated region
    $region50: #{gpt_forward.19} parent=1 // pred_check
      %p105 = pneg %p104
    $region51: #{gpt_forward.19} parent=1 // pred_check_branch
      %107 = sbr.rel (%p105) target = $region53
    $region52: #{gpt_forward.19} parent=1 // pred_region
      %vm108 = vcmask 261120
      %109 = vst.msk [vmem:[#allocation2] sm:$0xff] %vm108, 0.0
      %110 = vst.msk [vmem:[#allocation2 + $0x8] sm:$0xff] %vm108, 0.0
    $region53: #{gpt_forward.19} parent=1 // pred_fallthru
      _
    %v111 = vld [vmem:[#allocation2] sm:$0xff]
    %v112 = vld [vmem:[#allocation2 + $0x8] sm:$0xff]
    %v113 = vld [vmem:[#allocation3] sm:$0xf]
    %v114 = vld [vmem:[#allocation3 + $0x4] sm:$0xf]
    %v115 = vld [vmem:[#allocation6] sm:$0xf]
    %v116 = vld [vmem:[#allocation6 + $0x4] sm:$0xf]
    %v117 = vld [vmem:[#allocation6 + $0x8] sm:$0xf]
    %v118 = vld [vmem:[#allocation6 + $0xc] sm:$0xf]
    %v121 = vunpack.c.l.b16 %v113
    %v122 = vunpack.c.l.b16 %v114
    %v123 = vpack.c.b16 %v122, %v121
    %v128 = vunpack.c.l.b16 %v115
    %v129 = vunpack.c.l.b16 %v116
    %v130 = vunpack.c.l.b16 %v117
    %v131 = vunpack.c.l.b16 %v118
    %v132 = vpack.c.b16 %v129, %v128
    %v133 = vpack.c.b16 %v131, %v130
    %vm136 = vcmask 261120
    %v138 = vsel %vm136, %v123, 0
    %140 = vmatprep.subr.bf16.mxu0 0
    %141 = vmatpush1.bf16.msra.mxu0 %v132
    %142 = vmatprep.subr.bf16.mxu0 0
    %143 = vmatpush1.bf16.msra.mxu0 %v133
    %144 = vmatprep.subr.bf16.mxu0 0
    %145 = vmatpush1.bf16.msra.mxu0 0
    %146 = vmatprep.subr.bf16.mxu0 0
    %147 = vmatpush1.bf16.msra.mxu0 0
    %148 = vmatprep.subr.bf16.mxu0 0
    %149 = vmatpush1.bf16.msra.mxu0 0
    %150 = vmatprep.subr.bf16.mxu0 0
    %151 = vmatpush1.bf16.msra.mxu0 0
    %152 = vmatprep.subr.bf16.mxu0 0
    %153 = vmatpush1.bf16.msra.mxu0 0
    %154 = vmatprep.subr.bf16.mxu0 0
    %155 = vmatpush1.bf16.msra.mxu0 0
    %156 = vmatprep.subr.bf16.mxu0 0
    %157 = vmatpush1.bf16.msra.mxu0 0
    %158 = vmatprep.subr.bf16.mxu0 0
    %159 = vmatpush1.bf16.msra.mxu0 0
    %160 = vmatprep.subr.bf16.mxu0 0
    %161 = vmatpush1.bf16.msra.mxu0 0
    %162 = vmatprep.subr.bf16.mxu0 0
    %163 = vmatpush1.bf16.msra.mxu0 0
    %164 = vmatprep.subr.bf16.mxu0 0
    %165 = vmatpush1.bf16.msra.mxu0 0
    %166 = vmatprep.subr.bf16.mxu0 0
    %167 = vmatpush1.bf16.msra.mxu0 0
    %168 = vmatprep.subr.bf16.mxu0 0
    %169 = vmatpush1.bf16.msra.mxu0 0
    %170 = vmatprep.subr.bf16.mxu0 0
    %171 = vmatpush1.bf16.msra.mxu0 0
    %172 = vmatprep.mubr.bf16.mxu0 0
    %173 = vmatmul.mubr.bf16.gmra.mrb[0].mxu0 %v138
    %v174 = vpop.f32.mrb[0].mxu0
    %v175 = vadd.f32 0.0, %v174
    %v176 = vpop.f32.mrb[0].mxu0
    %v177 = vpop.f32.mrb[0].mxu0
    %v178 = vadd.f32 0.0, %v177
    %v179 = vpop.f32.mrb[0].mxu0
    %180 = vdwg.mxu0
    %v181 = vadd.f32 %v111, %v175
    %v182 = vadd.f32 %v112, %v178
    %183 = vst.msk [vmem:[#allocation2] sm:$0xff] %vm136, %v181
    %184 = vst.msk [vmem:[#allocation2 + $0x8] sm:$0xff] %vm136, %v182
    // Predicated region
    $region54: #{gpt_forward.19} parent=1 // pred_check
      %p185 = pneg %p104
    $region55: #{gpt_forward.19} parent=1 // pred_check_branch
      %187 = sbr.rel (%p185) target = $region57
    $region56: #{gpt_forward.19} parent=1 // pred_region
      %v188 = vld [vmem:[#allocation2] sm:$0xff]
      %v189 = vld [vmem:[#allocation2 + $0x8] sm:$0xff]
      %v190 = vld [vmem:[#allocation8] sm:$0x1]
      %v192 = vlaneseq
      %v193 = vshrl.u32 %v192, 7
      %v194 = vsub.s32 0, %v193
      %v195 = vrot.slane %v190, %v194
      %v197 = vadd.f32 %v188, %v195
      %v198 = vadd.f32 %v189, %v195
      %v199 = vld [vmem:[#allocation9] sm:$0xf]
      %v200 = vld [vmem:[#allocation9 + $0x4] sm:$0xf]
      %v201 = vunpack.c.l.bf16 %v199
      %v202 = vunpack.c.l.bf16 %v200
      %v203 = vadd.f32 %v197, %v201
      %v204 = vadd.f32 %v198, %v202
      %v205 = vpack.c.bf16 %v204, %v203
      %v207 = vunpack.c.l.b16 %v205
      %v208 = vunpack.c.h.b16 %v205
      %v209 = vpack.c.b16 %v207, %v207
      %v210 = vpack.c.b16 %v208, %v208
      %vm213 = vcmask 257024
      %214 = vst.msk [vmem:[#allocation14] sm:$0xf] %vm213, %v209
      %215 = vst.msk [vmem:[#allocation14 + $0x4] sm:$0xf] %vm213, %v210
      %v216 = vld [vmem:[#allocation11] sm:$0x1]
      %v218 = vlaneseq
      %v219 = vshrl.u32 %v218, 7
      %v220 = vsub.s32 0, %v219
      %v221 = vrot.slane %v216, %v220
      %v223 = vmul.f32 %v221, %v203
      %v224 = vmul.f32 %v221, %v204
      %v225 = vld [vmem:[#allocation12] sm:$0x1]
      %v227 = vlaneseq
      %v228 = vshrl.u32 %v227, 7
      %v229 = vsub.s32 0, %v228
      %v230 = vrot.slane %v225, %v229
      %v232 = vadd.f32 %v223, %v230
      %v233 = vadd.f32 %v224, %v230
      %v234 = vpack.c.bf16 %v233, %v232
      %v236 = vunpack.c.l.b16 %v234
      %v237 = vunpack.c.h.b16 %v234
      %v238 = vpack.c.b16 %v236, %v236
      %v239 = vpack.c.b16 %v237, %v237
      %242 = vst.msk [vmem:[#allocation15] sm:$0xf] %vm213, %v238
      %243 = vst.msk [vmem:[#allocation15 + $0x4] sm:$0xf] %vm213, %v239
    $region57: #{gpt_forward.19} parent=1 // pred_fallthru
      _
    // Predicated region
    $region58: #{gpt_forward.19} parent=1 // pred_check
      _
    $region59: #{gpt_forward.19} parent=1 // pred_check_branch
      %245 = sbr.rel (0) target = $region61
    $region60: #{gpt_forward.19} parent=1 // pred_region
      %s247 = ssub.s32 128, 128
      %248 = vsyncadd [#allocation5], %s247
      %s249 = sshll.u32 [#allocation14], 4
      %s250 = int_to_ptr.vmem [resolvable:$true] %s249
      %255 = dma.vmem_to_hbm [thread:$0]  %s250, 128, %s6, [#allocation5], 64, 64, 4
    $region61: #{gpt_forward.19} parent=1 // pred_fallthru
      _
    // Predicated region
    $region62: #{gpt_forward.19} parent=1 // pred_check
      _
    $region63: #{gpt_forward.19} parent=1 // pred_check_branch
      %257 = sbr.rel (0) target = $region65
    $region64: #{gpt_forward.19} parent=1 // pred_region
      %s259 = ssub.s32 128, 128
      %260 = vsyncadd [#allocation16], %s259
      %s261 = sshll.u32 [#allocation15], 4
      %s262 = int_to_ptr.vmem [resolvable:$true] %s261
      %267 = dma.vmem_to_hbm [thread:$0]  %s262, 128, %s7, [#allocation16], 64, 64, 4
    $region65: #{gpt_forward.19} parent=1 // pred_fallthru
      _
    // Predicated region
    $region66: #{gpt_forward.19} parent=1 // pred_check
      _
    $region67: #{gpt_forward.19} parent=1 // pred_check_branch
      %269 = sbr.rel (0) target = $region69
    $region68: #{gpt_forward.19} parent=1 // pred_region
      %270 = dma.done [#allocation5], 128
    $region69: #{gpt_forward.19} parent=1 // pred_fallthru
      _
    // Predicated region
    $region70: #{gpt_forward.19} parent=1 // pred_check
      _
    $region71: #{gpt_forward.19} parent=1 // pred_check_branch
      %272 = sbr.rel (0) target = $region73
    $region72: #{gpt_forward.19} parent=1 // pred_region
      %273 = dma.done [#allocation16], 128
    $region73: #{gpt_forward.19} parent=1 // pred_fallthru
      _
    %274 = vsyncpa [#allocation4], 1
    %275 = vsyncpa [#allocation7], 1
    %276 = vsyncpa [#allocation10], 1
    %277 = vsyncpa [#allocation13], 1
    %278 = vsyncpa [#allocation5], 1
    %279 = vsyncpa [#allocation16], 1

// kernel: gpt_forward.18
$region0: #{gpt_forward.18}
  #allocation0 [shape = 'u32[]', space=smem, size = 0x4, offset = 0x4, fixed_abs, tag = 'smem constant byte address 0x4 - core index']
  #allocation1 [shape = 'u32[144,128]{1,0:T(1,128)}', space=vmem, size = 0x12000, scoped, tag = 'internal scratch']
  #allocation2 [shape = 'f32[4,8,1]{2,1,0:T(8,128)}', space=vmem, size = 0x4000, scoped, tag = 'scratch operand']
  #allocation3 [shape = 'f32[4,8,1]{2,1,0:T(8,128)}', space=vmem, size = 0x4000, scoped, tag = 'scratch operand']
  #allocation4 [shape = 'f32[4,8,8]{2,1,0:T(8,128)}', space=vmem, size = 0x4000, scoped, tag = 'scratch operand']
  %s0 = inlined_call_operand.hbm [shape: bf16[2,8,32], index: 0, kind: input, shape index: {}]
  %s1 = inlined_call_operand.hbm [shape: bf16[2,8,32], index: 1, kind: input, shape index: {}]
  %s2 = inlined_call_operand.hbm [shape: bf16[2,8,32], index: 2, kind: input, shape index: {}]
  %s3 = inlined_call_operand.hbm [shape: bf16[2,8,32], index: 3, kind: output, shape index: {}]
  %s4 = sld [smem:[#allocation0]]
  $region69: #{gpt_forward.18} parent=0
    _
  %s6 = ssub.s32 1, %s4
  %s7 = scalar_select 0, %s6, %s4
  $region1: #{gpt_forward.18} parent=0
    #allocation5 [shape = 'u8[4096]{0}', space=vmem, size = 0x1000, scoped, tag = 'input window, operand 0']
    #allocation6 [shape = 's32[2]{0}', space=sflag, size = 0x8, scoped, tag = 'scoped memory for gpt_forward.18']
    #allocation7 [shape = 's32[2]{0}', space=sflag, size = 0x8, scoped, tag = 'scoped memory for gpt_forward.18']
    #allocation8 [shape = 'u8[4096]{0}', space=vmem, size = 0x1000, scoped, tag = 'input window, operand 1']
    #allocation9 [shape = 's32[2]{0}', space=sflag, size = 0x8, scoped, tag = 'scoped memory for gpt_forward.18']
    #allocation10 [shape = 'u8[4096]{0}', space=vmem, size = 0x1000, scoped, tag = 'input window, operand 2']
    #allocation11 [shape = 'u8[4096]{0}', space=vmem, size = 0x1000, scoped, tag = 'output window, operand 0']
    %8 = vsyncpa [#allocation6], 0
    %s9 = scalar_lea.sflag [#allocation6], 1
    %10 = vsyncpa %s9, 0
    %11 = vsyncpa [#allocation9], 0
    %s12 = scalar_lea.sflag [#allocation9], 1
    %13 = vsyncpa %s12, 0
    %14 = vsyncpa [#allocation7], 0
    %s15 = scalar_lea.sflag [#allocation7], 1
    %16 = vsyncpa %s15, 0
    loop: start=0, step=1, limit=4
    $region2: #{gpt_forward.18} parent=1 // loop_pre_header
      _
    $region3: #{gpt_forward.18} parent=1 // loop_header
      %s18 = sphi 0, %s22
      %p19 = scmp.ge.s32.totalorder %s18, 4
      %s25 = sphi 0, %s44
      %s26 = sphi 0, %s40
      %s27 = sphi 0, %s36
      %s28 = sphi 0, %s25
      %s29 = sphi 0, %s26
      %s30 = sphi 0, %s27
      %s31 = sphi 0, %s28
      %s32 = sphi 0, %s29
      %s33 = sphi 0, %s30
      %s49 = sphi 0, %s51
      %s52 = sphi 0, %s49
      %s53 = sphi 0, %s52
      %s69 = sphi 0, %s53
      %s81 = sphi 0, %s83
      %s84 = sphi 0, %s81
      %s85 = sphi 0, %s84
      %s101 = sphi 0, %s85
      %s113 = sphi 0, %s115
      %s116 = sphi 0, %s113
      %s117 = sphi 0, %s116
      %s133 = sphi 0, %s117
      %s141 = sphi 0, %s143
      %s144 = sphi 0, %s141
      %s145 = sphi 0, %s144
      %s161 = sphi 0, %s145
    $region4: #{gpt_forward.18} parent=1 // loop_header_branch
      %21 = sbr.rel (%p19) target = $region8
    $region5: #{gpt_forward.18} parent=1 // loop_body
      %s23 = ssub.s32 %s18, 1
      %s24 = ssub.s32 %s18, 2
      %s34 = sadd.s32 1, %s27
      %p35 = scmp.ge.s32.totalorder %s34, 1
      %s36 = scalar_select %p35, 0, %s34
      %s37 = sadd.s32 1, %s26
      %s38 = scalar_select %p35, %s37, %s26
      %p39 = scmp.ge.s32.totalorder %s38, 1
      %s40 = scalar_select %p39, 0, %s38
      %s41 = sadd.s32 1, %s25
      %s42 = scalar_select %p39, %s41, %s25
      %p43 = scmp.ge.s32.totalorder %s42, 2
      %s44 = scalar_select %p43, 0, %s42
      %s45 = ssub.s32 %s25, %s44
      %s46 = ssub.s32 %s26, %s40
      %s47 = sor.u32 %s45, %s46
      %p48 = scmp.eq.s32.totalorder %s47, 0
      %s50 = sadd.s32 %s49, 1
      %s51 = scalar_select %p48, %s49, %s50
      %p54 = pneg %p48
      %p55 = scmp.eq.s32.totalorder %s18, 1
      %p56 = por %p54, %p55
      %p57 = scmp.ne.s32.totalorder %s49, %s52
      %p58 = scmp.eq.s32.totalorder %s18, 0
      %p59 = por %p57, %p58
      %p60 = scmp.ne.s32.totalorder %s49, %s52
      %p61 = scmp.eq.s32.totalorder %s23, 1
      %p62 = por %p60, %p61
      %p63 = scmp.ne.s32.totalorder %s52, %s53
      %p64 = scmp.eq.s32.totalorder %s23, 0
      %p65 = por %p63, %p64
      %p66 = scmp.ne.s32.totalorder %s52, %s53
      %p67 = scmp.eq.s32.totalorder %s24, 1
      %p68 = por %p66, %p67
      %p70 = scmp.ne.s32.totalorder %s53, %s69
      %p71 = scmp.eq.s32.totalorder %s24, 0
      %p72 = por %p70, %p71
      %p73 = scmp.lt.s32.totalorder %s27, %s26
      %s74 = scalar_select %p73, %s27, %s26
      %p75 = scmp.lt.s32.totalorder %s36, %s40
      %s76 = scalar_select %p75, %s36, %s40
      %s77 = ssub.s32 %s25, %s44
      %s78 = ssub.s32 %s74, %s76
      %s79 = sor.u32 %s77, %s78
      %p80 = scmp.eq.s32.totalorder %s79, 0
      %s82 = sadd.s32 %s81, 1
      %s83 = scalar_select %p80, %s81, %s82
      %p86 = pneg %p80
      %p87 = scmp.eq.s32.totalorder %s18, 1
      %p88 = por %p86, %p87
      %p89 = scmp.ne.s32.totalorder %s81, %s84
      %p90 = scmp.eq.s32.totalorder %s18, 0
      %p91 = por %p89, %p90
      %p92 = scmp.ne.s32.totalorder %s81, %s84
      %p93 = scmp.eq.s32.totalorder %s23, 1
      %p94 = por %p92, %p93
      %p95 = scmp.ne.s32.totalorder %s84, %s85
      %p96 = scmp.eq.s32.totalorder %s23, 0
      %p97 = por %p95, %p96
      %p98 = scmp.ne.s32.totalorder %s84, %s85
      %p99 = scmp.eq.s32.totalorder %s24, 1
      %p100 = por %p98, %p99
      %p102 = scmp.ne.s32.totalorder %s85, %s101
      %p103 = scmp.eq.s32.totalorder %s24, 0
      %p104 = por %p102, %p103
      %p105 = scmp.lt.s32.totalorder %s27, %s26
      %s106 = scalar_select %p105, %s27, %s26
      %p107 = scmp.lt.s32.totalorder %s36, %s40
      %s108 = scalar_select %p107, %s36, %s40
      %s109 = ssub.s32 %s25, %s44
      %s110 = ssub.s32 %s106, %s108
      %s111 = sor.u32 %s109, %s110
      %p112 = scmp.eq.s32.totalorder %s111, 0
      %s114 = sadd.s32 %s113, 1
      %s115 = scalar_select %p112, %s113, %s114
      %p118 = pneg %p112
      %p119 = scmp.eq.s32.totalorder %s18, 1
      %p120 = por %p118, %p119
      %p121 = scmp.ne.s32.totalorder %s113, %s116
      %p122 = scmp.eq.s32.totalorder %s18, 0
      %p123 = por %p121, %p122
      %p124 = scmp.ne.s32.totalorder %s113, %s116
      %p125 = scmp.eq.s32.totalorder %s23, 1
      %p126 = por %p124, %p125
      %p127 = scmp.ne.s32.totalorder %s116, %s117
      %p128 = scmp.eq.s32.totalorder %s23, 0
      %p129 = por %p127, %p128
      %p130 = scmp.ne.s32.totalorder %s116, %s117
      %p131 = scmp.eq.s32.totalorder %s24, 1
      %p132 = por %p130, %p131
      %p134 = scmp.ne.s32.totalorder %s117, %s133
      %p135 = scmp.eq.s32.totalorder %s24, 0
      %p136 = por %p134, %p135
      %s137 = ssub.s32 %s25, %s44
      %s138 = ssub.s32 %s26, %s40
      %s139 = sor.u32 %s137, %s138
      %p140 = scmp.eq.s32.totalorder %s139, 0
      %s142 = sadd.s32 %s141, 1
      %s143 = scalar_select %p140, %s141, %s142
      %p146 = pneg %p140
      %p147 = scmp.eq.s32.totalorder %s18, 1
      %p148 = por %p146, %p147
      %p149 = scmp.ne.s32.totalorder %s141, %s144
      %p150 = scmp.eq.s32.totalorder %s18, 0
      %p151 = por %p149, %p150
      %p152 = scmp.ne.s32.totalorder %s141, %s144
      %p153 = scmp.eq.s32.totalorder %s23, 1
      %p154 = por %p152, %p153
      %p155 = scmp.ne.s32.totalorder %s144, %s145
      %p156 = scmp.eq.s32.totalorder %s23, 0
      %p157 = por %p155, %p156
      %p158 = scmp.ne.s32.totalorder %s144, %s145
      %p159 = scmp.eq.s32.totalorder %s24, 1
      %p160 = por %p158, %p159
      %p162 = scmp.ne.s32.totalorder %s145, %s161
      %p163 = scmp.eq.s32.totalorder %s24, 0
      %p164 = por %p162, %p163
      %p165 = scmp.le.s32.totalorder 1, %s18
      %p166 = scmp.lt.s32.totalorder %s18, 3
      %p167 = pnand %p165, %p166
      %p168 = pneg %p167
      // Predicated region
      $region9: #{gpt_forward.18} parent=5 // pred_check
        _
      $region10: #{gpt_forward.18} parent=5 // pred_check_branch
        %170 = sbr.rel (%p167) target = $region12
      $region11: #{gpt_forward.18} parent=5 // pred_region
        %s171 = ssub.s32 %s18, 1
      $region12: #{gpt_forward.18} parent=5 // pred_fallthru
        _
      %p172 = scmp.lt.s32.totalorder %s18, 2
      // Predicated region
      $region13: #{gpt_forward.18} parent=5 // pred_check
        %p173 = pneg %p172
      $region14: #{gpt_forward.18} parent=5 // pred_check_branch
        %175 = sbr.rel (%p173) target = $region16
      $region15: #{gpt_forward.18} parent=5 // pred_region
        // Predicated region
        $region17: #{gpt_forward.18} parent=15 // pred_check
          %p176 = pneg %p59
        $region18: #{gpt_forward.18} parent=15 // pred_check_branch
          %178 = sbr.rel (%p176) target = $region20
        $region19: #{gpt_forward.18} parent=15 // pred_region
          %s179 = sand.u32 %s49, 1
          %s180 = scalar_lea.sflag [#allocation6], %s179
          %s181 = sand.u32 %s49, 1
          %s182 = smul.addr %s181, 4
          %s183 = scalar_lea.vmem [#allocation5], %s182
          %s185 = ssub.s32 64, 64
          %186 = vsyncadd %s180, %s185
          %s187 = sadd.s32 %s26, %s25
          %s188 = smul.addr %s187, 64
          %s189 = scalar_lea.hbm %s0, %s188
          %s191 = sshll.u32 %s183, 4
          %s192 = int_to_ptr.vmem [resolvable:$true] %s191
          %194 = dma.hbm_to_vmem [thread:$0]  %s189, 64, %s192, %s180
        $region20: #{gpt_forward.18} parent=15 // pred_fallthru
          _
        // Predicated region
        $region21: #{gpt_forward.18} parent=15 // pred_check
          %p195 = pneg %p91
        $region22: #{gpt_forward.18} parent=15 // pred_check_branch
          %197 = sbr.rel (%p195) target = $region24
        $region23: #{gpt_forward.18} parent=15 // pred_region
          %s198 = sand.u32 %s18, 1
          %s199 = scalar_lea.sflag [#allocation9], %s198
          %s200 = sand.u32 %s81, 1
          %s201 = smul.addr %s200, 4
          %s202 = scalar_lea.vmem [#allocation8], %s201
          %p203 = scmp.lt.s32.totalorder %s27, %s26
          %s204 = scalar_select %p203, %s27, %s26
          %s206 = ssub.s32 64, 64
          %207 = vsyncadd %s199, %s206
          %s208 = sadd.s32 %s204, %s25
          %s209 = smul.addr %s208, 64
          %s210 = scalar_lea.hbm %s1, %s209
          %s212 = sshll.u32 %s202, 4
          %s213 = int_to_ptr.vmem [resolvable:$true] %s212
          %215 = dma.hbm_to_vmem [thread:$0]  %s210, 64, %s213, %s199
        $region24: #{gpt_forward.18} parent=15 // pred_fallthru
          _
        // Predicated region
        $region25: #{gpt_forward.18} parent=15 // pred_check
          %p216 = pneg %p123
        $region26: #{gpt_forward.18} parent=15 // pred_check_branch
          %218 = sbr.rel (%p216) target = $region28
        $region27: #{gpt_forward.18} parent=15 // pred_region
          %s219 = sand.u32 %s18, 1
          %s220 = scalar_lea.sflag [#allocation9], %s219
          %s221 = sand.u32 %s113, 1
          %s222 = smul.addr %s221, 4
          %s223 = scalar_lea.vmem [#allocation10], %s222
          %p224 = scmp.lt.s32.totalorder %s27, %s26
          %s225 = scalar_select %p224, %s27, %s26
          %s227 = ssub.s32 64, 64
          %228 = vsyncadd %s220, %s227
          %s229 = sadd.s32 %s225, %s25
          %s230 = smul.addr %s229, 64
          %s231 = scalar_lea.hbm %s2, %s230
          %s233 = sshll.u32 %s223, 4
          %s234 = int_to_ptr.vmem [resolvable:$true] %s233
          %236 = dma.hbm_to_vmem [thread:$0]  %s231, 64, %s234, %s220
        $region28: #{gpt_forward.18} parent=15 // pred_fallthru
          _
      $region16: #{gpt_forward.18} parent=5 // pred_fallthru
        _
      %p237 = scmp.le.s32.totalorder 1, %s18
      %p238 = scmp.lt.s32.totalorder %s18, 3
      %p239 = pnand %p237, %p238
      %p240 = pneg %p239
      // Predicated region
      $region29: #{gpt_forward.18} parent=5 // pred_check
        _
      $region30: #{gpt_forward.18} parent=5 // pred_check_branch
        %242 = sbr.rel (%p239) target = $region32
      $region31: #{gpt_forward.18} parent=5 // pred_region
        %s243 = ssub.s32 %s18, 1
        %s244 = sand.u32 %s52, 1
        %s245 = scalar_lea.sflag [#allocation6], %s244
        %s246 = sand.u32 %s52, 1
        %s247 = smul.addr %s246, 4
        %s248 = scalar_lea.vmem [#allocation5], %s247
        // Predicated region
        $region33: #{gpt_forward.18} parent=31 // pred_check
          %p249 = pneg %p65
        $region34: #{gpt_forward.18} parent=31 // pred_check_branch
          %251 = sbr.rel (%p249) target = $region36
        $region35: #{gpt_forward.18} parent=31 // pred_region
          %252 = dma.done %s245, 64
        $region36: #{gpt_forward.18} parent=31 // pred_fallthru
          _
        %s253 = sand.u32 %s23, 1
        %s254 = scalar_lea.sflag [#allocation9], %s253
        %s255 = sand.u32 %s84, 1
        %s256 = smul.addr %s255, 4
        %s257 = scalar_lea.vmem [#allocation8], %s256
        // Predicated region
        $region37: #{gpt_forward.18} parent=31 // pred_check
          %p258 = pneg %p97
        $region38: #{gpt_forward.18} parent=31 // pred_check_branch
          %260 = sbr.rel (%p258) target = $region40
        $region39: #{gpt_forward.18} parent=31 // pred_region
          %261 = dma.done %s254, 64
        $region40: #{gpt_forward.18} parent=31 // pred_fallthru
          _
        %s262 = sand.u32 %s23, 1
        %s263 = scalar_lea.sflag [#allocation9], %s262
        %s264 = sand.u32 %s116, 1
        %s265 = smul.addr %s264, 4
        %s266 = scalar_lea.vmem [#allocation10], %s265
        // Predicated region
        $region41: #{gpt_forward.18} parent=31 // pred_check
          %p267 = pneg %p129
        $region42: #{gpt_forward.18} parent=31 // pred_check_branch
          %269 = sbr.rel (%p267) target = $region44
        $region43: #{gpt_forward.18} parent=31 // pred_region
          %270 = dma.done %s263, 64
        $region44: #{gpt_forward.18} parent=31 // pred_fallthru
          _
        %s271 = sand.u32 %s52, 1
        %s272 = scalar_lea.sflag [#allocation6], %s271
        %s273 = sand.u32 %s52, 1
        %s274 = smul.addr %s273, 4
        %s275 = scalar_lea.vmem [#allocation5], %s274
        %p276 = pneg %p65
        %p277 = pneg %p62
        %s278 = sand.u32 %s23, 1
        %s279 = scalar_lea.sflag [#allocation9], %s278
        %s280 = sand.u32 %s84, 1
        %s281 = smul.addr %s280, 4
        %s282 = scalar_lea.vmem [#allocation8], %s281
        %p283 = pneg %p97
        %p284 = pneg %p94
        %s285 = sand.u32 %s23, 1
        %s286 = scalar_lea.sflag [#allocation9], %s285
        %s287 = sand.u32 %s116, 1
        %s288 = smul.addr %s287, 4
        %s289 = scalar_lea.vmem [#allocation10], %s288
        %p290 = pneg %p129
        %p291 = pneg %p126
        %p292 = pneg %p157
        %p293 = pneg %p154
        %s294 = sand.u32 %s144, 1
        %s295 = scalar_lea.sflag [#allocation7], %s294
        %s296 = sand.u32 %s144, 1
        %s297 = smul.addr %s296, 4
        %s298 = scalar_lea.vmem [#allocation11], %s297
        %p299 = scmp.lt.s32.totalorder %s30, %s29
        %s300 = scalar_select %p299, %s30, %s29
        %p301 = scmp.lt.s32.totalorder %s30, %s29
        %s302 = scalar_select %p301, %s30, %s29
        %p304 = scmp.eq.s32.totalorder %s30, 0
        // Predicated region
        $region45: #{gpt_forward.18} parent=31 // pred_check
          %p305 = pneg %p304
        $region46: #{gpt_forward.18} parent=31 // pred_check_branch
          %307 = sbr.rel (%p305) target = $region48
        $region47: #{gpt_forward.18} parent=31 // pred_region
          %vm308 = vcmask 7168
          %309 = vst.msk [vmem:[#allocation2] sm:$0xff] %vm308, -inf
          %310 = vst.msk [vmem:[#allocation2 + $0x8] sm:$0xff] %vm308, -inf
          %311 = vst.msk [vmem:[#allocation2 + $0x10] sm:$0xff] %vm308, -inf
          %312 = vst.msk [vmem:[#allocation2 + $0x18] sm:$0xff] %vm308, -inf
          %313 = vst.msk [vmem:[#allocation3] sm:$0xff] %vm308, 0.0
          %314 = vst.msk [vmem:[#allocation3 + $0x8] sm:$0xff] %vm308, 0.0
          %315 = vst.msk [vmem:[#allocation3 + $0x10] sm:$0xff] %vm308, 0.0
          %316 = vst.msk [vmem:[#allocation3 + $0x18] sm:$0xff] %vm308, 0.0
          %vm317 = vcmask 64512
          %318 = vst.msk [vmem:[#allocation4] sm:$0xff] %vm317, 0.0
          %319 = vst.msk [vmem:[#allocation4 + $0x8] sm:$0xff] %vm317, 0.0
          %320 = vst.msk [vmem:[#allocation4 + $0x10] sm:$0xff] %vm317, 0.0
          %321 = vst.msk [vmem:[#allocation4 + $0x18] sm:$0xff] %vm317, 0.0
        $region48: #{gpt_forward.18} parent=31 // pred_fallthru
          _
        %p322 = scmp.le.s32.totalorder %s30, %s29
        // Predicated region
        $region49: #{gpt_forward.18} parent=31 // pred_check
          %p323 = pneg %p322
        $region50: #{gpt_forward.18} parent=31 // pred_check_branch
          %325 = sbr.rel (%p323) target = $region52
        $region51: #{gpt_forward.18} parent=31 // pred_region
          %s326 = smul.u32 %s29, 8
          %v327 = vlaneseq
          %v328 = vshrl.u32 %v327, 7
          %v329 = vstv %s326
          %v330 = vadd.s32 %v329, %v328
          %s331 = smul.u32 %s30, 8
          %v332 = vlaneseq
          %v333 = vand.u32 %v332, 127
          %v334 = vstv %s331
          %v335 = vadd.s32 %v334, %v333
          %vm336 = vcmp.le.s32.totalorder %v335, %v330
          %v337 = vld [vmem:[%s248] sm:$0xf]
          %v338 = vld [vmem:[%s257] sm:$0xf]
          %vm339 = vcmask 64512
          %v341 = vsel %vm339, %v337, 0
          %v344 = vsel %vm339, %v338, 0
          %346 = vmatprep.subr.bf16.mxu0 0
          %347 = vmatpush1.bf16.xpose.msra.mxu0 %v344
          %348 = vmatprep.subr.bf16.mxu0 0
          %349 = vmatpush1.bf16.xpose.msra.mxu0 0
          %350 = vmatprep.subr.bf16.mxu0 0
          %351 = vmatpush1.bf16.xpose.msra.mxu0 0
          %352 = vmatprep.subr.bf16.mxu0 0
          %353 = vmatpush1.bf16.xpose.msra.mxu0 0
          %354 = vmatprep.subr.bf16.mxu0 0
          %355 = vmatpush1.bf16.xpose.msra.mxu0 0
          %356 = vmatprep.subr.bf16.mxu0 0
          %357 = vmatpush1.bf16.xpose.msra.mxu0 0
          %358 = vmatprep.subr.bf16.mxu0 0
          %359 = vmatpush1.bf16.xpose.msra.mxu0 0
          %360 = vmatprep.subr.bf16.mxu0 0
          %361 = vmatpush1.bf16.xpose.msra.mxu0 0
          %362 = vmatprep.subr.bf16.mxu0 0
          %363 = vmatpush1.bf16.xpose.msra.mxu0 0
          %364 = vmatprep.subr.bf16.mxu0 0
          %365 = vmatpush1.bf16.xpose.msra.mxu0 0
          %366 = vmatprep.subr.bf16.mxu0 0
          %367 = vmatpush1.bf16.xpose.msra.mxu0 0
          %368 = vmatprep.subr.bf16.mxu0 0
          %369 = vmatpush1.bf16.xpose.msra.mxu0 0
          %370 = vmatprep.subr.bf16.mxu0 0
          %371 = vmatpush1.bf16.xpose.msra.mxu0 0
          %372 = vmatprep.subr.bf16.mxu0 0
          %373 = vmatpush1.bf16.xpose.msra.mxu0 0
          %374 = vmatprep.subr.bf16.mxu0 0
          %375 = vmatpush1.bf16.xpose.msra.mxu0 0
          %376 = vmatprep.subr.bf16.mxu0 0
          %377 = vmatpush1.bf16.xpose.msra.mxu0 0
          %378 = vmatprep.mubr.bf16.mxu0 0
          %379 = vmatmul.mubr.bf16.gmra.mrb[0].mxu0 %v341
          %v380 = vpop.f32.mrb[0].mxu0
          %v381 = vadd.f32 0.0, %v380
          %v382 = vpop.f32.mrb[0].mxu0
          %v383 = vpop.f32.mrb[0].mxu0
          %v384 = vpop.f32.mrb[0].mxu0
          %385 = vdwg.mxu0
          %v386 = vsel %vm336, %v381, -1e+30
          %v387 = vld [vmem:[#allocation2] sm:$0xff]
          %v388 = vsel %vm339, %v386, -inf
          %389 = vmax.xlane.f32.xlu0 %v388
          %v390 = vpop.xlane.xlu0 %389
          %v391 = vmax.f32 %v387, %v390
          %v392 = vsub.f32 %v387, %v391
          %v393 = vmul.f32 %v392, 1.442695
          %v394 = vpow.pop %v393
          %396 = vset.pattern.permute.xlu0 0
          %397 = vperm.xlu0 %396, %v391
          %v398 = vpop.permute.xlu0 %397
          %v400 = vsub.f32 %v386, %v398
          %v401 = vmul.f32 %v400, 1.442695
          %v402 = vpow.pop %v401
          %v403 = vld [vmem:[#allocation3] sm:$0xff]
          %v404 = vmul.f32 %v394, %v403
          %v405 = vsel %vm339, %v402, 0.0
          %406 = vadd.xlane.f32.xlu0 %v405
          %v407 = vpop.xlane.xlu0 %406
          %v408 = vadd.f32 %v404, %v407
          %vm409 = vcmask 7168
          %410 = vst.msk [vmem:[#allocation3] sm:$0xff] %vm409, %v408
          %v411 = vld [vmem:[#allocation4] sm:$0xff]
          %413 = vset.pattern.permute.xlu0 0
          %414 = vperm.xlu0 %413, %v394
          %v415 = vpop.permute.xlu0 %414
          %v417 = vmul.f32 %v415, %v411
          %v418 = vpack.c.bf16 %v402, %v402
          %v419 = vld [vmem:[%s266] sm:$0xf]
          %v421 = vsel %vm339, %v418, 0
          %vm423 = vcmask 1043456
          %v425 = vsel %vm423, %v419, 0
          %427 = vmatprep.subr.bf16.mxu0 0
          %428 = vmatpush1.bf16.msra.mxu0 %v425
          %429 = vmatprep.subr.bf16.mxu0 0
          %430 = vmatpush1.bf16.msra.mxu0 0
          %431 = vmatprep.subr.bf16.mxu0 0
          %432 = vmatpush1.bf16.msra.mxu0 0
          %433 = vmatprep.subr.bf16.mxu0 0
          %434 = vmatpush1.bf16.msra.mxu0 0
          %435 = vmatprep.subr.bf16.mxu0 0
          %436 = vmatpush1.bf16.msra.mxu0 0
          %437 = vmatprep.subr.bf16.mxu0 0
          %438 = vmatpush1.bf16.msra.mxu0 0
          %439 = vmatprep.subr.bf16.mxu0 0
          %440 = vmatpush1.bf16.msra.mxu0 0
          %441 = vmatprep.subr.bf16.mxu0 0
          %442 = vmatpush1.bf16.msra.mxu0 0
          %443 = vmatprep.subr.bf16.mxu0 0
          %444 = vmatpush1.bf16.msra.mxu0 0
          %445 = vmatprep.subr.bf16.mxu0 0
          %446 = vmatpush1.bf16.msra.mxu0 0
          %447 = vmatprep.subr.bf16.mxu0 0
          %448 = vmatpush1.bf16.msra.mxu0 0
          %449 = vmatprep.subr.bf16.mxu0 0
          %450 = vmatpush1.bf16.msra.mxu0 0
          %451 = vmatprep.subr.bf16.mxu0 0
          %452 = vmatpush1.bf16.msra.mxu0 0
          %453 = vmatprep.subr.bf16.mxu0 0
          %454 = vmatpush1.bf16.msra.mxu0 0
          %455 = vmatprep.subr.bf16.mxu0 0
          %456 = vmatpush1.bf16.msra.mxu0 0
          %457 = vmatprep.subr.bf16.mxu0 0
          %458 = vmatpush1.bf16.msra.mxu0 0
          %459 = vmatprep.mubr.bf16.mxu0 0
          %460 = vmatmul.mubr.bf16.gmra.mrb[0].mxu0 %v421
          %v461 = vpop.f32.mrb[0].mxu0
          %v462 = vadd.f32 0.0, %v461
          %v463 = vpop.f32.mrb[0].mxu0
          %v464 = vpop.f32.mrb[0].mxu0
          %v465 = vpop.f32.mrb[0].mxu0
          %466 = vdwg.mxu0
          %v467 = vadd.f32 %v417, %v462
          %468 = vst.msk [vmem:[#allocation4] sm:$0xff] %vm339, %v467
          %469 = vst.msk [vmem:[#allocation2] sm:$0xff] %vm409, %v391
          %v470 = vld [vmem:[%s248] sm:$0xf]
          %v471 = vld [vmem:[%s257] sm:$0xf]
          %v473 = vunpack.c.l.b16 %v470
          %v474 = vpack.c.b16 %v473, %v473
          %475 = vrot.lane.b32.xlu0 %v474, 120
          %v476 = vpop.permute.xlu0 %475
          %v478 = vunpack.c.l.b16 %v471
          %v479 = vpack.c.b16 %v478, %v478
          %480 = vrot.lane.b32.xlu0 %v479, 120
          %v481 = vpop.permute.xlu0 %480
          %v483 = vsel %vm339, %v476, 0
          %v486 = vsel %vm339, %v481, 0
          %488 = vmatprep.subr.bf16.mxu0 0
          %489 = vmatpush1.bf16.xpose.msra.mxu0 %v486
          %490 = vmatprep.subr.bf16.mxu0 0
          %491 = vmatpush1.bf16.xpose.msra.mxu0 0
          %492 = vmatprep.subr.bf16.mxu0 0
          %493 = vmatpush1.bf16.xpose.msra.mxu0 0
          %494 = vmatprep.subr.bf16.mxu0 0
          %495 = vmatpush1.bf16.xpose.msra.mxu0 0
          %496 = vmatprep.subr.bf16.mxu0 0
          %497 = vmatpush1.bf16.xpose.msra.mxu0 0
          %498 = vmatprep.subr.bf16.mxu0 0
          %499 = vmatpush1.bf16.xpose.msra.mxu0 0
          %500 = vmatprep.subr.bf16.mxu0 0
          %501 = vmatpush1.bf16.xpose.msra.mxu0 0
          %502 = vmatprep.subr.bf16.mxu0 0
          %503 = vmatpush1.bf16.xpose.msra.mxu0 0
          %504 = vmatprep.subr.bf16.mxu0 0
          %505 = vmatpush1.bf16.xpose.msra.mxu0 0
          %506 = vmatprep.subr.bf16.mxu0 0
          %507 = vmatpush1.bf16.xpose.msra.mxu0 0
          %508 = vmatprep.subr.bf16.mxu0 0
          %509 = vmatpush1.bf16.xpose.msra.mxu0 0
          %510 = vmatprep.subr.bf16.mxu0 0
          %511 = vmatpush1.bf16.xpose.msra.mxu0 0
          %512 = vmatprep.subr.bf16.mxu0 0
          %513 = vmatpush1.bf16.xpose.msra.mxu0 0
          %514 = vmatprep.subr.bf16.mxu0 0
          %515 = vmatpush1.bf16.xpose.msra.mxu0 0
          %516 = vmatprep.subr.bf16.mxu0 0
          %517 = vmatpush1.bf16.xpose.msra.mxu0 0
          %518 = vmatprep.subr.bf16.mxu0 0
          %519 = vmatpush1.bf16.xpose.msra.mxu0 0
          %520 = vmatprep.mubr.bf16.mxu0 0
          %521 = vmatmul.mubr.bf16.gmra.mrb[0].mxu0 %v483
          %v522 = vpop.f32.mrb[0].mxu0
          %v523 = vadd.f32 0.0, %v522
          %v524 = vpop.f32.mrb[0].mxu0
          %v525 = vpop.f32.mrb[0].mxu0
          %v526 = vpop.f32.mrb[0].mxu0
          %527 = vdwg.mxu0
          %v528 = vsel %vm336, %v523, -1e+30
          %s529 = scalar_lea.vmem [#allocation2], 8
          %v530 = vld [vmem:[%s529] sm:$0xff]
          %v531 = vsel %vm339, %v528, -inf
          %532 = vmax.xlane.f32.xlu0 %v531
          %v533 = vpop.xlane.xlu0 %532
          %v534 = vmax.f32 %v530, %v533
          %v535 = vsub.f32 %v530, %v534
          %v536 = vmul.f32 %v535, 1.442695
          %v537 = vpow.pop %v536
          %539 = vset.pattern.permute.xlu0 0
          %540 = vperm.xlu0 %539, %v534
          %v541 = vpop.permute.xlu0 %540
          %v543 = vsub.f32 %v528, %v541
          %v544 = vmul.f32 %v543, 1.442695
          %v545 = vpow.pop %v544
          %s546 = scalar_lea.vmem [#allocation3], 8
          %v547 = vld [vmem:[%s546] sm:$0xff]
          %v548 = vmul.f32 %v537, %v547
          %v549 = vsel %vm339, %v545, 0.0
          %550 = vadd.xlane.f32.xlu0 %v549
          %v551 = vpop.xlane.xlu0 %550
          %v552 = vadd.f32 %v548, %v551
          %553 = vst.msk [vmem:[%s546] sm:$0xff] %vm409, %v552
          %s554 = scalar_lea.vmem [#allocation4], 8
          %v555 = vld [vmem:[%s554] sm:$0xff]
          %557 = vset.pattern.permute.xlu0 0
          %558 = vperm.xlu0 %557, %v537
          %v559 = vpop.permute.xlu0 %558
          %v561 = vmul.f32 %v559, %v555
          %v562 = vpack.c.bf16 %v545, %v545
          %v563 = vld [vmem:[%s266] sm:$0xf]
          %v565 = vunpack.c.l.b16 %v563
          %v566 = vpack.c.b16 %v565, %v565
          %567 = vrot.lane.b32.xlu0 %v566, 120
          %v568 = vpop.permute.xlu0 %567
          %v570 = vsel %vm339, %v562, 0
          %v573 = vsel %vm423, %v568, 0
          %575 = vmatprep.subr.bf16.mxu0 0
          %576 = vmatpush1.bf16.msra.mxu0 %v573
          %577 = vmatprep.subr.bf16.mxu0 0
          %578 = vmatpush1.bf16.msra.mxu0 0
          %579 = vmatprep.subr.bf16.mxu0 0
          %580 = vmatpush1.bf16.msra.mxu0 0
          %581 = vmatprep.subr.bf16.mxu0 0
          %582 = vmatpush1.bf16.msra.mxu0 0
          %583 = vmatprep.subr.bf16.mxu0 0
          %584 = vmatpush1.bf16.msra.mxu0 0
          %585 = vmatprep.subr.bf16.mxu0 0
          %586 = vmatpush1.bf16.msra.mxu0 0
          %587 = vmatprep.subr.bf16.mxu0 0
          %588 = vmatpush1.bf16.msra.mxu0 0
          %589 = vmatprep.subr.bf16.mxu0 0
          %590 = vmatpush1.bf16.msra.mxu0 0
          %591 = vmatprep.subr.bf16.mxu0 0
          %592 = vmatpush1.bf16.msra.mxu0 0
          %593 = vmatprep.subr.bf16.mxu0 0
          %594 = vmatpush1.bf16.msra.mxu0 0
          %595 = vmatprep.subr.bf16.mxu0 0
          %596 = vmatpush1.bf16.msra.mxu0 0
          %597 = vmatprep.subr.bf16.mxu0 0
          %598 = vmatpush1.bf16.msra.mxu0 0
          %599 = vmatprep.subr.bf16.mxu0 0
          %600 = vmatpush1.bf16.msra.mxu0 0
          %601 = vmatprep.subr.bf16.mxu0 0
          %602 = vmatpush1.bf16.msra.mxu0 0
          %603 = vmatprep.subr.bf16.mxu0 0
          %604 = vmatpush1.bf16.msra.mxu0 0
          %605 = vmatprep.subr.bf16.mxu0 0
          %606 = vmatpush1.bf16.msra.mxu0 0
          %607 = vmatprep.mubr.bf16.mxu0 0
          %608 = vmatmul.mubr.bf16.gmra.mrb[0].mxu0 %v570
          %v609 = vpop.f32.mrb[0].mxu0
          %v610 = vadd.f32 0.0, %v609
          %v611 = vpop.f32.mrb[0].mxu0
          %v612 = vpop.f32.mrb[0].mxu0
          %v613 = vpop.f32.mrb[0].mxu0
          %614 = vdwg.mxu0
          %v615 = vadd.f32 %v561, %v610
          %616 = vst.msk [vmem:[%s554] sm:$0xff] %vm339, %v615
          %617 = vst.msk [vmem:[%s529] sm:$0xff] %vm409, %v534
          %v618 = vld [vmem:[%s248] sm:$0xf]
          %v619 = vld [vmem:[%s257] sm:$0xf]
          %v621 = vunpack.c.l.b16 %v618
          %v622 = vpack.c.b16 %v621, %v621
          %623 = vrot.lane.b32.xlu0 %v622, 112
          %v624 = vpop.permute.xlu0 %623
          %v626 = vunpack.c.l.b16 %v619
          %v627 = vpack.c.b16 %v626, %v626
          %628 = vrot.lane.b32.xlu0 %v627, 112
          %v629 = vpop.permute.xlu0 %628
          %v631 = vsel %vm339, %v624, 0
          %v634 = vsel %vm339, %v629, 0
          %636 = vmatprep.subr.bf16.mxu0 0
          %637 = vmatpush1.bf16.xpose.msra.mxu0 %v634
          %638 = vmatprep.subr.bf16.mxu0 0
          %639 = vmatpush1.bf16.xpose.msra.mxu0 0
          %640 = vmatprep.subr.bf16.mxu0 0
          %641 = vmatpush1.bf16.xpose.msra.mxu0 0
          %642 = vmatprep.subr.bf16.mxu0 0
          %643 = vmatpush1.bf16.xpose.msra.mxu0 0
          %644 = vmatprep.subr.bf16.mxu0 0
          %645 = vmatpush1.bf16.xpose.msra.mxu0 0
          %646 = vmatprep.subr.bf16.mxu0 0
          %647 = vmatpush1.bf16.xpose.msra.mxu0 0
          %648 = vmatprep.subr.bf16.mxu0 0
          %649 = vmatpush1.bf16.xpose.msra.mxu0 0
          %650 = vmatprep.subr.bf16.mxu0 0
          %651 = vmatpush1.bf16.xpose.msra.mxu0 0
          %652 = vmatprep.subr.bf16.mxu0 0
          %653 = vmatpush1.bf16.xpose.msra.mxu0 0
          %654 = vmatprep.subr.bf16.mxu0 0
          %655 = vmatpush1.bf16.xpose.msra.mxu0 0
          %656 = vmatprep.subr.bf16.mxu0 0
          %657 = vmatpush1.bf16.xpose.msra.mxu0 0
          %658 = vmatprep.subr.bf16.mxu0 0
          %659 = vmatpush1.bf16.xpose.msra.mxu0 0
          %660 = vmatprep.subr.bf16.mxu0 0
          %661 = vmatpush1.bf16.xpose.msra.mxu0 0
          %662 = vmatprep.subr.bf16.mxu0 0
          %663 = vmatpush1.bf16.xpose.msra.mxu0 0
          %664 = vmatprep.subr.bf16.mxu0 0
          %665 = vmatpush1.bf16.xpose.msra.mxu0 0
          %666 = vmatprep.subr.bf16.mxu0 0
          %667 = vmatpush1.bf16.xpose.msra.mxu0 0
          %668 = vmatprep.mubr.bf16.mxu0 0
          %669 = vmatmul.mubr.bf16.gmra.mrb[0].mxu0 %v631
          %v670 = vpop.f32.mrb[0].mxu0
          %v671 = vadd.f32 0.0, %v670
          %v672 = vpop.f32.mrb[0].mxu0
          %v673 = vpop.f32.mrb[0].mxu0
          %v674 = vpop.f32.mrb[0].mxu0
          %675 = vdwg.mxu0
          %v676 = vsel %vm336, %v671, -1e+30
          %s677 = scalar_lea.vmem [#allocation2], 16
          %v678 = vld [vmem:[%s677] sm:$0xff]
          %v679 = vsel %vm339, %v676, -inf
          %680 = vmax.xlane.f32.xlu0 %v679
          %v681 = vpop.xlane.xlu0 %680
          %v682 = vmax.f32 %v678, %v681
          %v683 = vsub.f32 %v678, %v682
          %v684 = vmul.f32 %v683, 1.442695
          %v685 = vpow.pop %v684
          %687 = vset.pattern.permute.xlu0 0
          %688 = vperm.xlu0 %687, %v682
          %v689 = vpop.permute.xlu0 %688
          %v691 = vsub.f32 %v676, %v689
          %v692 = vmul.f32 %v691, 1.442695
          %v693 = vpow.pop %v692
          %s694 = scalar_lea.vmem [#allocation3], 16
          %v695 = vld [vmem:[%s694] sm:$0xff]
          %v696 = vmul.f32 %v685, %v695
          %v697 = vsel %vm339, %v693, 0.0
          %698 = vadd.xlane.f32.xlu0 %v697
          %v699 = vpop.xlane.xlu0 %698
          %v700 = vadd.f32 %v696, %v699
          %701 = vst.msk [vmem:[%s694] sm:$0xff] %vm409, %v700
          %s702 = scalar_lea.vmem [#allocation4], 16
          %v703 = vld [vmem:[%s702] sm:$0xff]
          %705 = vset.pattern.permute.xlu0 0
          %706 = vperm.xlu0 %705, %v685
          %v707 = vpop.permute.xlu0 %706
          %v709 = vmul.f32 %v707, %v703
          %v710 = vpack.c.bf16 %v693, %v693
          %v711 = vld [vmem:[%s266] sm:$0xf]
          %v713 = vunpack.c.l.b16 %v711
          %v714 = vpack.c.b16 %v713, %v713
          %715 = vrot.lane.b32.xlu0 %v714, 112
          %v716 = vpop.permute.xlu0 %715
          %v718 = vsel %vm339, %v710, 0
          %v721 = vsel %vm423, %v716, 0
          %723 = vmatprep.subr.bf16.mxu0 0
          %724 = vmatpush1.bf16.msra.mxu0 %v721
          %725 = vmatprep.subr.bf16.mxu0 0
          %726 = vmatpush1.bf16.msra.mxu0 0
          %727 = vmatprep.subr.bf16.mxu0 0
          %728 = vmatpush1.bf16.msra.mxu0 0
          %729 = vmatprep.subr.bf16.mxu0 0
          %730 = vmatpush1.bf16.msra.mxu0 0
          %731 = vmatprep.subr.bf16.mxu0 0
          %732 = vmatpush1.bf16.msra.mxu0 0
          %733 = vmatprep.subr.bf16.mxu0 0
          %734 = vmatpush1.bf16.msra.mxu0 0
          %735 = vmatprep.subr.bf16.mxu0 0
          %736 = vmatpush1.bf16.msra.mxu0 0
          %737 = vmatprep.subr.bf16.mxu0 0
          %738 = vmatpush1.bf16.msra.mxu0 0
          %739 = vmatprep.subr.bf16.mxu0 0
          %740 = vmatpush1.bf16.msra.mxu0 0
          %741 = vmatprep.subr.bf16.mxu0 0
          %742 = vmatpush1.bf16.msra.mxu0 0
          %743 = vmatprep.subr.bf16.mxu0 0
          %744 = vmatpush1.bf16.msra.mxu0 0
          %745 = vmatprep.subr.bf16.mxu0 0
          %746 = vmatpush1.bf16.msra.mxu0 0
          %747 = vmatprep.subr.bf16.mxu0 0
          %748 = vmatpush1.bf16.msra.mxu0 0
          %749 = vmatprep.subr.bf16.mxu0 0
          %750 = vmatpush1.bf16.msra.mxu0 0
          %751 = vmatprep.subr.bf16.mxu0 0
          %752 = vmatpush1.bf16.msra.mxu0 0
          %753 = vmatprep.subr.bf16.mxu0 0
          %754 = vmatpush1.bf16.msra.mxu0 0
          %755 = vmatprep.mubr.bf16.mxu0 0
          %756 = vmatmul.mubr.bf16.gmra.mrb[0].mxu0 %v718
          %v757 = vpop.f32.mrb[0].mxu0
          %v758 = vadd.f32 0.0, %v757
          %v759 = vpop.f32.mrb[0].mxu0
          %v760 = vpop.f32.mrb[0].mxu0
          %v761 = vpop.f32.mrb[0].mxu0
          %762 = vdwg.mxu0
          %v763 = vadd.f32 %v709, %v758
          %764 = vst.msk [vmem:[%s702] sm:$0xff] %vm339, %v763
          %765 = vst.msk [vmem:[%s677] sm:$0xff] %vm409, %v682
          %v766 = vld [vmem:[%s248] sm:$0xf]
          %v767 = vld [vmem:[%s257] sm:$0xf]
          %v769 = vunpack.c.l.b16 %v766
          %v770 = vpack.c.b16 %v769, %v769
          %771 = vrot.lane.b32.xlu0 %v770, 104
          %v772 = vpop.permute.xlu0 %771
          %v774 = vunpack.c.l.b16 %v767
          %v775 = vpack.c.b16 %v774, %v774
          %776 = vrot.lane.b32.xlu0 %v775, 104
          %v777 = vpop.permute.xlu0 %776
          %v779 = vsel %vm339, %v772, 0
          %v782 = vsel %vm339, %v777, 0
          %784 = vmatprep.subr.bf16.mxu0 0
          %785 = vmatpush1.bf16.xpose.msra.mxu0 %v782
          %786 = vmatprep.subr.bf16.mxu0 0
          %787 = vmatpush1.bf16.xpose.msra.mxu0 0
          %788 = vmatprep.subr.bf16.mxu0 0
          %789 = vmatpush1.bf16.xpose.msra.mxu0 0
          %790 = vmatprep.subr.bf16.mxu0 0
          %791 = vmatpush1.bf16.xpose.msra.mxu0 0
          %792 = vmatprep.subr.bf16.mxu0 0
          %793 = vmatpush1.bf16.xpose.msra.mxu0 0
          %794 = vmatprep.subr.bf16.mxu0 0
          %795 = vmatpush1.bf16.xpose.msra.mxu0 0
          %796 = vmatprep.subr.bf16.mxu0 0
          %797 = vmatpush1.bf16.xpose.msra.mxu0 0
          %798 = vmatprep.subr.bf16.mxu0 0
          %799 = vmatpush1.bf16.xpose.msra.mxu0 0
          %800 = vmatprep.subr.bf16.mxu0 0
          %801 = vmatpush1.bf16.xpose.msra.mxu0 0
          %802 = vmatprep.subr.bf16.mxu0 0
          %803 = vmatpush1.bf16.xpose.msra.mxu0 0
          %804 = vmatprep.subr.bf16.mxu0 0
          %805 = vmatpush1.bf16.xpose.msra.mxu0 0
          %806 = vmatprep.subr.bf16.mxu0 0
          %807 = vmatpush1.bf16.xpose.msra.mxu0 0
          %808 = vmatprep.subr.bf16.mxu0 0
          %809 = vmatpush1.bf16.xpose.msra.mxu0 0
          %810 = vmatprep.subr.bf16.mxu0 0
          %811 = vmatpush1.bf16.xpose.msra.mxu0 0
          %812 = vmatprep.subr.bf16.mxu0 0
          %813 = vmatpush1.bf16.xpose.msra.mxu0 0
          %814 = vmatprep.subr.bf16.mxu0 0
          %815 = vmatpush1.bf16.xpose.msra.mxu0 0
          %816 = vmatprep.mubr.bf16.mxu0 0
          %817 = vmatmul.mubr.bf16.gmra.mrb[0].mxu0 %v779
          %v818 = vpop.f32.mrb[0].mxu0
          %v819 = vadd.f32 0.0, %v818
          %v820 = vpop.f32.mrb[0].mxu0
          %v821 = vpop.f32.mrb[0].mxu0
          %v822 = vpop.f32.mrb[0].mxu0
          %823 = vdwg.mxu0
          %v824 = vsel %vm336, %v819, -1e+30
          %s825 = scalar_lea.vmem [#allocation2], 24
          %v826 = vld [vmem:[%s825] sm:$0xff]
          %v827 = vsel %vm339, %v824, -inf
          %828 = vmax.xlane.f32.xlu0 %v827
          %v829 = vpop.xlane.xlu0 %828
          %v830 = vmax.f32 %v826, %v829
          %v831 = vsub.f32 %v826, %v830
          %v832 = vmul.f32 %v831, 1.442695
          %v833 = vpow.pop %v832
          %835 = vset.pattern.permute.xlu0 0
          %836 = vperm.xlu0 %835, %v830
          %v837 = vpop.permute.xlu0 %836
          %v839 = vsub.f32 %v824, %v837
          %v840 = vmul.f32 %v839, 1.442695
          %v841 = vpow.pop %v840
          %s842 = scalar_lea.vmem [#allocation3], 24
          %v843 = vld [vmem:[%s842] sm:$0xff]
          %v844 = vmul.f32 %v833, %v843
          %v845 = vsel %vm339, %v841, 0.0
          %846 = vadd.xlane.f32.xlu0 %v845
          %v847 = vpop.xlane.xlu0 %846
          %v848 = vadd.f32 %v844, %v847
          %849 = vst.msk [vmem:[%s842] sm:$0xff] %vm409, %v848
          %s850 = scalar_lea.vmem [#allocation4], 24
          %v851 = vld [vmem:[%s850] sm:$0xff]
          %853 = vset.pattern.permute.xlu0 0
          %854 = vperm.xlu0 %853, %v833
          %v855 = vpop.permute.xlu0 %854
          %v857 = vmul.f32 %v855, %v851
          %v858 = vpack.c.bf16 %v841, %v841
          %v859 = vld [vmem:[%s266] sm:$0xf]
          %v861 = vunpack.c.l.b16 %v859
          %v862 = vpack.c.b16 %v861, %v861
          %863 = vrot.lane.b32.xlu0 %v862, 104
          %v864 = vpop.permute.xlu0 %863
          %v866 = vsel %vm339, %v858, 0
          %v869 = vsel %vm423, %v864, 0
          %871 = vmatprep.subr.bf16.mxu0 0
          %872 = vmatpush1.bf16.msra.mxu0 %v869
          %873 = vmatprep.subr.bf16.mxu0 0
          %874 = vmatpush1.bf16.msra.mxu0 0
          %875 = vmatprep.subr.bf16.mxu0 0
          %876 = vmatpush1.bf16.msra.mxu0 0
          %877 = vmatprep.subr.bf16.mxu0 0
          %878 = vmatpush1.bf16.msra.mxu0 0
          %879 = vmatprep.subr.bf16.mxu0 0
          %880 = vmatpush1.bf16.msra.mxu0 0
          %881 = vmatprep.subr.bf16.mxu0 0
          %882 = vmatpush1.bf16.msra.mxu0 0
          %883 = vmatprep.subr.bf16.mxu0 0
          %884 = vmatpush1.bf16.msra.mxu0 0
          %885 = vmatprep.subr.bf16.mxu0 0
          %886 = vmatpush1.bf16.msra.mxu0 0
          %887 = vmatprep.subr.bf16.mxu0 0
          %888 = vmatpush1.bf16.msra.mxu0 0
          %889 = vmatprep.subr.bf16.mxu0 0
          %890 = vmatpush1.bf16.msra.mxu0 0
          %891 = vmatprep.subr.bf16.mxu0 0
          %892 = vmatpush1.bf16.msra.mxu0 0
          %893 = vmatprep.subr.bf16.mxu0 0
          %894 = vmatpush1.bf16.msra.mxu0 0
          %895 = vmatprep.subr.bf16.mxu0 0
          %896 = vmatpush1.bf16.msra.mxu0 0
          %897 = vmatprep.subr.bf16.mxu0 0
          %898 = vmatpush1.bf16.msra.mxu0 0
          %899 = vmatprep.subr.bf16.mxu0 0
          %900 = vmatpush1.bf16.msra.mxu0 0
          %901 = vmatprep.subr.bf16.mxu0 0
          %902 = vmatpush1.bf16.msra.mxu0 0
          %903 = vmatprep.mubr.bf16.mxu0 0
          %904 = vmatmul.mubr.bf16.gmra.mrb[0].mxu0 %v866
          %v905 = vpop.f32.mrb[0].mxu0
          %v906 = vadd.f32 0.0, %v905
          %v907 = vpop.f32.mrb[0].mxu0
          %v908 = vpop.f32.mrb[0].mxu0
          %v909 = vpop.f32.mrb[0].mxu0
          %910 = vdwg.mxu0
          %v911 = vadd.f32 %v857, %v906
          %912 = vst.msk [vmem:[%s850] sm:$0xff] %vm339, %v911
          %913 = vst.msk [vmem:[%s825] sm:$0xff] %vm409, %v830
        $region52: #{gpt_forward.18} parent=31 // pred_fallthru
          _
        // Predicated region
        $region53: #{gpt_forward.18} parent=31 // pred_check
          %p914 = pneg %p304
        $region54: #{gpt_forward.18} parent=31 // pred_check_branch
          %916 = sbr.rel (%p914) target = $region56
        $region55: #{gpt_forward.18} parent=31 // pred_region
          %v917 = vld [vmem:[#allocation4] sm:$0xff]
          %v918 = vld [vmem:[#allocation3] sm:$0xff]
          %920 = vset.pattern.permute.xlu0 0
          %921 = vperm.xlu0 %920, %v918
          %v922 = vpop.permute.xlu0 %921
          %v924 = vrcp.pop %v922
          %v925 = vmul.f32 %v917, %v924
          %s926 = scalar_lea.vmem [#allocation4], 8
          %v927 = vld [vmem:[%s926] sm:$0xff]
          %s928 = scalar_lea.vmem [#allocation3], 8
          %v929 = vld [vmem:[%s928] sm:$0xff]
          %931 = vset.pattern.permute.xlu0 0
          %932 = vperm.xlu0 %931, %v929
          %v933 = vpop.permute.xlu0 %932
          %v935 = vrcp.pop %v933
          %v936 = vmul.f32 %v927, %v935
          %s937 = scalar_lea.vmem [#allocation4], 16
          %v938 = vld [vmem:[%s937] sm:$0xff]
          %s939 = scalar_lea.vmem [#allocation3], 16
          %v940 = vld [vmem:[%s939] sm:$0xff]
          %942 = vset.pattern.permute.xlu0 0
          %943 = vperm.xlu0 %942, %v940
          %v944 = vpop.permute.xlu0 %943
          %v946 = vrcp.pop %v944
          %v947 = vmul.f32 %v938, %v946
          %s948 = scalar_lea.vmem [#allocation4], 24
          %v949 = vld [vmem:[%s948] sm:$0xff]
          %s950 = scalar_lea.vmem [#allocation3], 24
          %v951 = vld [vmem:[%s950] sm:$0xff]
          %953 = vset.pattern.permute.xlu0 0
          %954 = vperm.xlu0 %953, %v951
          %v955 = vpop.permute.xlu0 %954
          %v957 = vrcp.pop %v955
          %v958 = vmul.f32 %v949, %v957
          %960 = vrot.lane.b32.xlu0 %v936, 8
          %v961 = vpop.permute.xlu0 %960
          %964 = vrot.lane.b32.xlu0 %v947, 16
          %v965 = vpop.permute.xlu0 %964
          %968 = vrot.lane.b32.xlu0 %v958, 24
          %v969 = vpop.permute.xlu0 %968
          %vm971 = vcmask 64512
          %v972 = vsel %vm971, %v925, %v961
          %vm973 = vcmask 130048
          %v974 = vsel %vm973, %v972, %v965
          %vm975 = vcmask 195584
          %v976 = vsel %vm975, %v974, %v969
          %v977 = vpack.c.bf16 %v976, %v976
          %vm978 = vcmask 257024
          %979 = vst.msk [vmem:[%s298] sm:$0xf] %vm978, %v977
        $region56: #{gpt_forward.18} parent=31 // pred_fallthru
          _
        %s980 = sand.u32 %s144, 1
        %s981 = scalar_lea.sflag [#allocation7], %s980
        %s982 = sand.u32 %s144, 1
        %s983 = smul.addr %s982, 4
        %s984 = scalar_lea.vmem [#allocation11], %s983
        // Predicated region
        $region57: #{gpt_forward.18} parent=31 // pred_check
          %p985 = pneg %p154
        $region58: #{gpt_forward.18} parent=31 // pred_check_branch
          %987 = sbr.rel (%p985) target = $region60
        $region59: #{gpt_forward.18} parent=31 // pred_region
          %s989 = ssub.s32 64, 64
          %990 = vsyncadd %s981, %s989
          %s991 = sadd.s32 %s29, %s28
          %s992 = smul.addr %s991, 64
          %s993 = scalar_lea.hbm %s3, %s992
          %s995 = sshll.u32 %s984, 4
          %s996 = int_to_ptr.vmem [resolvable:$true] %s995
          %998 = dma.vmem_to_hbm [thread:$0]  %s996, 64, %s993, %s981
        $region60: #{gpt_forward.18} parent=31 // pred_fallthru
          _
      $region32: #{gpt_forward.18} parent=5 // pred_fallthru
        _
      %p999 = scmp.le.s32.totalorder 2, %s18
      // Predicated region
      $region61: #{gpt_forward.18} parent=5 // pred_check
        %p1000 = pneg %p999
      $region62: #{gpt_forward.18} parent=5 // pred_check_branch
        %1002 = sbr.rel (%p1000) target = $region64
      $region63: #{gpt_forward.18} parent=5 // pred_region
        %s1003 = ssub.s32 %s18, 2
        // Predicated region
        $region65: #{gpt_forward.18} parent=63 // pred_check
          %p1004 = pneg %p160
        $region66: #{gpt_forward.18} parent=63 // pred_check_branch
          %1006 = sbr.rel (%p1004) target = $region68
        $region67: #{gpt_forward.18} parent=63 // pred_region
          %s1007 = sand.u32 %s145, 1
          %s1008 = scalar_lea.sflag [#allocation7], %s1007
          %s1009 = sand.u32 %s145, 1
          %s1010 = smul.addr %s1009, 4
          %s1011 = scalar_lea.vmem [#allocation11], %s1010
          %1012 = dma.done %s1008, 64
        $region68: #{gpt_forward.18} parent=63 // pred_fallthru
          _
      $region64: #{gpt_forward.18} parent=5 // pred_fallthru
        _
    $region6: #{gpt_forward.18} parent=1 // loop_footer
      %s22 = sadd.s32 1, %s18
    $region7: #{gpt_forward.18} parent=1 // loop_footer_branch
      %17 = sbr.rel target = $region3
    $region8: #{gpt_forward.18} parent=1 // loop_exit
      _
    %1013 = vsyncpa [#allocation6], 1
    %s1014 = scalar_lea.sflag [#allocation6], 1
    %1015 = vsyncpa %s1014, 1
    %1016 = vsyncpa [#allocation9], 1
    %s1017 = scalar_lea.sflag [#allocation9], 1
    %1018 = vsyncpa %s1017, 1
    %1019 = vsyncpa [#allocation7], 1
    %s1020 = scalar_lea.sflag [#allocation7], 1
    %1021 = vsyncpa %s1020, 1

// kernel: gpt_forward.20
$region0: #{gpt_forward.20}
  #allocation0 [shape = 'u32[]', space=smem, size = 0x4, offset = 0x4, fixed_abs, tag = 'smem constant byte address 0x4 - core index']
  #allocation1 [shape = 'u32[144,128]{1,0:T(1,128)}', space=vmem, size = 0x12000, scoped, tag = 'internal scratch']
  #allocation2 [shape = 'f32[16,128]{1,0:T(8,128)}', space=vmem, size = 0x2000, scoped, tag = 'scratch operand']
  %s0 = inlined_call_operand.hbm [shape: bf16[16,32], index: 0, kind: input, shape index: {}]
  %s1 = inlined_call_operand.hbm [shape: bf16[32,128], index: 1, kind: input, shape index: {}]
  %s2 = inlined_call_operand.hbm [shape: f32[1,128], index: 2, kind: input, shape index: {}]
  %s3 = inlined_call_operand.hbm [shape: bf16[16,128], index: 3, kind: output, shape index: {}]
  %s4 = sld [smem:[#allocation0]]
  $region42: #{gpt_forward.20} parent=0
    _
  %s6 = ssub.s32 1, %s4
  %s7 = scalar_select 0, %s6, %s4
  $region1: #{gpt_forward.20} parent=0
    #allocation3 [shape = 'u8[4096]{0}', space=vmem, size = 0x1000, scoped, tag = 'input window, operand 0, single buffered']
    #allocation4 [shape = 's32[1]{0}', space=sflag, size = 0x4, scoped, tag = 'scoped memory for gpt_forward.20']
    #allocation5 [shape = 's32[1]{0}', space=sflag, size = 0x4, scoped, tag = 'scoped memory for gpt_forward.20']
    #allocation6 [shape = 'u8[8192]{0}', space=vmem, size = 0x2000, scoped, tag = 'input window, operand 1, single buffered']
    #allocation7 [shape = 's32[1]{0}', space=sflag, size = 0x4, scoped, tag = 'scoped memory for gpt_forward.20']
    #allocation8 [shape = 'u8[512]{0}', space=vmem, size = 0x400, scoped, tag = 'input window, operand 2, single buffered']
    #allocation9 [shape = 'u8[4096]{0}', space=vmem, size = 0x1000, scoped, tag = 'output window, operand 0, single buffered']
    %8 = vsyncpa [#allocation4], 0
    %9 = vsyncpa [#allocation7], 0
    %10 = vsyncpa [#allocation5], 0
    // Predicated region
    $region2: #{gpt_forward.20} parent=1 // pred_check
      _
    $region3: #{gpt_forward.20} parent=1 // pred_check_branch
      %12 = sbr.rel (0) target = $region5
    $region4: #{gpt_forward.20} parent=1 // pred_region
      %s14 = ssub.s32 128, 128
      %15 = vsyncadd [#allocation4], %s14
      %s16 = sshll.u32 [#allocation3], 4
      %s17 = int_to_ptr.vmem [resolvable:$true] %s16
      %22 = dma.hbm_to_vmem [thread:$0]  %s0, 128, %s17, [#allocation4], 64, 64, 4
    $region5: #{gpt_forward.20} parent=1 // pred_fallthru
      _
    // Predicated region
    $region6: #{gpt_forward.20} parent=1 // pred_check
      _
    $region7: #{gpt_forward.20} parent=1 // pred_check_branch
      %24 = sbr.rel (0) target = $region9
    $region8: #{gpt_forward.20} parent=1 // pred_region
      %s26 = ssub.s32 256, 256
      %27 = vsyncadd [#allocation7], %s26
      %s28 = sshll.u32 [#allocation6], 4
      %s29 = int_to_ptr.vmem [resolvable:$true] %s28
      %34 = dma.hbm_to_vmem [thread:$0]  %s1, 256, %s29, [#allocation7], 64, 64, 4
    $region9: #{gpt_forward.20} parent=1 // pred_fallthru
      _
    // Predicated region
    $region10: #{gpt_forward.20} parent=1 // pred_check
      _
    $region11: #{gpt_forward.20} parent=1 // pred_check_branch
      %36 = sbr.rel (0) target = $region13
    $region12: #{gpt_forward.20} parent=1 // pred_region
      %s38 = ssub.s32 16, 16
      %39 = vsyncadd [#allocation7], %s38
      %s41 = sshll.u32 [#allocation8], 4
      %s42 = int_to_ptr.vmem [resolvable:$true] %s41
      %44 = dma.hbm_to_vmem [thread:$0]  %s2, 16, %s42, [#allocation7]
    $region13: #{gpt_forward.20} parent=1 // pred_fallthru
      _
    // Predicated region
    $region14: #{gpt_forward.20} parent=1 // pred_check
      _
    $region15: #{gpt_forward.20} parent=1 // pred_check_branch
      %46 = sbr.rel (0) target = $region17
    $region16: #{gpt_forward.20} parent=1 // pred_region
      %47 = dma.done [#allocation4], 128
    $region17: #{gpt_forward.20} parent=1 // pred_fallthru
      _
    // Predicated region
    $region18: #{gpt_forward.20} parent=1 // pred_check
      _
    $region19: #{gpt_forward.20} parent=1 // pred_check_branch
      %49 = sbr.rel (0) target = $region21
    $region20: #{gpt_forward.20} parent=1 // pred_region
      %50 = dma.done [#allocation7], 256
    $region21: #{gpt_forward.20} parent=1 // pred_fallthru
      _
    // Predicated region
    $region22: #{gpt_forward.20} parent=1 // pred_check
      _
    $region23: #{gpt_forward.20} parent=1 // pred_check_branch
      %52 = sbr.rel (0) target = $region25
    $region24: #{gpt_forward.20} parent=1 // pred_region
      %53 = dma.done [#allocation7], 16
    $region25: #{gpt_forward.20} parent=1 // pred_fallthru
      _
    %p55 = scmp.eq.s32.totalorder 0, 0
    // Predicated region
    $region26: #{gpt_forward.20} parent=1 // pred_check
      %p56 = pneg %p55
    $region27: #{gpt_forward.20} parent=1 // pred_check_branch
      %58 = sbr.rel (%p56) target = $region29
    $region28: #{gpt_forward.20} parent=1 // pred_region
      %59 = vst [vmem:[#allocation2] sm:$0xff] 0.0
      %60 = vst [vmem:[#allocation2 + $0x8] sm:$0xff] 0.0
    $region29: #{gpt_forward.20} parent=1 // pred_fallthru
      _
    %v61 = vld [vmem:[#allocation2] sm:$0xff]
    %v62 = vld [vmem:[#allocation2 + $0x8] sm:$0xff]
    %v63 = vld [vmem:[#allocation3] sm:$0xf]
    %v64 = vld [vmem:[#allocation3 + $0x4] sm:$0xf]
    %v65 = vld [vmem:[#allocation6] sm:$0xf]
    %v66 = vld [vmem:[#allocation6 + $0x4] sm:$0xf]
    %v67 = vld [vmem:[#allocation6 + $0x8] sm:$0xf]
    %v68 = vld [vmem:[#allocation6 + $0xc] sm:$0xf]
    %v71 = vunpack.c.l.b16 %v63
    %v72 = vunpack.c.l.b16 %v64
    %v73 = vpack.c.b16 %v72, %v71
    %v78 = vunpack.c.l.b16 %v65
    %v79 = vunpack.c.l.b16 %v66
    %v80 = vunpack.c.l.b16 %v67
    %v81 = vunpack.c.l.b16 %v68
    %v82 = vpack.c.b16 %v79, %v78
    %v83 = vpack.c.b16 %v81, %v80
    %vm86 = vcmask 261120
    %v88 = vsel %vm86, %v73, 0
    %90 = vmatprep.subr.bf16.mxu0 0
    %91 = vmatpush1.bf16.msra.mxu0 %v82
    %92 = vmatprep.subr.bf16.mxu0 0
    %93 = vmatpush1.bf16.msra.mxu0 %v83
    %94 = vmatprep.subr.bf16.mxu0 0
    %95 = vmatpush1.bf16.msra.mxu0 0
    %96 = vmatprep.subr.bf16.mxu0 0
    %97 = vmatpush1.bf16.msra.mxu0 0
    %98 = vmatprep.subr.bf16.mxu0 0
    %99 = vmatpush1.bf16.msra.mxu0 0
    %100 = vmatprep.subr.bf16.mxu0 0
    %101 = vmatpush1.bf16.msra.mxu0 0
    %102 = vmatprep.subr.bf16.mxu0 0
    %103 = vmatpush1.bf16.msra.mxu0 0
    %104 = vmatprep.subr.bf16.mxu0 0
    %105 = vmatpush1.bf16.msra.mxu0 0
    %106 = vmatprep.subr.bf16.mxu0 0
    %107 = vmatpush1.bf16.msra.mxu0 0
    %108 = vmatprep.subr.bf16.mxu0 0
    %109 = vmatpush1.bf16.msra.mxu0 0
    %110 = vmatprep.subr.bf16.mxu0 0
    %111 = vmatpush1.bf16.msra.mxu0 0
    %112 = vmatprep.subr.bf16.mxu0 0
    %113 = vmatpush1.bf16.msra.mxu0 0
    %114 = vmatprep.subr.bf16.mxu0 0
    %115 = vmatpush1.bf16.msra.mxu0 0
    %116 = vmatprep.subr.bf16.mxu0 0
    %117 = vmatpush1.bf16.msra.mxu0 0
    %118 = vmatprep.subr.bf16.mxu0 0
    %119 = vmatpush1.bf16.msra.mxu0 0
    %120 = vmatprep.subr.bf16.mxu0 0
    %121 = vmatpush1.bf16.msra.mxu0 0
    %122 = vmatprep.mubr.bf16.mxu0 0
    %123 = vmatmul.mubr.bf16.gmra.mrb[0].mxu0 %v88
    %v124 = vpop.f32.mrb[0].mxu0
    %v125 = vadd.f32 0.0, %v124
    %v126 = vpop.f32.mrb[0].mxu0
    %v127 = vpop.f32.mrb[0].mxu0
    %v128 = vadd.f32 0.0, %v127
    %v129 = vpop.f32.mrb[0].mxu0
    %130 = vdwg.mxu0
    %v131 = vadd.f32 %v61, %v125
    %v132 = vadd.f32 %v62, %v128
    %133 = vst [vmem:[#allocation2] sm:$0xff] %v131
    %134 = vst [vmem:[#allocation2 + $0x8] sm:$0xff] %v132
    // Predicated region
    $region30: #{gpt_forward.20} parent=1 // pred_check
      %p135 = pneg %p55
    $region31: #{gpt_forward.20} parent=1 // pred_check_branch
      %137 = sbr.rel (%p135) target = $region33
    $region32: #{gpt_forward.20} parent=1 // pred_region
      %v138 = vld [vmem:[#allocation2] sm:$0xff]
      %v139 = vld [vmem:[#allocation2 + $0x8] sm:$0xff]
      %v140 = vld [vmem:[#allocation8] sm:$0x1]
      %v142 = vlaneseq
      %v143 = vshrl.u32 %v142, 7
      %v144 = vsub.s32 0, %v143
      %v145 = vrot.slane %v140, %v144
      %v147 = vadd.f32 %v138, %v145
      %v148 = vadd.f32 %v139, %v145
      %v149 = vmul.f32 %v147, 0.5
      %v150 = vmul.f32 %v148, 0.5
      %v151 = vmul.f32 %v147, 0.70710677
      %v152 = vmul.f32 %v148, 0.70710677
      %v153 = verf.f32.pop %v151
      %v154 = verf.f32.pop %v152
      %v155 = vadd.f32 %v153, 1.0
      %v156 = vadd.f32 %v154, 1.0
      %v157 = vmul.f32 %v149, %v155
      %v158 = vmul.f32 %v150, %v156
      %v159 = vpack.c.bf16 %v158, %v157
      %v161 = vunpack.c.l.b16 %v159
      %v162 = vunpack.c.h.b16 %v159
      %v163 = vpack.c.b16 %v161, %v161
      %v164 = vpack.c.b16 %v162, %v162
      %167 = vst [vmem:[#allocation9] sm:$0xf] %v163
      %168 = vst [vmem:[#allocation9 + $0x4] sm:$0xf] %v164
    $region33: #{gpt_forward.20} parent=1 // pred_fallthru
      _
    // Predicated region
    $region34: #{gpt_forward.20} parent=1 // pred_check
      _
    $region35: #{gpt_forward.20} parent=1 // pred_check_branch
      %170 = sbr.rel (0) target = $region37
    $region36: #{gpt_forward.20} parent=1 // pred_region
      %s172 = ssub.s32 128, 128
      %173 = vsyncadd [#allocation5], %s172
      %s174 = sshll.u32 [#allocation9], 4
      %s175 = int_to_ptr.vmem [resolvable:$true] %s174
      %180 = dma.vmem_to_hbm [thread:$0]  %s175, 128, %s3, [#allocation5], 64, 64, 4
    $region37: #{gpt_forward.20} parent=1 // pred_fallthru
      _
    // Predicated region
    $region38: #{gpt_forward.20} parent=1 // pred_check
      _
    $region39: #{gpt_forward.20} parent=1 // pred_check_branch
      %182 = sbr.rel (0) target = $region41
    $region40: #{gpt_forward.20} parent=1 // pred_region
      %183 = dma.done [#allocation5], 128
    $region41: #{gpt_forward.20} parent=1 // pred_fallthru
      _
    %184 = vsyncpa [#allocation4], 1
    %185 = vsyncpa [#allocation7], 1
    %186 = vsyncpa [#allocation5], 1

// kernel: gpt_forward.21
$region0: #{gpt_forward.21}
  #allocation0 [shape = 'u32[]', space=smem, size = 0x4, offset = 0x4, fixed_abs, tag = 'smem constant byte address 0x4 - core index']
  #allocation1 [shape = 'u32[144,128]{1,0:T(1,128)}', space=vmem, size = 0x12000, scoped, tag = 'internal scratch']
  #allocation2 [shape = 'f32[16,32]{1,0:T(8,128)}', space=vmem, size = 0x2000, scoped, tag = 'scratch operand']
  %s0 = inlined_call_operand.hbm [shape: bf16[16,128], index: 0, kind: input, shape index: {}]
  %s1 = inlined_call_operand.hbm [shape: bf16[128,32], index: 1, kind: input, shape index: {}]
  %s2 = inlined_call_operand.hbm [shape: f32[1,32], index: 2, kind: input, shape index: {}]
  %s3 = inlined_call_operand.hbm [shape: bf16[16,32], index: 3, kind: input, shape index: {}]
  %s4 = inlined_call_operand.hbm [shape: f32[1,32], index: 4, kind: input, shape index: {}]
  %s5 = inlined_call_operand.hbm [shape: f32[1,32], index: 5, kind: input, shape index: {}]
  %s6 = inlined_call_operand.hbm [shape: bf16[16,32], index: 6, kind: output, shape index: {}]
  %s7 = sld [smem:[#allocation0]]
  $region66: #{gpt_forward.21} parent=0
    _
  %s9 = ssub.s32 1, %s7
  %s10 = scalar_select 0, %s9, %s7
  $region1: #{gpt_forward.21} parent=0
    #allocation3 [shape = 'u8[4096]{0}', space=vmem, size = 0x1000, scoped, tag = 'input window, operand 0, single buffered']
    #allocation4 [shape = 's32[1]{0}', space=sflag, size = 0x4, scoped, tag = 'scoped memory for gpt_forward.21']
    #allocation5 [shape = 's32[1]{0}', space=sflag, size = 0x4, scoped, tag = 'scoped memory for gpt_forward.21']
    #allocation6 [shape = 'u8[32768]{0}', space=vmem, size = 0x8000, scoped, tag = 'input window, operand 1, single buffered']
    #allocation7 [shape = 's32[1]{0}', space=sflag, size = 0x4, scoped, tag = 'scoped memory for gpt_forward.21']
    #allocation8 [shape = 'u8[512]{0}', space=vmem, size = 0x400, scoped, tag = 'input window, operand 2, single buffered']
    #allocation9 [shape = 'u8[4096]{0}', space=vmem, size = 0x1000, scoped, tag = 'input window, operand 3, single buffered']
    #allocation10 [shape = 's32[1]{0}', space=sflag, size = 0x4, scoped, tag = 'scoped memory for gpt_forward.21']
    #allocation11 [shape = 'u8[512]{0}', space=vmem, size = 0x400, scoped, tag = 'input window, operand 4, single buffered']
    #allocation12 [shape = 'u8[512]{0}', space=vmem, size = 0x400, scoped, tag = 'input window, operand 5, single buffered']
    #allocation13 [shape = 's32[1]{0}', space=sflag, size = 0x4, scoped, tag = 'scoped memory for gpt_forward.21']
    #allocation14 [shape = 'u8[4096]{0}', space=vmem, size = 0x1000, scoped, tag = 'output window, operand 0, single buffered']
    %11 = vsyncpa [#allocation4], 0
    %12 = vsyncpa [#allocation7], 0
    %13 = vsyncpa [#allocation10], 0
    %14 = vsyncpa [#allocation13], 0
    %15 = vsyncpa [#allocation5], 0
    // Predicated region
    $region2: #{gpt_forward.21} parent=1 // pred_check
      _
    $region3: #{gpt_forward.21} parent=1 // pred_check_branch
      %17 = sbr.rel (0) target = $region5
    $region4: #{gpt_forward.21} parent=1 // pred_region
      %s19 = ssub.s32 128, 128
      %20 = vsyncadd [#allocation4], %s19
      %s21 = sshll.u32 [#allocation3], 4
      %s22 = int_to_ptr.vmem [resolvable:$true] %s21
      %27 = dma.hbm_to_vmem [thread:$0]  %s0, 128, %s22, [#allocation4], 64, 64, 4
    $region5: #{gpt_forward.21} parent=1 // pred_fallthru
      _
    // Predicated region
    $region6: #{gpt_forward.21} parent=1 // pred_check
      _
    $region7: #{gpt_forward.21} parent=1 // pred_check_branch
      %29 = sbr.rel (0) target = $region9
    $region8: #{gpt_forward.21} parent=1 // pred_region
      %s31 = ssub.s32 1024, 1024
      %32 = vsyncadd [#allocation7], %s31
      %s33 = sshll.u32 [#allocation6], 4
      %s34 = int_to_ptr.vmem [resolvable:$true] %s33
      %39 = dma.hbm_to_vmem [thread:$0]  %s1, 1024, %s34, [#allocation7], 64, 64, 4
    $region9: #{gpt_forward.21} parent=1 // pred_fallthru
      _
    // Predicated region
    $region10: #{gpt_forward.21} parent=1 // pred_check
      _
    $region11: #{gpt_forward.21} parent=1 // pred_check_branch
      %41 = sbr.rel (0) target = $region13
    $region12: #{gpt_forward.21} parent=1 // pred_region
      %s43 = ssub.s32 16, 16
      %44 = vsyncadd [#allocation7], %s43
      %s46 = sshll.u32 [#allocation8], 4
      %s47 = int_to_ptr.vmem [resolvable:$true] %s46
      %49 = dma.hbm_to_vmem [thread:$0]  %s2, 16, %s47, [#allocation7]
    $region13: #{gpt_forward.21} parent=1 // pred_fallthru
      _
    // Predicated region
    $region14: #{gpt_forward.21} parent=1 // pred_check
      _
    $region15: #{gpt_forward.21} parent=1 // pred_check_branch
      %51 = sbr.rel (0) target = $region17
    $region16: #{gpt_forward.21} parent=1 // pred_region
      %s53 = ssub.s32 128, 128
      %54 = vsyncadd [#allocation10], %s53
      %s55 = sshll.u32 [#allocation9], 4
      %s56 = int_to_ptr.vmem [resolvable:$true] %s55
      %61 = dma.hbm_to_vmem [thread:$0]  %s3, 128, %s56, [#allocation10], 64, 64, 4
    $region17: #{gpt_forward.21} parent=1 // pred_fallthru
      _
    // Predicated region
    $region18: #{gpt_forward.21} parent=1 // pred_check
      _
    $region19: #{gpt_forward.21} parent=1 // pred_check_branch
      %63 = sbr.rel (0) target = $region21
    $region20: #{gpt_forward.21} parent=1 // pred_region
      %s65 = ssub.s32 16, 16
      %66 = vsyncadd [#allocation10], %s65
      %s68 = sshll.u32 [#allocation11], 4
      %s69 = int_to_ptr.vmem [resolvable:$true] %s68
      %71 = dma.hbm_to_vmem [thread:$0]  %s4, 16, %s69, [#allocation10]
    $region21: #{gpt_forward.21} parent=1 // pred_fallthru
      _
    // Predicated region
    $region22: #{gpt_forward.21} parent=1 // pred_check
      _
    $region23: #{gpt_forward.21} parent=1 // pred_check_branch
      %73 = sbr.rel (0) target = $region25
    $region24: #{gpt_forward.21} parent=1 // pred_region
      %s75 = ssub.s32 16, 16
      %76 = vsyncadd [#allocation13], %s75
      %s78 = sshll.u32 [#allocation12], 4
      %s79 = int_to_ptr.vmem [resolvable:$true] %s78
      %81 = dma.hbm_to_vmem [thread:$0]  %s5, 16, %s79, [#allocation13]
    $region25: #{gpt_forward.21} parent=1 // pred_fallthru
      _
    // Predicated region
    $region26: #{gpt_forward.21} parent=1 // pred_check
      _
    $region27: #{gpt_forward.21} parent=1 // pred_check_branch
      %83 = sbr.rel (0) target = $region29
    $region28: #{gpt_forward.21} parent=1 // pred_region
      %84 = dma.done [#allocation4], 128
    $region29: #{gpt_forward.21} parent=1 // pred_fallthru
      _
    // Predicated region
    $region30: #{gpt_forward.21} parent=1 // pred_check
      _
    $region31: #{gpt_forward.21} parent=1 // pred_check_branch
      %86 = sbr.rel (0) target = $region33
    $region32: #{gpt_forward.21} parent=1 // pred_region
      %87 = dma.done [#allocation7], 1024
    $region33: #{gpt_forward.21} parent=1 // pred_fallthru
      _
    // Predicated region
    $region34: #{gpt_forward.21} parent=1 // pred_check
      _
    $region35: #{gpt_forward.21} parent=1 // pred_check_branch
      %89 = sbr.rel (0) target = $region37
    $region36: #{gpt_forward.21} parent=1 // pred_region
      %90 = dma.done [#allocation7], 16
    $region37: #{gpt_forward.21} parent=1 // pred_fallthru
      _
    // Predicated region
    $region38: #{gpt_forward.21} parent=1 // pred_check
      _
    $region39: #{gpt_forward.21} parent=1 // pred_check_branch
      %92 = sbr.rel (0) target = $region41
    $region40: #{gpt_forward.21} parent=1 // pred_region
      %93 = dma.done [#allocation10], 128
    $region41: #{gpt_forward.21} parent=1 // pred_fallthru
      _
    // Predicated region
    $region42: #{gpt_forward.21} parent=1 // pred_check
      _
    $region43: #{gpt_forward.21} parent=1 // pred_check_branch
      %95 = sbr.rel (0) target = $region45
    $region44: #{gpt_forward.21} parent=1 // pred_region
      %96 = dma.done [#allocation10], 16
    $region45: #{gpt_forward.21} parent=1 // pred_fallthru
      _
    // Predicated region
    $region46: #{gpt_forward.21} parent=1 // pred_check
      _
    $region47: #{gpt_forward.21} parent=1 // pred_check_branch
      %98 = sbr.rel (0) target = $region49
    $region48: #{gpt_forward.21} parent=1 // pred_region
      %99 = dma.done [#allocation13], 16
    $region49: #{gpt_forward.21} parent=1 // pred_fallthru
      _
    %p101 = scmp.eq.s32.totalorder 0, 0
    // Predicated region
    $region50: #{gpt_forward.21} parent=1 // pred_check
      %p102 = pneg %p101
    $region51: #{gpt_forward.21} parent=1 // pred_check_branch
      %104 = sbr.rel (%p102) target = $region53
    $region52: #{gpt_forward.21} parent=1 // pred_region
      %vm105 = vcmask 261120
      %106 = vst.msk [vmem:[#allocation2] sm:$0xff] %vm105, 0.0
      %107 = vst.msk [vmem:[#allocation2 + $0x8] sm:$0xff] %vm105, 0.0
    $region53: #{gpt_forward.21} parent=1 // pred_fallthru
      _
    %v108 = vld [vmem:[#allocation2] sm:$0xff]
    %v109 = vld [vmem:[#allocation2 + $0x8] sm:$0xff]
    %v110 = vld [vmem:[#allocation3] sm:$0xf]
    %v111 = vld [vmem:[#allocation3 + $0x4] sm:$0xf]
    %v112 = vld [vmem:[#allocation6] sm:$0xf]
    %v113 = vld [vmem:[#allocation6 + $0x4] sm:$0xf]
    %v114 = vld [vmem:[#allocation6 + $0x8] sm:$0xf]
    %v115 = vld [vmem:[#allocation6 + $0xc] sm:$0xf]
    %v116 = vld [vmem:[#allocation6 + $0x10] sm:$0xf]
    %v117 = vld [vmem:[#allocation6 + $0x14] sm:$0xf]
    %v118 = vld [vmem:[#allocation6 + $0x18] sm:$0xf]
    %v119 = vld [vmem:[#allocation6 + $0x1c] sm:$0xf]
    %v120 = vld [vmem:[#allocation6 + $0x20] sm:$0xf]
    %v121 = vld [vmem:[#allocation6 + $0x24] sm:$0xf]
    %v122 = vld [vmem:[#allocation6 + $0x28] sm:$0xf]
    %v123 = vld [vmem:[#allocation6 + $0x2c] sm:$0xf]
    %v124 = vld [vmem:[#allocation6 + $0x30] sm:$0xf]
    %v125 = vld [vmem:[#allocation6 + $0x34] sm:$0xf]
    %v126 = vld [vmem:[#allocation6 + $0x38] sm:$0xf]
    %v127 = vld [vmem:[#allocation6 + $0x3c] sm:$0xf]
    %v130 = vunpack.c.l.b16 %v110
    %v131 = vunpack.c.l.b16 %v111
    %v132 = vpack.c.b16 %v131, %v130
    %v150 = vunpack.c.l.b16 %v112
    %v151 = vunpack.c.l.b16 %v113
    %v152 = vunpack.c.l.b16 %v114
    %v153 = vunpack.c.l.b16 %v115
    %v154 = vunpack.c.l.b16 %v116
    %v155 = vunpack.c.l.b16 %v117
    %v156 = vunpack.c.l.b16 %v118
    %v157 = vunpack.c.l.b16 %v119
    %v158 = vunpack.c.l.b16 %v120
    %v159 = vunpack.c.l.b16 %v121
    %v160 = vunpack.c.l.b16 %v122
    %v161 = vunpack.c.l.b16 %v123
    %v162 = vunpack.c.l.b16 %v124
    %v163 = vunpack.c.l.b16 %v125
    %v164 = vunpack.c.l.b16 %v126
    %v165 = vunpack.c.l.b16 %v127
    %v166 = vpack.c.b16 %v151, %v150
    %v167 = vpack.c.b16 %v153, %v152
    %v168 = vpack.c.b16 %v155, %v154
    %v169 = vpack.c.b16 %v157, %v156
    %v170 = vpack.c.b16 %v159, %v158
    %v171 = vpack.c.b16 %v161, %v160
    %v172 = vpack.c.b16 %v163, %v162
    %v173 = vpack.c.b16 %v165, %v164
    %182 = vmatprep.subr.bf16.mxu0 0
    %183 = vmatpush1.bf16.msra.mxu0 %v166
    %184 = vmatprep.subr.bf16.mxu0 0
    %185 = vmatpush1.bf16.msra.mxu0 %v167
    %186 = vmatprep.subr.bf16.mxu0 0
    %187 = vmatpush1.bf16.msra.mxu0 %v168
    %188 = vmatprep.subr.bf16.mxu0 0
    %189 = vmatpush1.bf16.msra.mxu0 %v169
    %190 = vmatprep.subr.bf16.mxu0 0
    %191 = vmatpush1.bf16.msra.mxu0 %v170
    %192 = vmatprep.subr.bf16.mxu0 0
    %193 = vmatpush1.bf16.msra.mxu0 %v171
    %194 = vmatprep.subr.bf16.mxu0 0
    %195 = vmatpush1.bf16.msra.mxu0 %v172
    %196 = vmatprep.subr.bf16.mxu0 0
    %197 = vmatpush1.bf16.msra.mxu0 %v173
    %198 = vmatprep.subr.bf16.mxu0 0
    %199 = vmatpush1.bf16.msra.mxu0 0
    %200 = vmatprep.subr.bf16.mxu0 0
    %201 = vmatpush1.bf16.msra.mxu0 0
    %202 = vmatprep.subr.bf16.mxu0 0
    %203 = vmatpush1.bf16.msra.mxu0 0
    %204 = vmatprep.subr.bf16.mxu0 0
    %205 = vmatpush1.bf16.msra.mxu0 0
    %206 = vmatprep.subr.bf16.mxu0 0
    %207 = vmatpush1.bf16.msra.mxu0 0
    %208 = vmatprep.subr.bf16.mxu0 0
    %209 = vmatpush1.bf16.msra.mxu0 0
    %210 = vmatprep.subr.bf16.mxu0 0
    %211 = vmatpush1.bf16.msra.mxu0 0
    %212 = vmatprep.subr.bf16.mxu0 0
    %213 = vmatpush1.bf16.msra.mxu0 0
    %214 = vmatprep.mubr.bf16.mxu0 0
    %215 = vmatmul.mubr.bf16.gmra.mrb[0].mxu0 %v132
    %v216 = vpop.f32.mrb[0].mxu0
    %v217 = vadd.f32 0.0, %v216
    %v218 = vpop.f32.mrb[0].mxu0
    %v219 = vpop.f32.mrb[0].mxu0
    %v220 = vadd.f32 0.0, %v219
    %v221 = vpop.f32.mrb[0].mxu0
    %222 = vdwg.mxu0
    %v223 = vadd.f32 %v108, %v217
    %v224 = vadd.f32 %v109, %v220
    %vm225 = vcmask 261120
    %226 = vst.msk [vmem:[#allocation2] sm:$0xff] %vm225, %v223
    %227 = vst.msk [vmem:[#allocation2 + $0x8] sm:$0xff] %vm225, %v224
    // Predicated region
    $region54: #{gpt_forward.21} parent=1 // pred_check
      %p228 = pneg %p101
    $region55: #{gpt_forward.21} parent=1 // pred_check_branch
      %230 = sbr.rel (%p228) target = $region57
    $region56: #{gpt_forward.21} parent=1 // pred_region
      %v231 = vld [vmem:[#allocation2] sm:$0xff]
      %v232 = vld [vmem:[#allocation2 + $0x8] sm:$0xff]
      %v233 = vld [vmem:[#allocation8] sm:$0x1]
      %v235 = vlaneseq
      %v236 = vshrl.u32 %v235, 7
      %v237 = vsub.s32 0, %v236
      %v238 = vrot.slane %v233, %v237
      %v240 = vadd.f32 %v231, %v238
      %v241 = vadd.f32 %v232, %v238
      %v242 = vld [vmem:[#allocation9] sm:$0xf]
      %v243 = vld [vmem:[#allocation9 + $0x4] sm:$0xf]
      %v244 = vunpack.c.l.bf16 %v242
      %v245 = vunpack.c.l.bf16 %v243
      %v246 = vadd.f32 %v240, %v244
      %v247 = vadd.f32 %v241, %v245
      %v248 = vld [vmem:[#allocation11] sm:$0x1]
      %v250 = vlaneseq
      %v251 = vshrl.u32 %v250, 7
      %v252 = vsub.s32 0, %v251
      %v253 = vrot.slane %v248, %v252
      %v255 = vmul.f32 %v253, %v246
      %v256 = vmul.f32 %v253, %v247
      %v257 = vld [vmem:[#allocation12] sm:$0x1]
      %v259 = vlaneseq
      %v260 = vshrl.u32 %v259, 7
      %v261 = vsub.s32 0, %v260
      %v262 = vrot.slane %v257, %v261
      %v264 = vadd.f32 %v255, %v262
      %v265 = vadd.f32 %v256, %v262
      %v266 = vpack.c.bf16 %v265, %v264
      %v268 = vunpack.c.l.b16 %v266
      %v269 = vunpack.c.h.b16 %v266
      %v270 = vpack.c.b16 %v268, %v268
      %v271 = vpack.c.b16 %v269, %v269
      %vm274 = vcmask 257024
      %275 = vst.msk [vmem:[#allocation14] sm:$0xf] %vm274, %v270
      %276 = vst.msk [vmem:[#allocation14 + $0x4] sm:$0xf] %vm274, %v271
    $region57: #{gpt_forward.21} parent=1 // pred_fallthru
      _
    // Predicated region
    $region58: #{gpt_forward.21} parent=1 // pred_check
      _
    $region59: #{gpt_forward.21} parent=1 // pred_check_branch
      %278 = sbr.rel (0) target = $region61
    $region60: #{gpt_forward.21} parent=1 // pred_region
      %s280 = ssub.s32 128, 128
      %281 = vsyncadd [#allocation5], %s280
      %s282 = sshll.u32 [#allocation14], 4
      %s283 = int_to_ptr.vmem [resolvable:$true] %s282
      %288 = dma.vmem_to_hbm [thread:$0]  %s283, 128, %s6, [#allocation5], 64, 64, 4
    $region61: #{gpt_forward.21} parent=1 // pred_fallthru
      _
    // Predicated region
    $region62: #{gpt_forward.21} parent=1 // pred_check
      _
    $region63: #{gpt_forward.21} parent=1 // pred_check_branch
      %290 = sbr.rel (0) target = $region65
    $region64: #{gpt_forward.21} parent=1 // pred_region
      %291 = dma.done [#allocation5], 128
    $region65: #{gpt_forward.21} parent=1 // pred_fallthru
      _
    %292 = vsyncpa [#allocation4], 1
    %293 = vsyncpa [#allocation7], 1
    %294 = vsyncpa [#allocation10], 1
    %295 = vsyncpa [#allocation13], 1
    %296 = vsyncpa [#allocation5], 1

// kernel: gpt_forward.29
$region0: #{gpt_forward.29}
  #allocation0 [shape = 'u32[]', space=smem, size = 0x4, offset = 0x4, fixed_abs, tag = 'smem constant byte address 0x4 - core index']
  #allocation1 [shape = 'u32[144,128]{1,0:T(1,128)}', space=vmem, size = 0x12000, scoped, tag = 'internal scratch']
  #allocation2 [shape = 'f32[16,32]{1,0:T(8,128)}', space=vmem, size = 0x2000, scoped, tag = 'scratch operand']
  %s0 = inlined_call_operand.hbm [shape: bf16[16,32], index: 0, kind: input, shape index: {}]
  %s1 = inlined_call_operand.hbm [shape: bf16[32,32], index: 1, kind: input, shape index: {}]
  %s2 = inlined_call_operand.hbm [shape: f32[1,32], index: 2, kind: input, shape index: {}]
  %s3 = inlined_call_operand.hbm [shape: f32[16,32], index: 3, kind: output, shape index: {}]
  %s4 = sld [smem:[#allocation0]]
  $region42: #{gpt_forward.29} parent=0
    _
  %s6 = ssub.s32 1, %s4
  %s7 = scalar_select 0, %s6, %s4
  $region1: #{gpt_forward.29} parent=0
    #allocation3 [shape = 'u8[4096]{0}', space=vmem, size = 0x1000, scoped, tag = 'input window, operand 0, single buffered']
    #allocation4 [shape = 's32[1]{0}', space=sflag, size = 0x4, scoped, tag = 'scoped memory for gpt_forward.29']
    #allocation5 [shape = 's32[1]{0}', space=sflag, size = 0x4, scoped, tag = 'scoped memory for gpt_forward.29']
    #allocation6 [shape = 'u8[8192]{0}', space=vmem, size = 0x2000, scoped, tag = 'input window, operand 1, single buffered']
    #allocation7 [shape = 's32[1]{0}', space=sflag, size = 0x4, scoped, tag = 'scoped memory for gpt_forward.29']
    #allocation8 [shape = 'u8[512]{0}', space=vmem, size = 0x400, scoped, tag = 'input window, operand 2, single buffered']
    #allocation9 [shape = 'u8[8192]{0}', space=vmem, size = 0x2000, scoped, tag = 'output window, operand 0, single buffered']
    %8 = vsyncpa [#allocation4], 0
    %9 = vsyncpa [#allocation7], 0
    %10 = vsyncpa [#allocation5], 0
    // Predicated region
    $region2: #{gpt_forward.29} parent=1 // pred_check
      _
    $region3: #{gpt_forward.29} parent=1 // pred_check_branch
      %12 = sbr.rel (0) target = $region5
    $region4: #{gpt_forward.29} parent=1 // pred_region
      %s14 = ssub.s32 128, 128
      %15 = vsyncadd [#allocation4], %s14
      %s16 = sshll.u32 [#allocation3], 4
      %s17 = int_to_ptr.vmem [resolvable:$true] %s16
      %22 = dma.hbm_to_vmem [thread:$0]  %s0, 128, %s17, [#allocation4], 64, 64, 4
    $region5: #{gpt_forward.29} parent=1 // pred_fallthru
      _
    // Predicated region
    $region6: #{gpt_forward.29} parent=1 // pred_check
      _
    $region7: #{gpt_forward.29} parent=1 // pred_check_branch
      %24 = sbr.rel (0) target = $region9
    $region8: #{gpt_forward.29} parent=1 // pred_region
      %s26 = ssub.s32 256, 256
      %27 = vsyncadd [#allocation7], %s26
      %s28 = sshll.u32 [#allocation6], 4
      %s29 = int_to_ptr.vmem [resolvable:$true] %s28
      %34 = dma.hbm_to_vmem [thread:$0]  %s1, 256, %s29, [#allocation7], 64, 64, 4
    $region9: #{gpt_forward.29} parent=1 // pred_fallthru
      _
    // Predicated region
    $region10: #{gpt_forward.29} parent=1 // pred_check
      _
    $region11: #{gpt_forward.29} parent=1 // pred_check_branch
      %36 = sbr.rel (0) target = $region13
    $region12: #{gpt_forward.29} parent=1 // pred_region
      %s38 = ssub.s32 16, 16
      %39 = vsyncadd [#allocation7], %s38
      %s41 = sshll.u32 [#allocation8], 4
      %s42 = int_to_ptr.vmem [resolvable:$true] %s41
      %44 = dma.hbm_to_vmem [thread:$0]  %s2, 16, %s42, [#allocation7]
    $region13: #{gpt_forward.29} parent=1 // pred_fallthru
      _
    // Predicated region
    $region14: #{gpt_forward.29} parent=1 // pred_check
      _
    $region15: #{gpt_forward.29} parent=1 // pred_check_branch
      %46 = sbr.rel (0) target = $region17
    $region16: #{gpt_forward.29} parent=1 // pred_region
      %47 = dma.done [#allocation4], 128
    $region17: #{gpt_forward.29} parent=1 // pred_fallthru
      _
    // Predicated region
    $region18: #{gpt_forward.29} parent=1 // pred_check
      _
    $region19: #{gpt_forward.29} parent=1 // pred_check_branch
      %49 = sbr.rel (0) target = $region21
    $region20: #{gpt_forward.29} parent=1 // pred_region
      %50 = dma.done [#allocation7], 256
    $region21: #{gpt_forward.29} parent=1 // pred_fallthru
      _
    // Predicated region
    $region22: #{gpt_forward.29} parent=1 // pred_check
      _
    $region23: #{gpt_forward.29} parent=1 // pred_check_branch
      %52 = sbr.rel (0) target = $region25
    $region24: #{gpt_forward.29} parent=1 // pred_region
      %53 = dma.done [#allocation7], 16
    $region25: #{gpt_forward.29} parent=1 // pred_fallthru
      _
    %p55 = scmp.eq.s32.totalorder 0, 0
    // Predicated region
    $region26: #{gpt_forward.29} parent=1 // pred_check
      %p56 = pneg %p55
    $region27: #{gpt_forward.29} parent=1 // pred_check_branch
      %58 = sbr.rel (%p56) target = $region29
    $region28: #{gpt_forward.29} parent=1 // pred_region
      %vm59 = vcmask 261120
      %60 = vst.msk [vmem:[#allocation2] sm:$0xff] %vm59, 0.0
      %61 = vst.msk [vmem:[#allocation2 + $0x8] sm:$0xff] %vm59, 0.0
    $region29: #{gpt_forward.29} parent=1 // pred_fallthru
      _
    %v62 = vld [vmem:[#allocation2] sm:$0xff]
    %v63 = vld [vmem:[#allocation2 + $0x8] sm:$0xff]
    %v64 = vld [vmem:[#allocation3] sm:$0xf]
    %v65 = vld [vmem:[#allocation3 + $0x4] sm:$0xf]
    %v66 = vld [vmem:[#allocation6] sm:$0xf]
    %v67 = vld [vmem:[#allocation6 + $0x4] sm:$0xf]
    %v68 = vld [vmem:[#allocation6 + $0x8] sm:$0xf]
    %v69 = vld [vmem:[#allocation6 + $0xc] sm:$0xf]
    %v72 = vunpack.c.l.b16 %v64
    %v73 = vunpack.c.l.b16 %v65
    %v74 = vpack.c.b16 %v73, %v72
    %v79 = vunpack.c.l.b16 %v66
    %v80 = vunpack.c.l.b16 %v67
    %v81 = vunpack.c.l.b16 %v68
    %v82 = vunpack.c.l.b16 %v69
    %v83 = vpack.c.b16 %v80, %v79
    %v84 = vpack.c.b16 %v82, %v81
    %vm87 = vcmask 261120
    %v89 = vsel %vm87, %v74, 0
    %91 = vmatprep.subr.bf16.mxu0 0
    %92 = vmatpush1.bf16.msra.mxu0 %v83
    %93 = vmatprep.subr.bf16.mxu0 0
    %94 = vmatpush1.bf16.msra.mxu0 %v84
    %95 = vmatprep.subr.bf16.mxu0 0
    %96 = vmatpush1.bf16.msra.mxu0 0
    %97 = vmatprep.subr.bf16.mxu0 0
    %98 = vmatpush1.bf16.msra.mxu0 0
    %99 = vmatprep.subr.bf16.mxu0 0
    %100 = vmatpush1.bf16.msra.mxu0 0
    %101 = vmatprep.subr.bf16.mxu0 0
    %102 = vmatpush1.bf16.msra.mxu0 0
    %103 = vmatprep.subr.bf16.mxu0 0
    %104 = vmatpush1.bf16.msra.mxu0 0
    %105 = vmatprep.subr.bf16.mxu0 0
    %106 = vmatpush1.bf16.msra.mxu0 0
    %107 = vmatprep.subr.bf16.mxu0 0
    %108 = vmatpush1.bf16.msra.mxu0 0
    %109 = vmatprep.subr.bf16.mxu0 0
    %110 = vmatpush1.bf16.msra.mxu0 0
    %111 = vmatprep.subr.bf16.mxu0 0
    %112 = vmatpush1.bf16.msra.mxu0 0
    %113 = vmatprep.subr.bf16.mxu0 0
    %114 = vmatpush1.bf16.msra.mxu0 0
    %115 = vmatprep.subr.bf16.mxu0 0
    %116 = vmatpush1.bf16.msra.mxu0 0
    %117 = vmatprep.subr.bf16.mxu0 0
    %118 = vmatpush1.bf16.msra.mxu0 0
    %119 = vmatprep.subr.bf16.mxu0 0
    %120 = vmatpush1.bf16.msra.mxu0 0
    %121 = vmatprep.subr.bf16.mxu0 0
    %122 = vmatpush1.bf16.msra.mxu0 0
    %123 = vmatprep.mubr.bf16.mxu0 0
    %124 = vmatmul.mubr.bf16.gmra.mrb[0].mxu0 %v89
    %v125 = vpop.f32.mrb[0].mxu0
    %v126 = vadd.f32 0.0, %v125
    %v127 = vpop.f32.mrb[0].mxu0
    %v128 = vpop.f32.mrb[0].mxu0
    %v129 = vadd.f32 0.0, %v128
    %v130 = vpop.f32.mrb[0].mxu0
    %131 = vdwg.mxu0
    %v132 = vadd.f32 %v62, %v126
    %v133 = vadd.f32 %v63, %v129
    %134 = vst.msk [vmem:[#allocation2] sm:$0xff] %vm87, %v132
    %135 = vst.msk [vmem:[#allocation2 + $0x8] sm:$0xff] %vm87, %v133
    // Predicated region
    $region30: #{gpt_forward.29} parent=1 // pred_check
      %p136 = pneg %p55
    $region31: #{gpt_forward.29} parent=1 // pred_check_branch
      %138 = sbr.rel (%p136) target = $region33
    $region32: #{gpt_forward.29} parent=1 // pred_region
      %v139 = vld [vmem:[#allocation2] sm:$0xff]
      %v140 = vld [vmem:[#allocation2 + $0x8] sm:$0xff]
      %v141 = vld [vmem:[#allocation8] sm:$0x1]
      %v143 = vlaneseq
      %v144 = vshrl.u32 %v143, 7
      %v145 = vsub.s32 0, %v144
      %v146 = vrot.slane %v141, %v145
      %v148 = vadd.f32 %v139, %v146
      %v149 = vadd.f32 %v140, %v146
      %150 = vst.msk [vmem:[#allocation9] sm:$0xff] %vm87, %v148
      %151 = vst.msk [vmem:[#allocation9 + $0x8] sm:$0xff] %vm87, %v149
    $region33: #{gpt_forward.29} parent=1 // pred_fallthru
      _
    // Predicated region
    $region34: #{gpt_forward.29} parent=1 // pred_check
      _
    $region35: #{gpt_forward.29} parent=1 // pred_check_branch
      %153 = sbr.rel (0) target = $region37
    $region36: #{gpt_forward.29} parent=1 // pred_region
      %s155 = ssub.s32 256, 256
      %156 = vsyncadd [#allocation5], %s155
      %s157 = sshll.u32 [#allocation9], 4
      %s158 = int_to_ptr.vmem [resolvable:$true] %s157
      %163 = dma.vmem_to_hbm [thread:$0]  %s158, 256, %s3, [#allocation5], 128, 128, 8
    $region37: #{gpt_forward.29} parent=1 // pred_fallthru
      _
    // Predicated region
    $region38: #{gpt_forward.29} parent=1 // pred_check
      _
    $region39: #{gpt_forward.29} parent=1 // pred_check_branch
      %165 = sbr.rel (0) target = $region41
    $region40: #{gpt_forward.29} parent=1 // pred_region
      %166 = dma.done [#allocation5], 256
    $region41: #{gpt_forward.29} parent=1 // pred_fallthru
      _
    %167 = vsyncpa [#allocation4], 1
    %168 = vsyncpa [#allocation7], 1
    %169 = vsyncpa [#allocation5], 1

</llo_original>
